<compile_context>
chip_gen: v5e
topology: v5e:2x2
jax: 0.10.0
libtpu: 0.0.40
codegen_flags: <defaults>
</compile_context>

<pallas_src>
import functools

import jax
import jax.numpy as jnp
import numpy as np
from jax.experimental import pallas as pl
from jax.experimental.pallas import tpu as pltpu


# ----------------------------------------------------------------------------
# Host-side helpers
# ----------------------------------------------------------------------------
def _make_tap_masks(batch, height, width):
    """(9, B*H*W) f32 validity masks for the 9 SAME-conv taps, tap order
    (dy, dx) row-major over {-1,0,1}^2 (matches the weight reshaping below)."""
    n = np.arange(batch * height * width)
    xx = n % width
    yy = (n // width) % height
    rows = []
    for dy in (-1, 0, 1):
        for dx in (-1, 0, 1):
            valid = ((xx + dx >= 0) & (xx + dx < width) &
                     (yy + dy >= 0) & (yy + dy < height))
            rows.append(valid.astype(np.float32))
    return jnp.asarray(np.stack(rows))


# ----------------------------------------------------------------------------
# The fused kernel: grid = (direction,), whole T-step recurrence inside.
# ----------------------------------------------------------------------------
def _blstm_kernel(width, x_ref, w_ref, b_ref, wcif_ref, wco_ref, mask_ref,
                  out_ref, h_sc, c_sc, col_sc):
    d = pl.program_id(0)                     # 0 = forward, 1 = backward
    seq_len, cin, n = x_ref.shape
    chid = wco_ref.shape[0]
    ccat = cin + chid
    # source offsets of the 9 taps in the flat n = (b*H + y)*W + x layout
    shifts = [dy * width + dx for dy in (-1, 0, 1) for dx in (-1, 0, 1)]

    # fresh state per direction (the body runs exactly once per grid step)
    h_sc[...] = jnp.zeros_like(h_sc)
    c_sc[...] = jnp.zeros_like(c_sc)

    w = w_ref[...]                                           # (4Ch, 9*Ccat) bf16
    bias = jnp.broadcast_to(b_ref[...], (4 * chid, n))       # hoisted once
    wcif = wcif_ref[...]                                     # (2Ch, N) f32
    wco = wco_ref[...]                                       # (Ch,  N) f32

    for t in range(seq_len):                 # static trip count -> unrolled
        # original-time index of this step: fwd walks t, bwd walks T-1-t
        t_src = (1 - d) * t + d * (seq_len - 1 - t)
        x_t = x_ref[t_src]                   # (Cin, N) dynamic load over time
        h_prev = h_sc[...]
        c_prev = c_sc[...]
        cat = jnp.concatenate([x_t, h_prev], axis=0)         # (Ccat = 8, N)

        # 3x3 SAME im2col of [x_t ; h_prev]: roll (XLU) * precomputed mask,
        # dense full-width bf16 stores into the staging scratch.
        for ti, s in enumerate(shifts):
            r0 = ti * ccat
            if s == 0:
                col_sc[r0:r0 + ccat, :] = cat.astype(col_sc.dtype)
            else:
                shifted = pltpu.roll(cat, (-s) % n, axis=1)  # shifted[m] = cat[m+s]
                col_sc[r0:r0 + ccat, :] = (
                    shifted * mask_ref[ti:ti + 1, :]).astype(col_sc.dtype)

        # One MXU matmul per step: all 4 gates, x and h taps together.
        acc = jnp.dot(w, col_sc[...], preferred_element_type=jnp.float32) + bias

        # Densified i/f gates: one sigmoid over an 8-sublane-dense slab.
        if_gate = jax.nn.sigmoid(
            acc[:2 * chid, :] + wcif * jnp.concatenate([c_prev, c_prev], axis=0))
        input_gate = if_gate[:chid, :]
        forget_gate = if_gate[chid:, :]
        c_new = (forget_gate * c_prev +
                 input_gate * jnp.tanh(acc[2 * chid:3 * chid, :]))   # 'tanh' act
        output_gate = jax.nn.sigmoid(acc[3 * chid:, :] + wco * c_new)
        h_new = output_gate * jnp.tanh(c_new)

        h_sc[...] = h_new
        c_sc[...] = c_new
        out_ref[t] = h_new                   # recurrence order; bwd flipped on host


def _blstm_pallas(xT, w2, b2, wcif2, wco2, masks, height, width):
    """xT: (T, Cin, N) f32; w2: (2, 4Ch, 9*(Cin+Ch)) bf16; b2: (2, 4Ch, 1) f32;
    wcif2: (2, 2Ch, N) f32; wco2: (2, Ch, N) f32; masks: (9, N) f32.
    Returns hidden sequences (2, T, Ch, N) f32 in RECURRENCE order per dir."""
    T, cin, N = xT.shape
    chid = wco2.shape[1]
    ccat = cin + chid

    grid_spec = pltpu.PrefetchScalarGridSpec(
        num_scalar_prefetch=0,
        grid=(2,),
        in_specs=[
            pl.BlockSpec((T, cin, N), lambda d: (0, 0, 0)),
            pl.BlockSpec((None, 4 * chid, 9 * ccat), lambda d: (d, 0, 0)),
            pl.BlockSpec((None, 4 * chid, 1), lambda d: (d, 0, 0)),
            pl.BlockSpec((None, 2 * chid, N), lambda d: (d, 0, 0)),
            pl.BlockSpec((None, chid, N), lambda d: (d, 0, 0)),
            pl.BlockSpec((9, N), lambda d: (0, 0)),
        ],
        out_specs=pl.BlockSpec((None, T, chid, N), lambda d: (d, 0, 0, 0)),
        scratch_shapes=[
            pltpu.VMEM((chid, N), jnp.float32),          # H state
            pltpu.VMEM((chid, N), jnp.float32),          # C state
            pltpu.VMEM((9 * ccat, N), jnp.bfloat16),     # im2col staging (bf16)
        ],
    )
    return pl.pallas_call(
        functools.partial(_blstm_kernel, width),
        out_shape=jax.ShapeDtypeStruct((2, T, chid, N), jnp.float32),
        grid_spec=grid_spec,
        compiler_params=pltpu.CompilerParams(
            dimension_semantics=("parallel",)),   # one direction per TC on v7x
    )(xT, w2, b2, wcif2, wco2, masks)


# ----------------------------------------------------------------------------
# ConvBLSTM wrapper (layout plumbing only; all compute lives in the kernel)
# ----------------------------------------------------------------------------
def conv_blstm_forward(x, params_fwd, params_bwd, return_sequence=False):
    """x: (B, T, Cin, H, W)  ->  (B, T, Cout, H, W) or (B, Cout, H, W)."""
    B, T, Cin, H, W = x.shape
    N = B * H * W

    wcat_f, b_f, wci_f, wcf_f, wco_f = params_fwd
    wcat_b, b_b, wci_b, wcf_b, wco_b = params_bwd
    Chid = wci_f.shape[0]

    # Stack both directions on a leading axis (0 = forward, 1 = backward).
    w2 = jnp.stack([wcat_f, wcat_b]).astype(jnp.bfloat16)    # (2, 4Ch, 9*(Cin+Ch))
    b2 = jnp.stack([b_f, b_b])[..., None]                    # (2, 4Ch, 1) f32

    def tile_b(p):                 # (Chid, HW) -> (Chid, B*HW), n = b*HW + y*W + x
        return jnp.tile(p, (1, B))

    # i/f peepholes stacked into one (2*Chid, N) slab per direction.
    wcif2 = jnp.stack([
        jnp.concatenate([tile_b(wci_f), tile_b(wcf_f)], axis=0),
        jnp.concatenate([tile_b(wci_b), tile_b(wcf_b)], axis=0)])
    wco2 = jnp.stack([tile_b(wco_f), tile_b(wco_b)])

    masks = _make_tap_masks(B, H, W)                         # (9, N) f32

    # Lane-dense input layout: (T, Cin, B*H*W), flat index n = b*H*W + y*W + x.
    xT = jnp.transpose(x, (1, 2, 0, 3, 4)).reshape(T, Cin, N)

    hs = _blstm_pallas(xT, w2, b2, wcif2, wco2, masks, H, W)  # (2, T, Ch, N)
    # backward direction is in recurrence order -> flip back to original time
    hs = jnp.stack([hs[0], hs[1, ::-1]], axis=0)

    # (2, T, Chid, B*H*W) -> (B, T, 2*Chid, H, W); channel order = [fwd | bwd].
    out = hs.reshape(2, T, Chid, B, H, W)
    out = jnp.transpose(out, (3, 1, 0, 2, 4, 5)).reshape(B, T, 2 * Chid, H, W)
    if not return_sequence:
        out = out[:, -1]                                      # (B, Cout, H, W)
    return out


# ----------------------------------------------------------------------------
# Parameter construction (mirrors the torch __init__ shapes)
# ----------------------------------------------------------------------------
def make_cell_params(key, in_channels, hid_channels, kernel_size, frame_size):
    """Returns (torch-shaped params, kernel-shaped params)."""
    H, W = frame_size
    k1, k2, k3, k4, k5 = jax.random.split(key, 5)
    fan = (in_channels + hid_channels) * kernel_size * kernel_size
    w = jax.random.uniform(k1, (4 * hid_channels, in_channels + hid_channels,
                                kernel_size, kernel_size),
                           minval=-1.0 / np.sqrt(fan),
                           maxval=1.0 / np.sqrt(fan), dtype=jnp.float32)
    b = jax.random.uniform(k2, (4 * hid_channels,),
                           minval=-0.1, maxval=0.1, dtype=jnp.float32)
    lim = float(np.sqrt(6.0 / (H + W)))   # xavier_uniform-ish
    wci = jax.random.uniform(k3, (hid_channels, H, W), minval=-lim, maxval=lim,
                             dtype=jnp.float32)
    wcf = jax.random.uniform(k4, (hid_channels, H, W), minval=-lim, maxval=lim,
                             dtype=jnp.float32)
    wco = jax.random.uniform(k5, (hid_channels, H, W), minval=-lim, maxval=lim,
                             dtype=jnp.float32)

    torch_params = (w, b, wci, wcf, wco)

    # Kernel layout: output channels lead; columns = (tap, input-channel) with
    # tap order (ky, kx) row-major and input channels ordered [x ; h] -- this
    # matches the im2col row layout built inside the kernel.
    ccat = in_channels + hid_channels
    w_cat = jnp.transpose(w, (0, 2, 3, 1)).reshape(
        4 * hid_channels, kernel_size * kernel_size * ccat)
    kernel_params = (w_cat, b,
                     wci.reshape(hid_channels, H * W),
                     wcf.reshape(hid_channels, H * W),
                     wco.reshape(hid_channels, H * W))
    return torch_params, kernel_params


# ----------------------------------------------------------------------------
# Pure-JAX reference (mirrors the PyTorch module, NCHW) for verification
# ----------------------------------------------------------------------------
def _ref_cell_step(x_t, h, c, w, b, wci, wcf, wco):
    inp = jnp.concatenate([x_t, h], axis=1)
    conv = jax.lax.conv_general_dilated(
        inp, w, window_strides=(1, 1), padding="SAME",
        dimension_numbers=("NCHW", "OIHW", "NCHW")) + b[None, :, None, None]
    i, f, g, o = jnp.split(conv, 4, axis=1)
    ig = jax.nn.sigmoid(i + wci * c)
    fg = jax.nn.sigmoid(f + wcf * c)
    c_new = fg * c + ig * jnp.tanh(g)
    og = jax.nn.sigmoid(o + wco * c_new)
    return og * jnp.tanh(c_new), c_new


def _ref_convlstm_seq(x, params):
    w, b, wci, wcf, wco = params
    B, T, Cin, H, W = x.shape
    Chid = wci.shape[0]
    h0 = jnp.zeros((B, Chid, H, W), jnp.float32)
    c0 = jnp.zeros_like(h0)

    def step(carry, x_t):
        h, c = carry
        h, c = _ref_cell_step(x_t, h, c, w, b, wci, wcf, wco)
        return (h, c), h

    _, hs = jax.lax.scan(step, (h0, c0), jnp.transpose(x, (1, 0, 2, 3, 4)))
    return jnp.transpose(hs, (1, 0, 2, 3, 4))


def ref_conv_blstm(x, tp_fwd, tp_bwd, return_sequence=False):
    y_f = _ref_convlstm_seq(x, tp_fwd)
    y_b = _ref_convlstm_seq(x[:, ::-1], tp_bwd)[:, ::-1]
    out = jnp.concatenate([y_f, y_b], axis=2)
    if not return_sequence:
        out = out[:, -1]
    return out


# ----------------------------------------------------------------------------
if __name__ == "__main__":
    # ConvBLSTM(in_channels=4, out_channels=8, kernel_size=3, padding=1,
    #           activation='tanh', frame_size=(16, 16), return_sequence=False)
    B, T, Cin, H, W = 2, 4, 4, 16, 16
    out_channels = 8
    Chid = out_channels // 2
    K = 3

    key = jax.random.PRNGKey(0)
    kx, kf, kb = jax.random.split(key, 3)
    x = jax.random.normal(kx, (B, T, Cin, H, W), dtype=jnp.float32)

    tp_fwd, kp_fwd = make_cell_params(kf, Cin, Chid, K, (H, W))
    tp_bwd, kp_bwd = make_cell_params(kb, Cin, Chid, K, (H, W))

    run = jax.jit(functools.partial(conv_blstm_forward, return_sequence=False))
    out = jax.block_until_ready(run(x, kp_fwd, kp_bwd))

    # Verify against the pure-JAX (f32) reference; tolerance accounts for the
    # bf16 MXU operands used inside the kernel.
    ref = jax.block_until_ready(ref_conv_blstm(x, tp_fwd, tp_bwd,
                                               return_sequence=False))
    assert out.shape == (B, out_channels, H, W), out.shape
    np.testing.assert_allclose(np.asarray(out), np.asarray(ref),
                               rtol=5e-2, atol=5e-2)

    print("KERNEL_OK")
</pallas_src>

<mosaic_0001>
module attributes {stable_mosaic.version = 11 : i64} {
  func.func @_blstm_kernel(%arg0: i32, %arg1: memref<4x4x512xf32, #tpu.memory_space<vmem>>, %arg2: memref<1x16x72xbf16, #tpu.memory_space<vmem>>, %arg3: memref<1x16x1xf32, #tpu.memory_space<vmem>>, %arg4: memref<1x8x512xf32, #tpu.memory_space<vmem>>, %arg5: memref<1x4x512xf32, #tpu.memory_space<vmem>>, %arg6: memref<9x512xf32, #tpu.memory_space<vmem>>, %arg7: memref<1x4x4x512xf32, #tpu.memory_space<vmem>>, %arg8: memref<4x512xf32, #tpu.memory_space<vmem>>, %arg9: memref<4x512xf32, #tpu.memory_space<vmem>>, %arg10: memref<72x512xbf16, #tpu.memory_space<vmem>>) attributes {dimension_semantics = [#tpu.dimension_semantics<parallel>], iteration_bounds = array<i64: 2>, scalar_prefetch = 0 : i64, scratch_operands = 3 : i64, tpu.core_type = #tpu.core_type<tc>, window_params = [{pipeline_mode = #tpu.pipeline_mode<synchronous>, transform_indices = @transform_0, window_bounds = array<i64: 4, 4, 512>}, {transform_indices = @transform_1, window_bounds = array<i64: 1, 16, 72>}, {transform_indices = @transform_2, window_bounds = array<i64: 1, 16, 1>}, {transform_indices = @transform_3, window_bounds = array<i64: 1, 8, 512>}, {transform_indices = @transform_4, window_bounds = array<i64: 1, 4, 512>}, {pipeline_mode = #tpu.pipeline_mode<synchronous>, transform_indices = @transform_5, window_bounds = array<i64: 9, 512>}, {transform_indices = @transform_6, window_bounds = array<i64: 1, 4, 4, 512>}]} {
    %cst = arith.constant 0.000000e+00 : f32
    %0 = vector.broadcast %cst : f32 to vector<4x512xf32>
    %c0 = arith.constant 0 : index
    %c0_0 = arith.constant 0 : index
    %1 = vector.load %arg8[%c0, %c0_0] : memref<4x512xf32, #tpu.memory_space<vmem>>, vector<4x512xf32>
    tpu.vector_store %arg8[%c0, %c0_0], %0 {strides = array<i32>} : memref<4x512xf32, #tpu.memory_space<vmem>>, vector<4x512xf32>,
    %cst_1 = arith.constant 0.000000e+00 : f32
    %2 = vector.broadcast %cst_1 : f32 to vector<4x512xf32>
    %c0_2 = arith.constant 0 : index
    %c0_3 = arith.constant 0 : index
    %3 = vector.load %arg9[%c0_2, %c0_3] : memref<4x512xf32, #tpu.memory_space<vmem>>, vector<4x512xf32>
    tpu.vector_store %arg9[%c0_2, %c0_3], %2 {strides = array<i32>} : memref<4x512xf32, #tpu.memory_space<vmem>>, vector<4x512xf32>,
    %c0_4 = arith.constant 0 : index
    %c0_5 = arith.constant 0 : index
    %c0_6 = arith.constant 0 : index
    %4 = vector.load %arg2[%c0_4, %c0_5, %c0_6] : memref<1x16x72xbf16, #tpu.memory_space<vmem>>, vector<1x16x72xbf16>
    %5 = vector.shape_cast %4 : vector<1x16x72xbf16> to vector<16x72xbf16>
    %c0_7 = arith.constant 0 : index
    %c0_8 = arith.constant 0 : index
    %c0_9 = arith.constant 0 : index
    %6 = vector.load %arg3[%c0_7, %c0_8, %c0_9] : memref<1x16x1xf32, #tpu.memory_space<vmem>>, vector<1x16x1xf32>
    %7 = vector.shape_cast %6 : vector<1x16x1xf32> to vector<16x1xf32>
    %8 = vector.shape_cast %7 : vector<16x1xf32> to vector<16x1xf32>
    %9 = vector.broadcast %8 : vector<16x1xf32> to vector<16x512xf32>
    %c0_10 = arith.constant 0 : index
    %c0_11 = arith.constant 0 : index
    %c0_12 = arith.constant 0 : index
    %10 = vector.load %arg4[%c0_10, %c0_11, %c0_12] : memref<1x8x512xf32, #tpu.memory_space<vmem>>, vector<1x8x512xf32>
    %11 = vector.shape_cast %10 : vector<1x8x512xf32> to vector<8x512xf32>
    %c0_13 = arith.constant 0 : index
    %c0_14 = arith.constant 0 : index
    %c0_15 = arith.constant 0 : index
    %12 = vector.load %arg5[%c0_13, %c0_14, %c0_15] : memref<1x4x512xf32, #tpu.memory_space<vmem>>, vector<1x4x512xf32>
    %13 = vector.shape_cast %12 : vector<1x4x512xf32> to vector<4x512xf32>
    %c1_i32 = arith.constant 1 : i32
    %14 = arith.subi %c1_i32, %arg0 : i32
    %c0_i32 = arith.constant 0 : i32
    %15 = arith.muli %14, %c0_i32 : i32
    %c3_i32 = arith.constant 3 : i32
    %16 = arith.muli %arg0, %c3_i32 : i32
    %17 = arith.addi %15, %16 : i32
    %18 = arith.index_cast %17 : i32 to index
    %c0_16 = arith.constant 0 : index
    %c0_17 = arith.constant 0 : index
    %19 = vector.load %arg1[%18, %c0_16, %c0_17] : memref<4x4x512xf32, #tpu.memory_space<vmem>>, vector<1x4x512xf32>
    %20 = vector.shape_cast %19 : vector<1x4x512xf32> to vector<4x512xf32>
    %c0_18 = arith.constant 0 : index
    %c0_19 = arith.constant 0 : index
    %21 = vector.load %arg8[%c0_18, %c0_19] : memref<4x512xf32, #tpu.memory_space<vmem>>, vector<4x512xf32>
    %c0_20 = arith.constant 0 : index
    %c0_21 = arith.constant 0 : index
    %22 = vector.load %arg9[%c0_20, %c0_21] : memref<4x512xf32, #tpu.memory_space<vmem>>, vector<4x512xf32>
    %23 = tpu.concatenate %20, %21 in 0 : vector<4x512xf32>, vector<4x512xf32> -> vector<8x512xf32>
    %c17_i32 = arith.constant 17 : i32
    %24 = tpu.dynamic_rotate %23 by %c17_i32 dim 1 : vector<8x512xf32>, i32 -> vector<8x512xf32>
    %c0_22 = arith.constant 0 : index
    %c0_23 = arith.constant 0 : index
    %25 = vector.load %arg6[%c0_22, %c0_23] : memref<9x512xf32, #tpu.memory_space<vmem>>, vector<1x512xf32>
    %26 = vector.broadcast %25 : vector<1x512xf32> to vector<8x512xf32>
    %27 = arith.mulf %24, %26 : vector<8x512xf32>
    %28 = arith.truncf %27 : vector<8x512xf32> to vector<8x512xbf16>
    %c0_24 = arith.constant 0 : index
    %c0_25 = arith.constant 0 : index
    %29 = vector.load %arg10[%c0_24, %c0_25] : memref<72x512xbf16, #tpu.memory_space<vmem>>, vector<8x512xbf16>
    tpu.vector_store %arg10[%c0_24, %c0_25], %28 {strides = array<i32>} : memref<72x512xbf16, #tpu.memory_space<vmem>>, vector<8x512xbf16>,
    %c16_i32 = arith.constant 16 : i32
    %30 = tpu.dynamic_rotate %23 by %c16_i32 dim 1 : vector<8x512xf32>, i32 -> vector<8x512xf32>
    %c1 = arith.constant 1 : index
    %c0_26 = arith.constant 0 : index
    %31 = vector.load %arg6[%c1, %c0_26] : memref<9x512xf32, #tpu.memory_space<vmem>>, vector<1x512xf32>
    %32 = vector.broadcast %31 : vector<1x512xf32> to vector<8x512xf32>
    %33 = arith.mulf %30, %32 : vector<8x512xf32>
    %34 = arith.truncf %33 : vector<8x512xf32> to vector<8x512xbf16>
    %c8 = arith.constant 8 : index
    %c0_27 = arith.constant 0 : index
    %35 = vector.load %arg10[%c8, %c0_27] : memref<72x512xbf16, #tpu.memory_space<vmem>>, vector<8x512xbf16>
    tpu.vector_store %arg10[%c8, %c0_27], %34 {strides = array<i32>} : memref<72x512xbf16, #tpu.memory_space<vmem>>, vector<8x512xbf16>,
    %c15_i32 = arith.constant 15 : i32
    %36 = tpu.dynamic_rotate %23 by %c15_i32 dim 1 : vector<8x512xf32>, i32 -> vector<8x512xf32>
    %c2 = arith.constant 2 : index
    %c0_28 = arith.constant 0 : index
    %37 = vector.load %arg6[%c2, %c0_28] : memref<9x512xf32, #tpu.memory_space<vmem>>, vector<1x512xf32>
    %38 = vector.broadcast %37 : vector<1x512xf32> to vector<8x512xf32>
    %39 = arith.mulf %36, %38 : vector<8x512xf32>
    %40 = arith.truncf %39 : vector<8x512xf32> to vector<8x512xbf16>
    %c16 = arith.constant 16 : index
    %c0_29 = arith.constant 0 : index
    %41 = vector.load %arg10[%c16, %c0_29] : memref<72x512xbf16, #tpu.memory_space<vmem>>, vector<8x512xbf16>
    tpu.vector_store %arg10[%c16, %c0_29], %40 {strides = array<i32>} : memref<72x512xbf16, #tpu.memory_space<vmem>>, vector<8x512xbf16>,
    %c1_i32_30 = arith.constant 1 : i32
    %42 = tpu.dynamic_rotate %23 by %c1_i32_30 dim 1 : vector<8x512xf32>, i32 -> vector<8x512xf32>
    %c3 = arith.constant 3 : index
    %c0_31 = arith.constant 0 : index
    %43 = vector.load %arg6[%c3, %c0_31] : memref<9x512xf32, #tpu.memory_space<vmem>>, vector<1x512xf32>
    %44 = vector.broadcast %43 : vector<1x512xf32> to vector<8x512xf32>
    %45 = arith.mulf %42, %44 : vector<8x512xf32>
    %46 = arith.truncf %45 : vector<8x512xf32> to vector<8x512xbf16>
    %c24 = arith.constant 24 : index
    %c0_32 = arith.constant 0 : index
    %47 = vector.load %arg10[%c24, %c0_32] : memref<72x512xbf16, #tpu.memory_space<vmem>>, vector<8x512xbf16>
    tpu.vector_store %arg10[%c24, %c0_32], %46 {strides = array<i32>} : memref<72x512xbf16, #tpu.memory_space<vmem>>, vector<8x512xbf16>,
    %48 = arith.truncf %23 : vector<8x512xf32> to vector<8x512xbf16>
    %c32 = arith.constant 32 : index
    %c0_33 = arith.constant 0 : index
    %49 = vector.load %arg10[%c32, %c0_33] : memref<72x512xbf16, #tpu.memory_space<vmem>>, vector<8x512xbf16>
    tpu.vector_store %arg10[%c32, %c0_33], %48 {strides = array<i32>} : memref<72x512xbf16, #tpu.memory_space<vmem>>, vector<8x512xbf16>,
    %c511_i32 = arith.constant 511 : i32
    %50 = tpu.dynamic_rotate %23 by %c511_i32 dim 1 : vector<8x512xf32>, i32 -> vector<8x512xf32>
    %c5 = arith.constant 5 : index
    %c0_34 = arith.constant 0 : index
    %51 = vector.load %arg6[%c5, %c0_34] : memref<9x512xf32, #tpu.memory_space<vmem>>, vector<1x512xf32>
    %52 = vector.broadcast %51 : vector<1x512xf32> to vector<8x512xf32>
    %53 = arith.mulf %50, %52 : vector<8x512xf32>
    %54 = arith.truncf %53 : vector<8x512xf32> to vector<8x512xbf16>
    %c40 = arith.constant 40 : index
    %c0_35 = arith.constant 0 : index
    %55 = vector.load %arg10[%c40, %c0_35] : memref<72x512xbf16, #tpu.memory_space<vmem>>, vector<8x512xbf16>
    tpu.vector_store %arg10[%c40, %c0_35], %54 {strides = array<i32>} : memref<72x512xbf16, #tpu.memory_space<vmem>>, vector<8x512xbf16>,
    %c497_i32 = arith.constant 497 : i32
    %56 = tpu.dynamic_rotate %23 by %c497_i32 dim 1 : vector<8x512xf32>, i32 -> vector<8x512xf32>
    %c6 = arith.constant 6 : index
    %c0_36 = arith.constant 0 : index
    %57 = vector.load %arg6[%c6, %c0_36] : memref<9x512xf32, #tpu.memory_space<vmem>>, vector<1x512xf32>
    %58 = vector.broadcast %57 : vector<1x512xf32> to vector<8x512xf32>
    %59 = arith.mulf %56, %58 : vector<8x512xf32>
    %60 = arith.truncf %59 : vector<8x512xf32> to vector<8x512xbf16>
    %c48 = arith.constant 48 : index
    %c0_37 = arith.constant 0 : index
    %61 = vector.load %arg10[%c48, %c0_37] : memref<72x512xbf16, #tpu.memory_space<vmem>>, vector<8x512xbf16>
    tpu.vector_store %arg10[%c48, %c0_37], %60 {strides = array<i32>} : memref<72x512xbf16, #tpu.memory_space<vmem>>, vector<8x512xbf16>,
    %c496_i32 = arith.constant 496 : i32
    %62 = tpu.dynamic_rotate %23 by %c496_i32 dim 1 : vector<8x512xf32>, i32 -> vector<8x512xf32>
    %c7 = arith.constant 7 : index
    %c0_38 = arith.constant 0 : index
    %63 = vector.load %arg6[%c7, %c0_38] : memref<9x512xf32, #tpu.memory_space<vmem>>, vector<1x512xf32>
    %64 = vector.broadcast %63 : vector<1x512xf32> to vector<8x512xf32>
    %65 = arith.mulf %62, %64 : vector<8x512xf32>
    %66 = arith.truncf %65 : vector<8x512xf32> to vector<8x512xbf16>
    %c56 = arith.constant 56 : index
    %c0_39 = arith.constant 0 : index
    %67 = vector.load %arg10[%c56, %c0_39] : memref<72x512xbf16, #tpu.memory_space<vmem>>, vector<8x512xbf16>
    tpu.vector_store %arg10[%c56, %c0_39], %66 {strides = array<i32>} : memref<72x512xbf16, #tpu.memory_space<vmem>>, vector<8x512xbf16>,
    %c495_i32 = arith.constant 495 : i32
    %68 = tpu.dynamic_rotate %23 by %c495_i32 dim 1 : vector<8x512xf32>, i32 -> vector<8x512xf32>
    %c8_40 = arith.constant 8 : index
    %c0_41 = arith.constant 0 : index
    %69 = vector.load %arg6[%c8_40, %c0_41] : memref<9x512xf32, #tpu.memory_space<vmem>>, vector<1x512xf32>
    %70 = vector.broadcast %69 : vector<1x512xf32> to vector<8x512xf32>
    %71 = arith.mulf %68, %70 : vector<8x512xf32>
    %72 = arith.truncf %71 : vector<8x512xf32> to vector<8x512xbf16>
    %c64 = arith.constant 64 : index
    %c0_42 = arith.constant 0 : index
    %73 = vector.load %arg10[%c64, %c0_42] : memref<72x512xbf16, #tpu.memory_space<vmem>>, vector<8x512xbf16>
    tpu.vector_store %arg10[%c64, %c0_42], %72 {strides = array<i32>} : memref<72x512xbf16, #tpu.memory_space<vmem>>, vector<8x512xbf16>,
    %c0_43 = arith.constant 0 : index
    %c0_44 = arith.constant 0 : index
    %74 = vector.load %arg10[%c0_43, %c0_44] : memref<72x512xbf16, #tpu.memory_space<vmem>>, vector<72x512xbf16>
    %cst_45 = arith.constant dense<0.000000e+00> : vector<16x512xf32>
    %75 = tpu.matmul %5, %74, %cst_45 {dimension_numbers = #tpu.dot_dimension_numbers<[1], [0], [0], [1], [0, 0, 1, 1], [], []>} : vector<16x72xbf16>, vector<72x512xbf16>, vector<16x512xf32> -> vector<16x512xf32>
    %76 = arith.addf %75, %9 : vector<16x512xf32>
    %77 = vector.extract_strided_slice %76 {offsets = [0, 0], sizes = [8, 512], strides = [1, 1]} : vector<16x512xf32> to vector<8x512xf32>
    %78 = tpu.concatenate %22, %22 in 0 : vector<4x512xf32>, vector<4x512xf32> -> vector<8x512xf32>
    %79 = arith.mulf %11, %78 : vector<8x512xf32>
    %80 = arith.addf %77, %79 : vector<8x512xf32>
    %81 = arith.negf %80 : vector<8x512xf32>
    %82 = math.exp %81 : vector<8x512xf32>
    %cst_46 = arith.constant 1.000000e+00 : f32
    %83 = vector.broadcast %cst_46 : f32 to vector<8x512xf32>
    %84 = arith.addf %83, %82 : vector<8x512xf32>
    %85 = arith.divf %83, %84 : vector<8x512xf32>
    %86 = vector.extract_strided_slice %85 {offsets = [0, 0], sizes = [4, 512], strides = [1, 1]} : vector<8x512xf32> to vector<4x512xf32>
    %87 = vector.extract_strided_slice %85 {offsets = [4, 0], sizes = [4, 512], strides = [1, 1]} : vector<8x512xf32> to vector<4x512xf32>
    %88 = arith.mulf %87, %22 : vector<4x512xf32>
    %89 = vector.extract_strided_slice %76 {offsets = [8, 0], sizes = [4, 512], strides = [1, 1]} : vector<16x512xf32> to vector<4x512xf32>
    %90 = math.tanh %89 : vector<4x512xf32>
    %91 = arith.mulf %86, %90 : vector<4x512xf32>
    %92 = arith.addf %88, %91 : vector<4x512xf32>
    %93 = vector.extract_strided_slice %76 {offsets = [12, 0], sizes = [4, 512], strides = [1, 1]} : vector<16x512xf32> to vector<4x512xf32>
    %94 = arith.mulf %13, %92 : vector<4x512xf32>
    %95 = arith.addf %93, %94 : vector<4x512xf32>
    %96 = arith.negf %95 : vector<4x512xf32>
    %97 = math.exp %96 : vector<4x512xf32>
    %cst_47 = arith.constant 1.000000e+00 : f32
    %98 = vector.broadcast %cst_47 : f32 to vector<4x512xf32>
    %99 = arith.addf %98, %97 : vector<4x512xf32>
    %100 = arith.divf %98, %99 : vector<4x512xf32>
    %101 = math.tanh %92 : vector<4x512xf32>
    %102 = arith.mulf %100, %101 : vector<4x512xf32>
    %c0_48 = arith.constant 0 : index
    %c0_49 = arith.constant 0 : index
    %103 = vector.load %arg8[%c0_48, %c0_49] : memref<4x512xf32, #tpu.memory_space<vmem>>, vector<4x512xf32>
    tpu.vector_store %arg8[%c0_48, %c0_49], %102 {strides = array<i32>} : memref<4x512xf32, #tpu.memory_space<vmem>>, vector<4x512xf32>,
    %c0_50 = arith.constant 0 : index
    %c0_51 = arith.constant 0 : index
    %104 = vector.load %arg9[%c0_50, %c0_51] : memref<4x512xf32, #tpu.memory_space<vmem>>, vector<4x512xf32>
    tpu.vector_store %arg9[%c0_50, %c0_51], %92 {strides = array<i32>} : memref<4x512xf32, #tpu.memory_space<vmem>>, vector<4x512xf32>,
    %c0_52 = arith.constant 0 : index
    %c0_53 = arith.constant 0 : index
    %c0_54 = arith.constant 0 : index
    %c0_55 = arith.constant 0 : index
    %105 = vector.load %arg7[%c0_52, %c0_53, %c0_54, %c0_55] : memref<1x4x4x512xf32, #tpu.memory_space<vmem>>, vector<1x1x4x512xf32>
    %106 = vector.shape_cast %105 : vector<1x1x4x512xf32> to vector<4x512xf32>
    %107 = vector.shape_cast %102 : vector<4x512xf32> to vector<1x1x4x512xf32>
    tpu.vector_store %arg7[%c0_52, %c0_53, %c0_54, %c0_55], %107 {strides = array<i32>} : memref<1x4x4x512xf32, #tpu.memory_space<vmem>>, vector<1x1x4x512xf32>,
    %c1_i32_56 = arith.constant 1 : i32
    %108 = arith.subi %c1_i32_56, %arg0 : i32
    %c1_i32_57 = arith.constant 1 : i32
    %109 = arith.muli %108, %c1_i32_57 : i32
    %c2_i32 = arith.constant 2 : i32
    %110 = arith.muli %arg0, %c2_i32 : i32
    %111 = arith.addi %109, %110 : i32
    %112 = arith.index_cast %111 : i32 to index
    %c0_58 = arith.constant 0 : index
    %c0_59 = arith.constant 0 : index
    %113 = vector.load %arg1[%112, %c0_58, %c0_59] : memref<4x4x512xf32, #tpu.memory_space<vmem>>, vector<1x4x512xf32>
    %114 = vector.shape_cast %113 : vector<1x4x512xf32> to vector<4x512xf32>
    %c0_60 = arith.constant 0 : index
    %c0_61 = arith.constant 0 : index
    %115 = vector.load %arg8[%c0_60, %c0_61] : memref<4x512xf32, #tpu.memory_space<vmem>>, vector<4x512xf32>
    %c0_62 = arith.constant 0 : index
    %c0_63 = arith.constant 0 : index
    %116 = vector.load %arg9[%c0_62, %c0_63] : memref<4x512xf32, #tpu.memory_space<vmem>>, vector<4x512xf32>
    %117 = tpu.concatenate %114, %115 in 0 : vector<4x512xf32>, vector<4x512xf32> -> vector<8x512xf32>
    %c17_i32_64 = arith.constant 17 : i32
    %118 = tpu.dynamic_rotate %117 by %c17_i32_64 dim 1 : vector<8x512xf32>, i32 -> vector<8x512xf32>
    %c0_65 = arith.constant 0 : index
    %c0_66 = arith.constant 0 : index
    %119 = vector.load %arg6[%c0_65, %c0_66] : memref<9x512xf32, #tpu.memory_space<vmem>>, vector<1x512xf32>
    %120 = vector.broadcast %119 : vector<1x512xf32> to vector<8x512xf32>
    %121 = arith.mulf %118, %120 : vector<8x512xf32>
    %122 = arith.truncf %121 : vector<8x512xf32> to vector<8x512xbf16>
    %c0_67 = arith.constant 0 : index
    %c0_68 = arith.constant 0 : index
    %123 = vector.load %arg10[%c0_67, %c0_68] : memref<72x512xbf16, #tpu.memory_space<vmem>>, vector<8x512xbf16>
    tpu.vector_store %arg10[%c0_67, %c0_68], %122 {strides = array<i32>} : memref<72x512xbf16, #tpu.memory_space<vmem>>, vector<8x512xbf16>,
    %c16_i32_69 = arith.constant 16 : i32
    %124 = tpu.dynamic_rotate %117 by %c16_i32_69 dim 1 : vector<8x512xf32>, i32 -> vector<8x512xf32>
    %c1_70 = arith.constant 1 : index
    %c0_71 = arith.constant 0 : index
    %125 = vector.load %arg6[%c1_70, %c0_71] : memref<9x512xf32, #tpu.memory_space<vmem>>, vector<1x512xf32>
    %126 = vector.broadcast %125 : vector<1x512xf32> to vector<8x512xf32>
    %127 = arith.mulf %124, %126 : vector<8x512xf32>
    %128 = arith.truncf %127 : vector<8x512xf32> to vector<8x512xbf16>
    %c8_72 = arith.constant 8 : index
    %c0_73 = arith.constant 0 : index
    %129 = vector.load %arg10[%c8_72, %c0_73] : memref<72x512xbf16, #tpu.memory_space<vmem>>, vector<8x512xbf16>
    tpu.vector_store %arg10[%c8_72, %c0_73], %128 {strides = array<i32>} : memref<72x512xbf16, #tpu.memory_space<vmem>>, vector<8x512xbf16>,
    %c15_i32_74 = arith.constant 15 : i32
    %130 = tpu.dynamic_rotate %117 by %c15_i32_74 dim 1 : vector<8x512xf32>, i32 -> vector<8x512xf32>
    %c2_75 = arith.constant 2 : index
    %c0_76 = arith.constant 0 : index
    %131 = vector.load %arg6[%c2_75, %c0_76] : memref<9x512xf32, #tpu.memory_space<vmem>>, vector<1x512xf32>
    %132 = vector.broadcast %131 : vector<1x512xf32> to vector<8x512xf32>
    %133 = arith.mulf %130, %132 : vector<8x512xf32>
    %134 = arith.truncf %133 : vector<8x512xf32> to vector<8x512xbf16>
    %c16_77 = arith.constant 16 : index
    %c0_78 = arith.constant 0 : index
    %135 = vector.load %arg10[%c16_77, %c0_78] : memref<72x512xbf16, #tpu.memory_space<vmem>>, vector<8x512xbf16>
    tpu.vector_store %arg10[%c16_77, %c0_78], %134 {strides = array<i32>} : memref<72x512xbf16, #tpu.memory_space<vmem>>, vector<8x512xbf16>,
    %c1_i32_79 = arith.constant 1 : i32
    %136 = tpu.dynamic_rotate %117 by %c1_i32_79 dim 1 : vector<8x512xf32>, i32 -> vector<8x512xf32>
    %c3_80 = arith.constant 3 : index
    %c0_81 = arith.constant 0 : index
    %137 = vector.load %arg6[%c3_80, %c0_81] : memref<9x512xf32, #tpu.memory_space<vmem>>, vector<1x512xf32>
    %138 = vector.broadcast %137 : vector<1x512xf32> to vector<8x512xf32>
    %139 = arith.mulf %136, %138 : vector<8x512xf32>
    %140 = arith.truncf %139 : vector<8x512xf32> to vector<8x512xbf16>
    %c24_82 = arith.constant 24 : index
    %c0_83 = arith.constant 0 : index
    %141 = vector.load %arg10[%c24_82, %c0_83] : memref<72x512xbf16, #tpu.memory_space<vmem>>, vector<8x512xbf16>
    tpu.vector_store %arg10[%c24_82, %c0_83], %140 {strides = array<i32>} : memref<72x512xbf16, #tpu.memory_space<vmem>>, vector<8x512xbf16>,
    %142 = arith.truncf %117 : vector<8x512xf32> to vector<8x512xbf16>
    %c32_84 = arith.constant 32 : index
    %c0_85 = arith.constant 0 : index
    %143 = vector.load %arg10[%c32_84, %c0_85] : memref<72x512xbf16, #tpu.memory_space<vmem>>, vector<8x512xbf16>
    tpu.vector_store %arg10[%c32_84, %c0_85], %142 {strides = array<i32>} : memref<72x512xbf16, #tpu.memory_space<vmem>>, vector<8x512xbf16>,
    %c511_i32_86 = arith.constant 511 : i32
    %144 = tpu.dynamic_rotate %117 by %c511_i32_86 dim 1 : vector<8x512xf32>, i32 -> vector<8x512xf32>
    %c5_87 = arith.constant 5 : index
    %c0_88 = arith.constant 0 : index
    %145 = vector.load %arg6[%c5_87, %c0_88] : memref<9x512xf32, #tpu.memory_space<vmem>>, vector<1x512xf32>
    %146 = vector.broadcast %145 : vector<1x512xf32> to vector<8x512xf32>
    %147 = arith.mulf %144, %146 : vector<8x512xf32>
    %148 = arith.truncf %147 : vector<8x512xf32> to vector<8x512xbf16>
    %c40_89 = arith.constant 40 : index
    %c0_90 = arith.constant 0 : index
    %149 = vector.load %arg10[%c40_89, %c0_90] : memref<72x512xbf16, #tpu.memory_space<vmem>>, vector<8x512xbf16>
    tpu.vector_store %arg10[%c40_89, %c0_90], %148 {strides = array<i32>} : memref<72x512xbf16, #tpu.memory_space<vmem>>, vector<8x512xbf16>,
    %c497_i32_91 = arith.constant 497 : i32
    %150 = tpu.dynamic_rotate %117 by %c497_i32_91 dim 1 : vector<8x512xf32>, i32 -> vector<8x512xf32>
    %c6_92 = arith.constant 6 : index
    %c0_93 = arith.constant 0 : index
    %151 = vector.load %arg6[%c6_92, %c0_93] : memref<9x512xf32, #tpu.memory_space<vmem>>, vector<1x512xf32>
    %152 = vector.broadcast %151 : vector<1x512xf32> to vector<8x512xf32>
    %153 = arith.mulf %150, %152 : vector<8x512xf32>
    %154 = arith.truncf %153 : vector<8x512xf32> to vector<8x512xbf16>
    %c48_94 = arith.constant 48 : index
    %c0_95 = arith.constant 0 : index
    %155 = vector.load %arg10[%c48_94, %c0_95] : memref<72x512xbf16, #tpu.memory_space<vmem>>, vector<8x512xbf16>
    tpu.vector_store %arg10[%c48_94, %c0_95], %154 {strides = array<i32>} : memref<72x512xbf16, #tpu.memory_space<vmem>>, vector<8x512xbf16>,
    %c496_i32_96 = arith.constant 496 : i32
    %156 = tpu.dynamic_rotate %117 by %c496_i32_96 dim 1 : vector<8x512xf32>, i32 -> vector<8x512xf32>
    %c7_97 = arith.constant 7 : index
    %c0_98 = arith.constant 0 : index
    %157 = vector.load %arg6[%c7_97, %c0_98] : memref<9x512xf32, #tpu.memory_space<vmem>>, vector<1x512xf32>
    %158 = vector.broadcast %157 : vector<1x512xf32> to vector<8x512xf32>
    %159 = arith.mulf %156, %158 : vector<8x512xf32>
    %160 = arith.truncf %159 : vector<8x512xf32> to vector<8x512xbf16>
    %c56_99 = arith.constant 56 : index
    %c0_100 = arith.constant 0 : index
    %161 = vector.load %arg10[%c56_99, %c0_100] : memref<72x512xbf16, #tpu.memory_space<vmem>>, vector<8x512xbf16>
    tpu.vector_store %arg10[%c56_99, %c0_100], %160 {strides = array<i32>} : memref<72x512xbf16, #tpu.memory_space<vmem>>, vector<8x512xbf16>,
    %c495_i32_101 = arith.constant 495 : i32
    %162 = tpu.dynamic_rotate %117 by %c495_i32_101 dim 1 : vector<8x512xf32>, i32 -> vector<8x512xf32>
    %c8_102 = arith.constant 8 : index
    %c0_103 = arith.constant 0 : index
    %163 = vector.load %arg6[%c8_102, %c0_103] : memref<9x512xf32, #tpu.memory_space<vmem>>, vector<1x512xf32>
    %164 = vector.broadcast %163 : vector<1x512xf32> to vector<8x512xf32>
    %165 = arith.mulf %162, %164 : vector<8x512xf32>
    %166 = arith.truncf %165 : vector<8x512xf32> to vector<8x512xbf16>
    %c64_104 = arith.constant 64 : index
    %c0_105 = arith.constant 0 : index
    %167 = vector.load %arg10[%c64_104, %c0_105] : memref<72x512xbf16, #tpu.memory_space<vmem>>, vector<8x512xbf16>
    tpu.vector_store %arg10[%c64_104, %c0_105], %166 {strides = array<i32>} : memref<72x512xbf16, #tpu.memory_space<vmem>>, vector<8x512xbf16>,
    %c0_106 = arith.constant 0 : index
    %c0_107 = arith.constant 0 : index
    %168 = vector.load %arg10[%c0_106, %c0_107] : memref<72x512xbf16, #tpu.memory_space<vmem>>, vector<72x512xbf16>
    %cst_108 = arith.constant dense<0.000000e+00> : vector<16x512xf32>
    %169 = tpu.matmul %5, %168, %cst_108 {dimension_numbers = #tpu.dot_dimension_numbers<[1], [0], [0], [1], [0, 0, 1, 1], [], []>} : vector<16x72xbf16>, vector<72x512xbf16>, vector<16x512xf32> -> vector<16x512xf32>
    %170 = arith.addf %169, %9 : vector<16x512xf32>
    %171 = vector.extract_strided_slice %170 {offsets = [0, 0], sizes = [8, 512], strides = [1, 1]} : vector<16x512xf32> to vector<8x512xf32>
    %172 = tpu.concatenate %116, %116 in 0 : vector<4x512xf32>, vector<4x512xf32> -> vector<8x512xf32>
    %173 = arith.mulf %11, %172 : vector<8x512xf32>
    %174 = arith.addf %171, %173 : vector<8x512xf32>
    %175 = arith.negf %174 : vector<8x512xf32>
    %176 = math.exp %175 : vector<8x512xf32>
    %cst_109 = arith.constant 1.000000e+00 : f32
    %177 = vector.broadcast %cst_109 : f32 to vector<8x512xf32>
    %178 = arith.addf %177, %176 : vector<8x512xf32>
    %179 = arith.divf %177, %178 : vector<8x512xf32>
    %180 = vector.extract_strided_slice %179 {offsets = [0, 0], sizes = [4, 512], strides = [1, 1]} : vector<8x512xf32> to vector<4x512xf32>
    %181 = vector.extract_strided_slice %179 {offsets = [4, 0], sizes = [4, 512], strides = [1, 1]} : vector<8x512xf32> to vector<4x512xf32>
    %182 = arith.mulf %181, %116 : vector<4x512xf32>
    %183 = vector.extract_strided_slice %170 {offsets = [8, 0], sizes = [4, 512], strides = [1, 1]} : vector<16x512xf32> to vector<4x512xf32>
    %184 = math.tanh %183 : vector<4x512xf32>
    %185 = arith.mulf %180, %184 : vector<4x512xf32>
    %186 = arith.addf %182, %185 : vector<4x512xf32>
    %187 = vector.extract_strided_slice %170 {offsets = [12, 0], sizes = [4, 512], strides = [1, 1]} : vector<16x512xf32> to vector<4x512xf32>
    %188 = arith.mulf %13, %186 : vector<4x512xf32>
    %189 = arith.addf %187, %188 : vector<4x512xf32>
    %190 = arith.negf %189 : vector<4x512xf32>
    %191 = math.exp %190 : vector<4x512xf32>
    %cst_110 = arith.constant 1.000000e+00 : f32
    %192 = vector.broadcast %cst_110 : f32 to vector<4x512xf32>
    %193 = arith.addf %192, %191 : vector<4x512xf32>
    %194 = arith.divf %192, %193 : vector<4x512xf32>
    %195 = math.tanh %186 : vector<4x512xf32>
    %196 = arith.mulf %194, %195 : vector<4x512xf32>
    %c0_111 = arith.constant 0 : index
    %c0_112 = arith.constant 0 : index
    %197 = vector.load %arg8[%c0_111, %c0_112] : memref<4x512xf32, #tpu.memory_space<vmem>>, vector<4x512xf32>
    tpu.vector_store %arg8[%c0_111, %c0_112], %196 {strides = array<i32>} : memref<4x512xf32, #tpu.memory_space<vmem>>, vector<4x512xf32>,
    %c0_113 = arith.constant 0 : index
    %c0_114 = arith.constant 0 : index
    %198 = vector.load %arg9[%c0_113, %c0_114] : memref<4x512xf32, #tpu.memory_space<vmem>>, vector<4x512xf32>
    tpu.vector_store %arg9[%c0_113, %c0_114], %186 {strides = array<i32>} : memref<4x512xf32, #tpu.memory_space<vmem>>, vector<4x512xf32>,
    %c0_115 = arith.constant 0 : index
    %c1_116 = arith.constant 1 : index
    %c0_117 = arith.constant 0 : index
    %c0_118 = arith.constant 0 : index
    %199 = vector.load %arg7[%c0_115, %c1_116, %c0_117, %c0_118] : memref<1x4x4x512xf32, #tpu.memory_space<vmem>>, vector<1x1x4x512xf32>
    %200 = vector.shape_cast %199 : vector<1x1x4x512xf32> to vector<4x512xf32>
    %201 = vector.shape_cast %196 : vector<4x512xf32> to vector<1x1x4x512xf32>
    tpu.vector_store %arg7[%c0_115, %c1_116, %c0_117, %c0_118], %201 {strides = array<i32>} : memref<1x4x4x512xf32, #tpu.memory_space<vmem>>, vector<1x1x4x512xf32>,
    %c1_i32_119 = arith.constant 1 : i32
    %202 = arith.subi %c1_i32_119, %arg0 : i32
    %c2_i32_120 = arith.constant 2 : i32
    %203 = arith.muli %202, %c2_i32_120 : i32
    %c1_i32_121 = arith.constant 1 : i32
    %204 = arith.muli %arg0, %c1_i32_121 : i32
    %205 = arith.addi %203, %204 : i32
    %206 = arith.index_cast %205 : i32 to index
    %c0_122 = arith.constant 0 : index
    %c0_123 = arith.constant 0 : index
    %207 = vector.load %arg1[%206, %c0_122, %c0_123] : memref<4x4x512xf32, #tpu.memory_space<vmem>>, vector<1x4x512xf32>
    %208 = vector.shape_cast %207 : vector<1x4x512xf32> to vector<4x512xf32>
    %c0_124 = arith.constant 0 : index
    %c0_125 = arith.constant 0 : index
    %209 = vector.load %arg8[%c0_124, %c0_125] : memref<4x512xf32, #tpu.memory_space<vmem>>, vector<4x512xf32>
    %c0_126 = arith.constant 0 : index
    %c0_127 = arith.constant 0 : index
    %210 = vector.load %arg9[%c0_126, %c0_127] : memref<4x512xf32, #tpu.memory_space<vmem>>, vector<4x512xf32>
    %211 = tpu.concatenate %208, %209 in 0 : vector<4x512xf32>, vector<4x512xf32> -> vector<8x512xf32>
    %c17_i32_128 = arith.constant 17 : i32
    %212 = tpu.dynamic_rotate %211 by %c17_i32_128 dim 1 : vector<8x512xf32>, i32 -> vector<8x512xf32>
    %c0_129 = arith.constant 0 : index
    %c0_130 = arith.constant 0 : index
    %213 = vector.load %arg6[%c0_129, %c0_130] : memref<9x512xf32, #tpu.memory_space<vmem>>, vector<1x512xf32>
    %214 = vector.broadcast %213 : vector<1x512xf32> to vector<8x512xf32>
    %215 = arith.mulf %212, %214 : vector<8x512xf32>
    %216 = arith.truncf %215 : vector<8x512xf32> to vector<8x512xbf16>
    %c0_131 = arith.constant 0 : index
    %c0_132 = arith.constant 0 : index
    %217 = vector.load %arg10[%c0_131, %c0_132] : memref<72x512xbf16, #tpu.memory_space<vmem>>, vector<8x512xbf16>
    tpu.vector_store %arg10[%c0_131, %c0_132], %216 {strides = array<i32>} : memref<72x512xbf16, #tpu.memory_space<vmem>>, vector<8x512xbf16>,
    %c16_i32_133 = arith.constant 16 : i32
    %218 = tpu.dynamic_rotate %211 by %c16_i32_133 dim 1 : vector<8x512xf32>, i32 -> vector<8x512xf32>
    %c1_134 = arith.constant 1 : index
    %c0_135 = arith.constant 0 : index
    %219 = vector.load %arg6[%c1_134, %c0_135] : memref<9x512xf32, #tpu.memory_space<vmem>>, vector<1x512xf32>
    %220 = vector.broadcast %219 : vector<1x512xf32> to vector<8x512xf32>
    %221 = arith.mulf %218, %220 : vector<8x512xf32>
    %222 = arith.truncf %221 : vector<8x512xf32> to vector<8x512xbf16>
    %c8_136 = arith.constant 8 : index
    %c0_137 = arith.constant 0 : index
    %223 = vector.load %arg10[%c8_136, %c0_137] : memref<72x512xbf16, #tpu.memory_space<vmem>>, vector<8x512xbf16>
    tpu.vector_store %arg10[%c8_136, %c0_137], %222 {strides = array<i32>} : memref<72x512xbf16, #tpu.memory_space<vmem>>, vector<8x512xbf16>,
    %c15_i32_138 = arith.constant 15 : i32
    %224 = tpu.dynamic_rotate %211 by %c15_i32_138 dim 1 : vector<8x512xf32>, i32 -> vector<8x512xf32>
    %c2_139 = arith.constant 2 : index
    %c0_140 = arith.constant 0 : index
    %225 = vector.load %arg6[%c2_139, %c0_140] : memref<9x512xf32, #tpu.memory_space<vmem>>, vector<1x512xf32>
    %226 = vector.broadcast %225 : vector<1x512xf32> to vector<8x512xf32>
    %227 = arith.mulf %224, %226 : vector<8x512xf32>
    %228 = arith.truncf %227 : vector<8x512xf32> to vector<8x512xbf16>
    %c16_141 = arith.constant 16 : index
    %c0_142 = arith.constant 0 : index
    %229 = vector.load %arg10[%c16_141, %c0_142] : memref<72x512xbf16, #tpu.memory_space<vmem>>, vector<8x512xbf16>
    tpu.vector_store %arg10[%c16_141, %c0_142], %228 {strides = array<i32>} : memref<72x512xbf16, #tpu.memory_space<vmem>>, vector<8x512xbf16>,
    %c1_i32_143 = arith.constant 1 : i32
    %230 = tpu.dynamic_rotate %211 by %c1_i32_143 dim 1 : vector<8x512xf32>, i32 -> vector<8x512xf32>
    %c3_144 = arith.constant 3 : index
    %c0_145 = arith.constant 0 : index
    %231 = vector.load %arg6[%c3_144, %c0_145] : memref<9x512xf32, #tpu.memory_space<vmem>>, vector<1x512xf32>
    %232 = vector.broadcast %231 : vector<1x512xf32> to vector<8x512xf32>
    %233 = arith.mulf %230, %232 : vector<8x512xf32>
    %234 = arith.truncf %233 : vector<8x512xf32> to vector<8x512xbf16>
    %c24_146 = arith.constant 24 : index
    %c0_147 = arith.constant 0 : index
    %235 = vector.load %arg10[%c24_146, %c0_147] : memref<72x512xbf16, #tpu.memory_space<vmem>>, vector<8x512xbf16>
    tpu.vector_store %arg10[%c24_146, %c0_147], %234 {strides = array<i32>} : memref<72x512xbf16, #tpu.memory_space<vmem>>, vector<8x512xbf16>,
    %236 = arith.truncf %211 : vector<8x512xf32> to vector<8x512xbf16>
    %c32_148 = arith.constant 32 : index
    %c0_149 = arith.constant 0 : index
    %237 = vector.load %arg10[%c32_148, %c0_149] : memref<72x512xbf16, #tpu.memory_space<vmem>>, vector<8x512xbf16>
    tpu.vector_store %arg10[%c32_148, %c0_149], %236 {strides = array<i32>} : memref<72x512xbf16, #tpu.memory_space<vmem>>, vector<8x512xbf16>,
    %c511_i32_150 = arith.constant 511 : i32
    %238 = tpu.dynamic_rotate %211 by %c511_i32_150 dim 1 : vector<8x512xf32>, i32 -> vector<8x512xf32>
    %c5_151 = arith.constant 5 : index
    %c0_152 = arith.constant 0 : index
    %239 = vector.load %arg6[%c5_151, %c0_152] : memref<9x512xf32, #tpu.memory_space<vmem>>, vector<1x512xf32>
    %240 = vector.broadcast %239 : vector<1x512xf32> to vector<8x512xf32>
    %241 = arith.mulf %238, %240 : vector<8x512xf32>
    %242 = arith.truncf %241 : vector<8x512xf32> to vector<8x512xbf16>
    %c40_153 = arith.constant 40 : index
    %c0_154 = arith.constant 0 : index
    %243 = vector.load %arg10[%c40_153, %c0_154] : memref<72x512xbf16, #tpu.memory_space<vmem>>, vector<8x512xbf16>
    tpu.vector_store %arg10[%c40_153, %c0_154], %242 {strides = array<i32>} : memref<72x512xbf16, #tpu.memory_space<vmem>>, vector<8x512xbf16>,
    %c497_i32_155 = arith.constant 497 : i32
    %244 = tpu.dynamic_rotate %211 by %c497_i32_155 dim 1 : vector<8x512xf32>, i32 -> vector<8x512xf32>
    %c6_156 = arith.constant 6 : index
    %c0_157 = arith.constant 0 : index
    %245 = vector.load %arg6[%c6_156, %c0_157] : memref<9x512xf32, #tpu.memory_space<vmem>>, vector<1x512xf32>
    %246 = vector.broadcast %245 : vector<1x512xf32> to vector<8x512xf32>
    %247 = arith.mulf %244, %246 : vector<8x512xf32>
    %248 = arith.truncf %247 : vector<8x512xf32> to vector<8x512xbf16>
    %c48_158 = arith.constant 48 : index
    %c0_159 = arith.constant 0 : index
    %249 = vector.load %arg10[%c48_158, %c0_159] : memref<72x512xbf16, #tpu.memory_space<vmem>>, vector<8x512xbf16>
    tpu.vector_store %arg10[%c48_158, %c0_159], %248 {strides = array<i32>} : memref<72x512xbf16, #tpu.memory_space<vmem>>, vector<8x512xbf16>,
    %c496_i32_160 = arith.constant 496 : i32
    %250 = tpu.dynamic_rotate %211 by %c496_i32_160 dim 1 : vector<8x512xf32>, i32 -> vector<8x512xf32>
    %c7_161 = arith.constant 7 : index
    %c0_162 = arith.constant 0 : index
    %251 = vector.load %arg6[%c7_161, %c0_162] : memref<9x512xf32, #tpu.memory_space<vmem>>, vector<1x512xf32>
    %252 = vector.broadcast %251 : vector<1x512xf32> to vector<8x512xf32>
    %253 = arith.mulf %250, %252 : vector<8x512xf32>
    %254 = arith.truncf %253 : vector<8x512xf32> to vector<8x512xbf16>
    %c56_163 = arith.constant 56 : index
    %c0_164 = arith.constant 0 : index
    %255 = vector.load %arg10[%c56_163, %c0_164] : memref<72x512xbf16, #tpu.memory_space<vmem>>, vector<8x512xbf16>
    tpu.vector_store %arg10[%c56_163, %c0_164], %254 {strides = array<i32>} : memref<72x512xbf16, #tpu.memory_space<vmem>>, vector<8x512xbf16>,
    %c495_i32_165 = arith.constant 495 : i32
    %256 = tpu.dynamic_rotate %211 by %c495_i32_165 dim 1 : vector<8x512xf32>, i32 -> vector<8x512xf32>
    %c8_166 = arith.constant 8 : index
    %c0_167 = arith.constant 0 : index
    %257 = vector.load %arg6[%c8_166, %c0_167] : memref<9x512xf32, #tpu.memory_space<vmem>>, vector<1x512xf32>
    %258 = vector.broadcast %257 : vector<1x512xf32> to vector<8x512xf32>
    %259 = arith.mulf %256, %258 : vector<8x512xf32>
    %260 = arith.truncf %259 : vector<8x512xf32> to vector<8x512xbf16>
    %c64_168 = arith.constant 64 : index
    %c0_169 = arith.constant 0 : index
    %261 = vector.load %arg10[%c64_168, %c0_169] : memref<72x512xbf16, #tpu.memory_space<vmem>>, vector<8x512xbf16>
    tpu.vector_store %arg10[%c64_168, %c0_169], %260 {strides = array<i32>} : memref<72x512xbf16, #tpu.memory_space<vmem>>, vector<8x512xbf16>,
    %c0_170 = arith.constant 0 : index
    %c0_171 = arith.constant 0 : index
    %262 = vector.load %arg10[%c0_170, %c0_171] : memref<72x512xbf16, #tpu.memory_space<vmem>>, vector<72x512xbf16>
    %cst_172 = arith.constant dense<0.000000e+00> : vector<16x512xf32>
    %263 = tpu.matmul %5, %262, %cst_172 {dimension_numbers = #tpu.dot_dimension_numbers<[1], [0], [0], [1], [0, 0, 1, 1], [], []>} : vector<16x72xbf16>, vector<72x512xbf16>, vector<16x512xf32> -> vector<16x512xf32>
    %264 = arith.addf %263, %9 : vector<16x512xf32>
    %265 = vector.extract_strided_slice %264 {offsets = [0, 0], sizes = [8, 512], strides = [1, 1]} : vector<16x512xf32> to vector<8x512xf32>
    %266 = tpu.concatenate %210, %210 in 0 : vector<4x512xf32>, vector<4x512xf32> -> vector<8x512xf32>
    %267 = arith.mulf %11, %266 : vector<8x512xf32>
    %268 = arith.addf %265, %267 : vector<8x512xf32>
    %269 = arith.negf %268 : vector<8x512xf32>
    %270 = math.exp %269 : vector<8x512xf32>
    %cst_173 = arith.constant 1.000000e+00 : f32
    %271 = vector.broadcast %cst_173 : f32 to vector<8x512xf32>
    %272 = arith.addf %271, %270 : vector<8x512xf32>
    %273 = arith.divf %271, %272 : vector<8x512xf32>
    %274 = vector.extract_strided_slice %273 {offsets = [0, 0], sizes = [4, 512], strides = [1, 1]} : vector<8x512xf32> to vector<4x512xf32>
    %275 = vector.extract_strided_slice %273 {offsets = [4, 0], sizes = [4, 512], strides = [1, 1]} : vector<8x512xf32> to vector<4x512xf32>
    %276 = arith.mulf %275, %210 : vector<4x512xf32>
    %277 = vector.extract_strided_slice %264 {offsets = [8, 0], sizes = [4, 512], strides = [1, 1]} : vector<16x512xf32> to vector<4x512xf32>
    %278 = math.tanh %277 : vector<4x512xf32>
    %279 = arith.mulf %274, %278 : vector<4x512xf32>
    %280 = arith.addf %276, %279 : vector<4x512xf32>
    %281 = vector.extract_strided_slice %264 {offsets = [12, 0], sizes = [4, 512], strides = [1, 1]} : vector<16x512xf32> to vector<4x512xf32>
    %282 = arith.mulf %13, %280 : vector<4x512xf32>
    %283 = arith.addf %281, %282 : vector<4x512xf32>
    %284 = arith.negf %283 : vector<4x512xf32>
    %285 = math.exp %284 : vector<4x512xf32>
    %cst_174 = arith.constant 1.000000e+00 : f32
    %286 = vector.broadcast %cst_174 : f32 to vector<4x512xf32>
    %287 = arith.addf %286, %285 : vector<4x512xf32>
    %288 = arith.divf %286, %287 : vector<4x512xf32>
    %289 = math.tanh %280 : vector<4x512xf32>
    %290 = arith.mulf %288, %289 : vector<4x512xf32>
    %c0_175 = arith.constant 0 : index
    %c0_176 = arith.constant 0 : index
    %291 = vector.load %arg8[%c0_175, %c0_176] : memref<4x512xf32, #tpu.memory_space<vmem>>, vector<4x512xf32>
    tpu.vector_store %arg8[%c0_175, %c0_176], %290 {strides = array<i32>} : memref<4x512xf32, #tpu.memory_space<vmem>>, vector<4x512xf32>,
    %c0_177 = arith.constant 0 : index
    %c0_178 = arith.constant 0 : index
    %292 = vector.load %arg9[%c0_177, %c0_178] : memref<4x512xf32, #tpu.memory_space<vmem>>, vector<4x512xf32>
    tpu.vector_store %arg9[%c0_177, %c0_178], %280 {strides = array<i32>} : memref<4x512xf32, #tpu.memory_space<vmem>>, vector<4x512xf32>,
    %c0_179 = arith.constant 0 : index
    %c2_180 = arith.constant 2 : index
    %c0_181 = arith.constant 0 : index
    %c0_182 = arith.constant 0 : index
    %293 = vector.load %arg7[%c0_179, %c2_180, %c0_181, %c0_182] : memref<1x4x4x512xf32, #tpu.memory_space<vmem>>, vector<1x1x4x512xf32>
    %294 = vector.shape_cast %293 : vector<1x1x4x512xf32> to vector<4x512xf32>
    %295 = vector.shape_cast %290 : vector<4x512xf32> to vector<1x1x4x512xf32>
    tpu.vector_store %arg7[%c0_179, %c2_180, %c0_181, %c0_182], %295 {strides = array<i32>} : memref<1x4x4x512xf32, #tpu.memory_space<vmem>>, vector<1x1x4x512xf32>,
    %c1_i32_183 = arith.constant 1 : i32
    %296 = arith.subi %c1_i32_183, %arg0 : i32
    %c3_i32_184 = arith.constant 3 : i32
    %297 = arith.muli %296, %c3_i32_184 : i32
    %c0_i32_185 = arith.constant 0 : i32
    %298 = arith.muli %arg0, %c0_i32_185 : i32
    %299 = arith.addi %297, %298 : i32
    %300 = arith.index_cast %299 : i32 to index
    %c0_186 = arith.constant 0 : index
    %c0_187 = arith.constant 0 : index
    %301 = vector.load %arg1[%300, %c0_186, %c0_187] : memref<4x4x512xf32, #tpu.memory_space<vmem>>, vector<1x4x512xf32>
    %302 = vector.shape_cast %301 : vector<1x4x512xf32> to vector<4x512xf32>
    %c0_188 = arith.constant 0 : index
    %c0_189 = arith.constant 0 : index
    %303 = vector.load %arg8[%c0_188, %c0_189] : memref<4x512xf32, #tpu.memory_space<vmem>>, vector<4x512xf32>
    %c0_190 = arith.constant 0 : index
    %c0_191 = arith.constant 0 : index
    %304 = vector.load %arg9[%c0_190, %c0_191] : memref<4x512xf32, #tpu.memory_space<vmem>>, vector<4x512xf32>
    %305 = tpu.concatenate %302, %303 in 0 : vector<4x512xf32>, vector<4x512xf32> -> vector<8x512xf32>
    %c17_i32_192 = arith.constant 17 : i32
    %306 = tpu.dynamic_rotate %305 by %c17_i32_192 dim 1 : vector<8x512xf32>, i32 -> vector<8x512xf32>
    %c0_193 = arith.constant 0 : index
    %c0_194 = arith.constant 0 : index
    %307 = vector.load %arg6[%c0_193, %c0_194] : memref<9x512xf32, #tpu.memory_space<vmem>>, vector<1x512xf32>
    %308 = vector.broadcast %307 : vector<1x512xf32> to vector<8x512xf32>
    %309 = arith.mulf %306, %308 : vector<8x512xf32>
    %310 = arith.truncf %309 : vector<8x512xf32> to vector<8x512xbf16>
    %c0_195 = arith.constant 0 : index
    %c0_196 = arith.constant 0 : index
    %311 = vector.load %arg10[%c0_195, %c0_196] : memref<72x512xbf16, #tpu.memory_space<vmem>>, vector<8x512xbf16>
    tpu.vector_store %arg10[%c0_195, %c0_196], %310 {strides = array<i32>} : memref<72x512xbf16, #tpu.memory_space<vmem>>, vector<8x512xbf16>,
    %c16_i32_197 = arith.constant 16 : i32
    %312 = tpu.dynamic_rotate %305 by %c16_i32_197 dim 1 : vector<8x512xf32>, i32 -> vector<8x512xf32>
    %c1_198 = arith.constant 1 : index
    %c0_199 = arith.constant 0 : index
    %313 = vector.load %arg6[%c1_198, %c0_199] : memref<9x512xf32, #tpu.memory_space<vmem>>, vector<1x512xf32>
    %314 = vector.broadcast %313 : vector<1x512xf32> to vector<8x512xf32>
    %315 = arith.mulf %312, %314 : vector<8x512xf32>
    %316 = arith.truncf %315 : vector<8x512xf32> to vector<8x512xbf16>
    %c8_200 = arith.constant 8 : index
    %c0_201 = arith.constant 0 : index
    %317 = vector.load %arg10[%c8_200, %c0_201] : memref<72x512xbf16, #tpu.memory_space<vmem>>, vector<8x512xbf16>
    tpu.vector_store %arg10[%c8_200, %c0_201], %316 {strides = array<i32>} : memref<72x512xbf16, #tpu.memory_space<vmem>>, vector<8x512xbf16>,
    %c15_i32_202 = arith.constant 15 : i32
    %318 = tpu.dynamic_rotate %305 by %c15_i32_202 dim 1 : vector<8x512xf32>, i32 -> vector<8x512xf32>
    %c2_203 = arith.constant 2 : index
    %c0_204 = arith.constant 0 : index
    %319 = vector.load %arg6[%c2_203, %c0_204] : memref<9x512xf32, #tpu.memory_space<vmem>>, vector<1x512xf32>
    %320 = vector.broadcast %319 : vector<1x512xf32> to vector<8x512xf32>
    %321 = arith.mulf %318, %320 : vector<8x512xf32>
    %322 = arith.truncf %321 : vector<8x512xf32> to vector<8x512xbf16>
    %c16_205 = arith.constant 16 : index
    %c0_206 = arith.constant 0 : index
    %323 = vector.load %arg10[%c16_205, %c0_206] : memref<72x512xbf16, #tpu.memory_space<vmem>>, vector<8x512xbf16>
    tpu.vector_store %arg10[%c16_205, %c0_206], %322 {strides = array<i32>} : memref<72x512xbf16, #tpu.memory_space<vmem>>, vector<8x512xbf16>,
    %c1_i32_207 = arith.constant 1 : i32
    %324 = tpu.dynamic_rotate %305 by %c1_i32_207 dim 1 : vector<8x512xf32>, i32 -> vector<8x512xf32>
    %c3_208 = arith.constant 3 : index
    %c0_209 = arith.constant 0 : index
    %325 = vector.load %arg6[%c3_208, %c0_209] : memref<9x512xf32, #tpu.memory_space<vmem>>, vector<1x512xf32>
    %326 = vector.broadcast %325 : vector<1x512xf32> to vector<8x512xf32>
    %327 = arith.mulf %324, %326 : vector<8x512xf32>
    %328 = arith.truncf %327 : vector<8x512xf32> to vector<8x512xbf16>
    %c24_210 = arith.constant 24 : index
    %c0_211 = arith.constant 0 : index
    %329 = vector.load %arg10[%c24_210, %c0_211] : memref<72x512xbf16, #tpu.memory_space<vmem>>, vector<8x512xbf16>
    tpu.vector_store %arg10[%c24_210, %c0_211], %328 {strides = array<i32>} : memref<72x512xbf16, #tpu.memory_space<vmem>>, vector<8x512xbf16>,
    %330 = arith.truncf %305 : vector<8x512xf32> to vector<8x512xbf16>
    %c32_212 = arith.constant 32 : index
    %c0_213 = arith.constant 0 : index
    %331 = vector.load %arg10[%c32_212, %c0_213] : memref<72x512xbf16, #tpu.memory_space<vmem>>, vector<8x512xbf16>
    tpu.vector_store %arg10[%c32_212, %c0_213], %330 {strides = array<i32>} : memref<72x512xbf16, #tpu.memory_space<vmem>>, vector<8x512xbf16>,
    %c511_i32_214 = arith.constant 511 : i32
    %332 = tpu.dynamic_rotate %305 by %c511_i32_214 dim 1 : vector<8x512xf32>, i32 -> vector<8x512xf32>
    %c5_215 = arith.constant 5 : index
    %c0_216 = arith.constant 0 : index
    %333 = vector.load %arg6[%c5_215, %c0_216] : memref<9x512xf32, #tpu.memory_space<vmem>>, vector<1x512xf32>
    %334 = vector.broadcast %333 : vector<1x512xf32> to vector<8x512xf32>
    %335 = arith.mulf %332, %334 : vector<8x512xf32>
    %336 = arith.truncf %335 : vector<8x512xf32> to vector<8x512xbf16>
    %c40_217 = arith.constant 40 : index
    %c0_218 = arith.constant 0 : index
    %337 = vector.load %arg10[%c40_217, %c0_218] : memref<72x512xbf16, #tpu.memory_space<vmem>>, vector<8x512xbf16>
    tpu.vector_store %arg10[%c40_217, %c0_218], %336 {strides = array<i32>} : memref<72x512xbf16, #tpu.memory_space<vmem>>, vector<8x512xbf16>,
    %c497_i32_219 = arith.constant 497 : i32
    %338 = tpu.dynamic_rotate %305 by %c497_i32_219 dim 1 : vector<8x512xf32>, i32 -> vector<8x512xf32>
    %c6_220 = arith.constant 6 : index
    %c0_221 = arith.constant 0 : index
    %339 = vector.load %arg6[%c6_220, %c0_221] : memref<9x512xf32, #tpu.memory_space<vmem>>, vector<1x512xf32>
    %340 = vector.broadcast %339 : vector<1x512xf32> to vector<8x512xf32>
    %341 = arith.mulf %338, %340 : vector<8x512xf32>
    %342 = arith.truncf %341 : vector<8x512xf32> to vector<8x512xbf16>
    %c48_222 = arith.constant 48 : index
    %c0_223 = arith.constant 0 : index
    %343 = vector.load %arg10[%c48_222, %c0_223] : memref<72x512xbf16, #tpu.memory_space<vmem>>, vector<8x512xbf16>
    tpu.vector_store %arg10[%c48_222, %c0_223], %342 {strides = array<i32>} : memref<72x512xbf16, #tpu.memory_space<vmem>>, vector<8x512xbf16>,
    %c496_i32_224 = arith.constant 496 : i32
    %344 = tpu.dynamic_rotate %305 by %c496_i32_224 dim 1 : vector<8x512xf32>, i32 -> vector<8x512xf32>
    %c7_225 = arith.constant 7 : index
    %c0_226 = arith.constant 0 : index
    %345 = vector.load %arg6[%c7_225, %c0_226] : memref<9x512xf32, #tpu.memory_space<vmem>>, vector<1x512xf32>
    %346 = vector.broadcast %345 : vector<1x512xf32> to vector<8x512xf32>
    %347 = arith.mulf %344, %346 : vector<8x512xf32>
    %348 = arith.truncf %347 : vector<8x512xf32> to vector<8x512xbf16>
    %c56_227 = arith.constant 56 : index
    %c0_228 = arith.constant 0 : index
    %349 = vector.load %arg10[%c56_227, %c0_228] : memref<72x512xbf16, #tpu.memory_space<vmem>>, vector<8x512xbf16>
    tpu.vector_store %arg10[%c56_227, %c0_228], %348 {strides = array<i32>} : memref<72x512xbf16, #tpu.memory_space<vmem>>, vector<8x512xbf16>,
    %c495_i32_229 = arith.constant 495 : i32
    %350 = tpu.dynamic_rotate %305 by %c495_i32_229 dim 1 : vector<8x512xf32>, i32 -> vector<8x512xf32>
    %c8_230 = arith.constant 8 : index
    %c0_231 = arith.constant 0 : index
    %351 = vector.load %arg6[%c8_230, %c0_231] : memref<9x512xf32, #tpu.memory_space<vmem>>, vector<1x512xf32>
    %352 = vector.broadcast %351 : vector<1x512xf32> to vector<8x512xf32>
    %353 = arith.mulf %350, %352 : vector<8x512xf32>
    %354 = arith.truncf %353 : vector<8x512xf32> to vector<8x512xbf16>
    %c64_232 = arith.constant 64 : index
    %c0_233 = arith.constant 0 : index
    %355 = vector.load %arg10[%c64_232, %c0_233] : memref<72x512xbf16, #tpu.memory_space<vmem>>, vector<8x512xbf16>
    tpu.vector_store %arg10[%c64_232, %c0_233], %354 {strides = array<i32>} : memref<72x512xbf16, #tpu.memory_space<vmem>>, vector<8x512xbf16>,
    %c0_234 = arith.constant 0 : index
    %c0_235 = arith.constant 0 : index
    %356 = vector.load %arg10[%c0_234, %c0_235] : memref<72x512xbf16, #tpu.memory_space<vmem>>, vector<72x512xbf16>
    %cst_236 = arith.constant dense<0.000000e+00> : vector<16x512xf32>
    %357 = tpu.matmul %5, %356, %cst_236 {dimension_numbers = #tpu.dot_dimension_numbers<[1], [0], [0], [1], [0, 0, 1, 1], [], []>} : vector<16x72xbf16>, vector<72x512xbf16>, vector<16x512xf32> -> vector<16x512xf32>
    %358 = arith.addf %357, %9 : vector<16x512xf32>
    %359 = vector.extract_strided_slice %358 {offsets = [0, 0], sizes = [8, 512], strides = [1, 1]} : vector<16x512xf32> to vector<8x512xf32>
    %360 = tpu.concatenate %304, %304 in 0 : vector<4x512xf32>, vector<4x512xf32> -> vector<8x512xf32>
    %361 = arith.mulf %11, %360 : vector<8x512xf32>
    %362 = arith.addf %359, %361 : vector<8x512xf32>
    %363 = arith.negf %362 : vector<8x512xf32>
    %364 = math.exp %363 : vector<8x512xf32>
    %cst_237 = arith.constant 1.000000e+00 : f32
    %365 = vector.broadcast %cst_237 : f32 to vector<8x512xf32>
    %366 = arith.addf %365, %364 : vector<8x512xf32>
    %367 = arith.divf %365, %366 : vector<8x512xf32>
    %368 = vector.extract_strided_slice %367 {offsets = [0, 0], sizes = [4, 512], strides = [1, 1]} : vector<8x512xf32> to vector<4x512xf32>
    %369 = vector.extract_strided_slice %367 {offsets = [4, 0], sizes = [4, 512], strides = [1, 1]} : vector<8x512xf32> to vector<4x512xf32>
    %370 = arith.mulf %369, %304 : vector<4x512xf32>
    %371 = vector.extract_strided_slice %358 {offsets = [8, 0], sizes = [4, 512], strides = [1, 1]} : vector<16x512xf32> to vector<4x512xf32>
    %372 = math.tanh %371 : vector<4x512xf32>
    %373 = arith.mulf %368, %372 : vector<4x512xf32>
    %374 = arith.addf %370, %373 : vector<4x512xf32>
    %375 = vector.extract_strided_slice %358 {offsets = [12, 0], sizes = [4, 512], strides = [1, 1]} : vector<16x512xf32> to vector<4x512xf32>
    %376 = arith.mulf %13, %374 : vector<4x512xf32>
    %377 = arith.addf %375, %376 : vector<4x512xf32>
    %378 = arith.negf %377 : vector<4x512xf32>
    %379 = math.exp %378 : vector<4x512xf32>
    %cst_238 = arith.constant 1.000000e+00 : f32
    %380 = vector.broadcast %cst_238 : f32 to vector<4x512xf32>
    %381 = arith.addf %380, %379 : vector<4x512xf32>
    %382 = arith.divf %380, %381 : vector<4x512xf32>
    %383 = math.tanh %374 : vector<4x512xf32>
    %384 = arith.mulf %382, %383 : vector<4x512xf32>
    %c0_239 = arith.constant 0 : index
    %c0_240 = arith.constant 0 : index
    %385 = vector.load %arg8[%c0_239, %c0_240] : memref<4x512xf32, #tpu.memory_space<vmem>>, vector<4x512xf32>
    tpu.vector_store %arg8[%c0_239, %c0_240], %384 {strides = array<i32>} : memref<4x512xf32, #tpu.memory_space<vmem>>, vector<4x512xf32>,
    %c0_241 = arith.constant 0 : index
    %c0_242 = arith.constant 0 : index
    %386 = vector.load %arg9[%c0_241, %c0_242] : memref<4x512xf32, #tpu.memory_space<vmem>>, vector<4x512xf32>
    tpu.vector_store %arg9[%c0_241, %c0_242], %374 {strides = array<i32>} : memref<4x512xf32, #tpu.memory_space<vmem>>, vector<4x512xf32>,
    %c0_243 = arith.constant 0 : index
    %c3_244 = arith.constant 3 : index
    %c0_245 = arith.constant 0 : index
    %c0_246 = arith.constant 0 : index
    %387 = vector.load %arg7[%c0_243, %c3_244, %c0_245, %c0_246] : memref<1x4x4x512xf32, #tpu.memory_space<vmem>>, vector<1x1x4x512xf32>
    %388 = vector.shape_cast %387 : vector<1x1x4x512xf32> to vector<4x512xf32>
    %389 = vector.shape_cast %384 : vector<4x512xf32> to vector<1x1x4x512xf32>
    tpu.vector_store %arg7[%c0_243, %c3_244, %c0_245, %c0_246], %389 {strides = array<i32>} : memref<1x4x4x512xf32, #tpu.memory_space<vmem>>, vector<1x1x4x512xf32>,
    return
  }
  func.func @transform_0(%arg0: i32) -> (i32, i32, i32) {
    %c0_i32 = arith.constant 0 : i32
    %c0_i32_0 = arith.constant 0 : i32
    %c0_i32_1 = arith.constant 0 : i32
    %c0_i32_2 = arith.constant 0 : i32
    return %c0_i32, %c0_i32_0, %c0_i32_1 : i32, i32, i32
  }
  func.func @transform_1(%arg0: i32) -> (i32, i32, i32) {
    %c0_i32 = arith.constant 0 : i32
    %c0_i32_0 = arith.constant 0 : i32
    %c0_i32_1 = arith.constant 0 : i32
    return %arg0, %c0_i32, %c0_i32_0 : i32, i32, i32
  }
  func.func @transform_2(%arg0: i32) -> (i32, i32, i32) {
    %c0_i32 = arith.constant 0 : i32
    %c0_i32_0 = arith.constant 0 : i32
    %c0_i32_1 = arith.constant 0 : i32
    return %arg0, %c0_i32, %c0_i32_0 : i32, i32, i32
  }
  func.func @transform_3(%arg0: i32) -> (i32, i32, i32) {
    %c0_i32 = arith.constant 0 : i32
    %c0_i32_0 = arith.constant 0 : i32
    %c0_i32_1 = arith.constant 0 : i32
    return %arg0, %c0_i32, %c0_i32_0 : i32, i32, i32
  }
  func.func @transform_4(%arg0: i32) -> (i32, i32, i32) {
    %c0_i32 = arith.constant 0 : i32
    %c0_i32_0 = arith.constant 0 : i32
    %c0_i32_1 = arith.constant 0 : i32
    return %arg0, %c0_i32, %c0_i32_0 : i32, i32, i32
  }
  func.func @transform_5(%arg0: i32) -> (i32, i32) {
    %c0_i32 = arith.constant 0 : i32
    %c0_i32_0 = arith.constant 0 : i32
    %c0_i32_1 = arith.constant 0 : i32
    return %c0_i32, %c0_i32_0 : i32, i32
  }
  func.func @transform_6(%arg0: i32) -> (i32, i32, i32, i32) {
    %c0_i32 = arith.constant 0 : i32
    %c0_i32_0 = arith.constant 0 : i32
    %c0_i32_1 = arith.constant 0 : i32
    %c0_i32_2 = arith.constant 0 : i32
    return %arg0, %c0_i32, %c0_i32_0, %c0_i32_1 : i32, i32, i32, i32
  }
}

</mosaic_0001>

<llo_original>
// kernel: conv_blstm_forward.1
$region0: #{conv_blstm_forward.1}
  #allocation0 [shape = 'u32[]', space=smem, size = 0x4, offset = 0x4, fixed_abs, tag = 'smem constant byte address 0x4 - core index']
  #allocation1 [shape = 'u32[72,128]{1,0:T(1,128)}', space=vmem, size = 0x9000, scoped, tag = 'internal scratch']
  #allocation2 [shape = 'f32[4,512]{1,0:T(4,128)}', space=vmem, size = 0x2000, scoped, tag = 'scratch operand']
  #allocation3 [shape = 'f32[4,512]{1,0:T(4,128)}', space=vmem, size = 0x2000, scoped, tag = 'scratch operand']
  #allocation4 [shape = 'bf16[72,512]{1,0:T(8,128)(2,1)}', space=vmem, size = 0x12000, scoped, tag = 'scratch operand']
  %s0 = inlined_call_operand.vmem [shape: f32[4,4,512], index: 0, kind: input, shape index: {}]
  %s1 = inlined_call_operand.vmem [shape: bf16[2,16,72], index: 1, kind: input, shape index: {}]
  %s2 = inlined_call_operand.vmem [shape: f32[2,16,1], index: 2, kind: input, shape index: {}]
  %s3 = inlined_call_operand.vmem [shape: f32[2,8,512], index: 3, kind: input, shape index: {}]
  %s4 = inlined_call_operand.vmem [shape: f32[2,4,512], index: 4, kind: input, shape index: {}]
  %s5 = inlined_call_operand.vmem [shape: f32[9,512], index: 5, kind: input, shape index: {}]
  %s6 = inlined_call_operand.vmem [shape: f32[2,4,4,512], index: 6, kind: output, shape index: {}]
  %s7 = sld [smem:[#allocation0]]
  $region57: #{conv_blstm_forward.1} parent=0
    _
  %s9 = ssub.s32 1, %s7
  %s10 = scalar_select 0, %s9, %s7
  loop: start=0, step=1, limit=4
  $region2: #{conv_blstm_forward.1} parent=0 // loop_pre_header
    _
  $region3: #{conv_blstm_forward.1} parent=0 // loop_header
    %s12 = sphi 0, %s16
    %p13 = scmp.ge.s32.totalorder %s12, 4
    %s20 = sphi 0, %s20
    %s22 = sphi 0, %s20
    %s23 = sphi 0, %s22
    %s37 = sphi 0, %s23
    %s43 = sphi 0, %s45
    %s46 = sphi 0, %s43
    %s47 = sphi 0, %s46
    %s63 = sphi 0, %s47
    %s69 = sphi 0, %s71
    %s72 = sphi 0, %s69
    %s73 = sphi 0, %s72
    %s89 = sphi 0, %s73
    %s95 = sphi 0, %s97
    %s98 = sphi 0, %s95
    %s99 = sphi 0, %s98
    %s115 = sphi 0, %s99
    %s121 = sphi 0, %s123
    %s124 = sphi 0, %s121
    %s125 = sphi 0, %s124
    %s141 = sphi 0, %s125
    %s145 = sphi 0, %s145
    %s147 = sphi 0, %s145
    %s148 = sphi 0, %s147
    %s162 = sphi 0, %s148
    %s168 = sphi 0, %s170
    %s171 = sphi 0, %s168
    %s172 = sphi 0, %s171
    %s188 = sphi 0, %s172
  $region4: #{conv_blstm_forward.1} parent=0 // loop_header_branch
    %15 = sbr.rel (%p13) target = $region8
  $region5: #{conv_blstm_forward.1} parent=0 // loop_body
    %s17 = ssub.s32 %s12, 1
    %s18 = ssub.s32 %s12, 2
    %s19 = sadd.s32 %s12, 1
    %s21 = sadd.s32 %s20, 1
    %p24 = scmp.eq.s32.totalorder %s12, 1
    %p25 = scmp.ne.s32.totalorder %s20, %s22
    %p26 = scmp.eq.s32.totalorder %s12, 0
    %p27 = por %p25, %p26
    %p28 = scmp.ne.s32.totalorder %s20, %s22
    %p29 = scmp.eq.s32.totalorder %s17, 1
    %p30 = por %p28, %p29
    %p31 = scmp.ne.s32.totalorder %s22, %s23
    %p32 = scmp.eq.s32.totalorder %s17, 0
    %p33 = por %p31, %p32
    %p34 = scmp.ne.s32.totalorder %s22, %s23
    %p35 = scmp.eq.s32.totalorder %s18, 1
    %p36 = por %p34, %p35
    %p38 = scmp.ne.s32.totalorder %s23, %s37
    %p39 = scmp.eq.s32.totalorder %s18, 0
    %p40 = por %p38, %p39
    %s41 = ssub.s32 %s12, %s19
    %p42 = scmp.eq.s32.totalorder %s41, 0
    %s44 = sadd.s32 %s43, 1
    %s45 = scalar_select %p42, %s43, %s44
    %p48 = pneg %p42
    %p49 = scmp.eq.s32.totalorder %s12, 1
    %p50 = por %p48, %p49
    %p51 = scmp.ne.s32.totalorder %s43, %s46
    %p52 = scmp.eq.s32.totalorder %s12, 0
    %p53 = por %p51, %p52
    %p54 = scmp.ne.s32.totalorder %s43, %s46
    %p55 = scmp.eq.s32.totalorder %s17, 1
    %p56 = por %p54, %p55
    %p57 = scmp.ne.s32.totalorder %s46, %s47
    %p58 = scmp.eq.s32.totalorder %s17, 0
    %p59 = por %p57, %p58
    %p60 = scmp.ne.s32.totalorder %s46, %s47
    %p61 = scmp.eq.s32.totalorder %s18, 1
    %p62 = por %p60, %p61
    %p64 = scmp.ne.s32.totalorder %s47, %s63
    %p65 = scmp.eq.s32.totalorder %s18, 0
    %p66 = por %p64, %p65
    %s67 = ssub.s32 %s12, %s19
    %p68 = scmp.eq.s32.totalorder %s67, 0
    %s70 = sadd.s32 %s69, 1
    %s71 = scalar_select %p68, %s69, %s70
    %p74 = pneg %p68
    %p75 = scmp.eq.s32.totalorder %s12, 1
    %p76 = por %p74, %p75
    %p77 = scmp.ne.s32.totalorder %s69, %s72
    %p78 = scmp.eq.s32.totalorder %s12, 0
    %p79 = por %p77, %p78
    %p80 = scmp.ne.s32.totalorder %s69, %s72
    %p81 = scmp.eq.s32.totalorder %s17, 1
    %p82 = por %p80, %p81
    %p83 = scmp.ne.s32.totalorder %s72, %s73
    %p84 = scmp.eq.s32.totalorder %s17, 0
    %p85 = por %p83, %p84
    %p86 = scmp.ne.s32.totalorder %s72, %s73
    %p87 = scmp.eq.s32.totalorder %s18, 1
    %p88 = por %p86, %p87
    %p90 = scmp.ne.s32.totalorder %s73, %s89
    %p91 = scmp.eq.s32.totalorder %s18, 0
    %p92 = por %p90, %p91
    %s93 = ssub.s32 %s12, %s19
    %p94 = scmp.eq.s32.totalorder %s93, 0
    %s96 = sadd.s32 %s95, 1
    %s97 = scalar_select %p94, %s95, %s96
    %p100 = pneg %p94
    %p101 = scmp.eq.s32.totalorder %s12, 1
    %p102 = por %p100, %p101
    %p103 = scmp.ne.s32.totalorder %s95, %s98
    %p104 = scmp.eq.s32.totalorder %s12, 0
    %p105 = por %p103, %p104
    %p106 = scmp.ne.s32.totalorder %s95, %s98
    %p107 = scmp.eq.s32.totalorder %s17, 1
    %p108 = por %p106, %p107
    %p109 = scmp.ne.s32.totalorder %s98, %s99
    %p110 = scmp.eq.s32.totalorder %s17, 0
    %p111 = por %p109, %p110
    %p112 = scmp.ne.s32.totalorder %s98, %s99
    %p113 = scmp.eq.s32.totalorder %s18, 1
    %p114 = por %p112, %p113
    %p116 = scmp.ne.s32.totalorder %s99, %s115
    %p117 = scmp.eq.s32.totalorder %s18, 0
    %p118 = por %p116, %p117
    %s119 = ssub.s32 %s12, %s19
    %p120 = scmp.eq.s32.totalorder %s119, 0
    %s122 = sadd.s32 %s121, 1
    %s123 = scalar_select %p120, %s121, %s122
    %p126 = pneg %p120
    %p127 = scmp.eq.s32.totalorder %s12, 1
    %p128 = por %p126, %p127
    %p129 = scmp.ne.s32.totalorder %s121, %s124
    %p130 = scmp.eq.s32.totalorder %s12, 0
    %p131 = por %p129, %p130
    %p132 = scmp.ne.s32.totalorder %s121, %s124
    %p133 = scmp.eq.s32.totalorder %s17, 1
    %p134 = por %p132, %p133
    %p135 = scmp.ne.s32.totalorder %s124, %s125
    %p136 = scmp.eq.s32.totalorder %s17, 0
    %p137 = por %p135, %p136
    %p138 = scmp.ne.s32.totalorder %s124, %s125
    %p139 = scmp.eq.s32.totalorder %s18, 1
    %p140 = por %p138, %p139
    %p142 = scmp.ne.s32.totalorder %s125, %s141
    %p143 = scmp.eq.s32.totalorder %s18, 0
    %p144 = por %p142, %p143
    %s146 = sadd.s32 %s145, 1
    %p149 = scmp.eq.s32.totalorder %s12, 1
    %p150 = scmp.ne.s32.totalorder %s145, %s147
    %p151 = scmp.eq.s32.totalorder %s12, 0
    %p152 = por %p150, %p151
    %p153 = scmp.ne.s32.totalorder %s145, %s147
    %p154 = scmp.eq.s32.totalorder %s17, 1
    %p155 = por %p153, %p154
    %p156 = scmp.ne.s32.totalorder %s147, %s148
    %p157 = scmp.eq.s32.totalorder %s17, 0
    %p158 = por %p156, %p157
    %p159 = scmp.ne.s32.totalorder %s147, %s148
    %p160 = scmp.eq.s32.totalorder %s18, 1
    %p161 = por %p159, %p160
    %p163 = scmp.ne.s32.totalorder %s148, %s162
    %p164 = scmp.eq.s32.totalorder %s18, 0
    %p165 = por %p163, %p164
    %s166 = ssub.s32 %s12, %s19
    %p167 = scmp.eq.s32.totalorder %s166, 0
    %s169 = sadd.s32 %s168, 1
    %s170 = scalar_select %p167, %s168, %s169
    %p173 = pneg %p167
    %p174 = scmp.eq.s32.totalorder %s12, 1
    %p175 = por %p173, %p174
    %p176 = scmp.ne.s32.totalorder %s168, %s171
    %p177 = scmp.eq.s32.totalorder %s12, 0
    %p178 = por %p176, %p177
    %p179 = scmp.ne.s32.totalorder %s168, %s171
    %p180 = scmp.eq.s32.totalorder %s17, 1
    %p181 = por %p179, %p180
    %p182 = scmp.ne.s32.totalorder %s171, %s172
    %p183 = scmp.eq.s32.totalorder %s17, 0
    %p184 = por %p182, %p183
    %p185 = scmp.ne.s32.totalorder %s171, %s172
    %p186 = scmp.eq.s32.totalorder %s18, 1
    %p187 = por %p185, %p186
    %p189 = scmp.ne.s32.totalorder %s172, %s188
    %p190 = scmp.eq.s32.totalorder %s18, 0
    %p191 = por %p189, %p190
    %p192 = scmp.le.s32.totalorder 1, %s12
    %p193 = scmp.lt.s32.totalorder %s12, 3
    %p194 = pnand %p192, %p193
    %p195 = pneg %p194
    // Predicated region
    $region9: #{conv_blstm_forward.1} parent=5 // pred_check
      _
    $region10: #{conv_blstm_forward.1} parent=5 // pred_check_branch
      %197 = sbr.rel (%p194) target = $region12
    $region11: #{conv_blstm_forward.1} parent=5 // pred_region
      %s198 = ssub.s32 %s12, 1
      // Predicated region
      $region13: #{conv_blstm_forward.1} parent=11 // pred_check
        %p199 = pneg %p33
      $region14: #{conv_blstm_forward.1} parent=11 // pred_check_branch
        %201 = sbr.rel (%p199) target = $region16
      $region15: #{conv_blstm_forward.1} parent=11 // pred_region
        _
      $region16: #{conv_blstm_forward.1} parent=11 // pred_fallthru
        _
      // Predicated region
      $region17: #{conv_blstm_forward.1} parent=11 // pred_check
        %p202 = pneg %p158
      $region18: #{conv_blstm_forward.1} parent=11 // pred_check_branch
        %204 = sbr.rel (%p202) target = $region20
      $region19: #{conv_blstm_forward.1} parent=11 // pred_region
        _
      $region20: #{conv_blstm_forward.1} parent=11 // pred_fallthru
        _
    $region12: #{conv_blstm_forward.1} parent=5 // pred_fallthru
      _
    %p205 = scmp.lt.s32.totalorder %s12, 2
    // Predicated region
    $region21: #{conv_blstm_forward.1} parent=5 // pred_check
      %p206 = pneg %p205
    $region22: #{conv_blstm_forward.1} parent=5 // pred_check_branch
      %208 = sbr.rel (%p206) target = $region24
    $region23: #{conv_blstm_forward.1} parent=5 // pred_region
      // Predicated region
      $region25: #{conv_blstm_forward.1} parent=23 // pred_check
        %p209 = pneg %p53
      $region26: #{conv_blstm_forward.1} parent=23 // pred_check_branch
        %211 = sbr.rel (%p209) target = $region28
      $region27: #{conv_blstm_forward.1} parent=23 // pred_region
        %p212 = scmp.lt.s32.totalorder %s12, 1
        %s213 = scalar_select %p212, %s12, 1
        %s214 = smul.addr %s213, 2
        %s215 = smul.addr %s214, 4
        %s216 = scalar_lea.vmem %s1, %s215
      $region28: #{conv_blstm_forward.1} parent=23 // pred_fallthru
        _
      // Predicated region
      $region29: #{conv_blstm_forward.1} parent=23 // pred_check
        %p217 = pneg %p79
      $region30: #{conv_blstm_forward.1} parent=23 // pred_check_branch
        %219 = sbr.rel (%p217) target = $region32
      $region31: #{conv_blstm_forward.1} parent=23 // pred_region
        %p220 = scmp.lt.s32.totalorder %s12, 1
        %s221 = scalar_select %p220, %s12, 1
        %s222 = smul.addr %s221, 2
        %s223 = smul.addr %s222, 8
        %s224 = scalar_lea.vmem %s2, %s223
      $region32: #{conv_blstm_forward.1} parent=23 // pred_fallthru
        _
      // Predicated region
      $region33: #{conv_blstm_forward.1} parent=23 // pred_check
        %p225 = pneg %p105
      $region34: #{conv_blstm_forward.1} parent=23 // pred_check_branch
        %227 = sbr.rel (%p225) target = $region36
      $region35: #{conv_blstm_forward.1} parent=23 // pred_region
        %p228 = scmp.lt.s32.totalorder %s12, 1
        %s229 = scalar_select %p228, %s12, 1
        %s230 = smul.addr %s229, 4
        %s231 = smul.addr %s230, 8
        %s232 = scalar_lea.vmem %s3, %s231
      $region36: #{conv_blstm_forward.1} parent=23 // pred_fallthru
        _
      // Predicated region
      $region37: #{conv_blstm_forward.1} parent=23 // pred_check
        %p233 = pneg %p131
      $region38: #{conv_blstm_forward.1} parent=23 // pred_check_branch
        %235 = sbr.rel (%p233) target = $region40
      $region39: #{conv_blstm_forward.1} parent=23 // pred_region
        %p236 = scmp.lt.s32.totalorder %s12, 1
        %s237 = scalar_select %p236, %s12, 1
        %s238 = smul.addr %s237, 4
        %s239 = smul.addr %s238, 4
        %s240 = scalar_lea.vmem %s4, %s239
      $region40: #{conv_blstm_forward.1} parent=23 // pred_fallthru
        _
    $region24: #{conv_blstm_forward.1} parent=5 // pred_fallthru
      _
    %p241 = scmp.le.s32.totalorder 1, %s12
    %p242 = scmp.lt.s32.totalorder %s12, 3
    %p243 = pnand %p241, %p242
    %p244 = pneg %p243
    // Predicated region
    $region41: #{conv_blstm_forward.1} parent=5 // pred_check
      _
    $region42: #{conv_blstm_forward.1} parent=5 // pred_check_branch
      %246 = sbr.rel (%p243) target = $region44
    $region43: #{conv_blstm_forward.1} parent=5 // pred_region
      %s247 = ssub.s32 %s12, 1
      %p248 = pneg %p33
      %p249 = pneg %p30
      %p250 = scmp.lt.s32.totalorder %s17, 1
      %s251 = scalar_select %p250, %s17, 1
      %s252 = smul.addr %s251, 2
      %s253 = smul.addr %s252, 4
      %s254 = scalar_lea.vmem %s1, %s253
      %p255 = pneg %p59
      %p256 = pneg %p56
      %p257 = scmp.lt.s32.totalorder %s17, 1
      %s258 = scalar_select %p257, %s17, 1
      %s259 = smul.addr %s258, 2
      %s260 = smul.addr %s259, 8
      %s261 = scalar_lea.vmem %s2, %s260
      %p262 = pneg %p85
      %p263 = pneg %p82
      %p264 = scmp.lt.s32.totalorder %s17, 1
      %s265 = scalar_select %p264, %s17, 1
      %s266 = smul.addr %s265, 4
      %s267 = smul.addr %s266, 8
      %s268 = scalar_lea.vmem %s3, %s267
      %p269 = pneg %p111
      %p270 = pneg %p108
      %p271 = scmp.lt.s32.totalorder %s17, 1
      %s272 = scalar_select %p271, %s17, 1
      %s273 = smul.addr %s272, 4
      %s274 = smul.addr %s273, 4
      %s275 = scalar_lea.vmem %s4, %s274
      %p276 = pneg %p137
      %p277 = pneg %p134
      %p278 = pneg %p158
      %p279 = pneg %p155
      %p280 = pneg %p184
      %p281 = pneg %p181
      %p282 = scmp.lt.s32.totalorder %s17, 1
      %s283 = scalar_select %p282, %s17, 1
      %s284 = smul.addr %s283, 16
      %s285 = smul.addr %s284, 4
      %s286 = scalar_lea.vmem %s6, %s285
      %p287 = scmp.lt.s32.totalorder %s17, 1
      %s288 = scalar_select %p287, %s17, 1
      %s289 = smul.addr %s288, 2
      %s290 = smul.addr %s289, 4
      %s291 = scalar_lea.vmem %s1, %s290
      %p292 = scmp.lt.s32.totalorder %s17, 1
      %s293 = scalar_select %p292, %s17, 1
      %s294 = smul.addr %s293, 2
      %s295 = smul.addr %s294, 8
      %s296 = scalar_lea.vmem %s2, %s295
      %p297 = scmp.lt.s32.totalorder %s17, 1
      %s298 = scalar_select %p297, %s17, 1
      %s299 = smul.addr %s298, 4
      %s300 = smul.addr %s299, 8
      %s301 = scalar_lea.vmem %s3, %s300
      %p302 = scmp.lt.s32.totalorder %s17, 1
      %s303 = scalar_select %p302, %s17, 1
      %s304 = smul.addr %s303, 4
      %s305 = smul.addr %s304, 4
      %s306 = scalar_lea.vmem %s4, %s305
      %p307 = scmp.lt.s32.totalorder %s17, 1
      %s308 = scalar_select %p307, %s17, 1
      %s309 = smul.addr %s308, 16
      %s310 = smul.addr %s309, 4
      %s311 = scalar_lea.vmem %s6, %s310
      %313 = vst [vmem:[#allocation2] sm:$0xff] 0.0
      %314 = vst [vmem:[#allocation2 + $0x8] sm:$0xff] 0.0
      %315 = vst [vmem:[#allocation3] sm:$0xff] 0.0
      %316 = vst [vmem:[#allocation3 + $0x8] sm:$0xff] 0.0
      %v317 = vld [vmem:[%s291] sm:$0xf]
      %v318 = vld [vmem:[%s291 + $0x4] sm:$0xf]
      %v319 = vld [vmem:[%s296] sm:$0xff]
      %v320 = vld [vmem:[%s296 + $0x8] sm:$0xff]
      %322 = vset.pattern.permute.xlu0 0
      %323 = vperm.xlu0 %322, %v319
      %v324 = vpop.permute.xlu0 %323
      %327 = vset.pattern.permute.xlu0 0
      %328 = vperm.xlu0 %327, %v320
      %v329 = vpop.permute.xlu0 %328
      %v331 = vld [vmem:[%s301] sm:$0xff]
      %v332 = vld [vmem:[%s301 + $0x8] sm:$0xff]
      %v333 = vld [vmem:[%s301 + $0x10] sm:$0xff]
      %v334 = vld [vmem:[%s301 + $0x18] sm:$0xff]
      %v335 = vld [vmem:[%s306] sm:$0xff]
      %v336 = vld [vmem:[%s306 + $0x8] sm:$0xff]
      %s337 = smul.u32 %s17, 3
      %s338 = smul.u32 %s337, 4
      %s339 = smul.addr %s338, 4
      %s340 = scalar_lea.vmem %s0, %s339
      %v341 = vld [vmem:[%s340] sm:$0xff]
      %v342 = vld [vmem:[%s340 + $0x8] sm:$0xff]
      %v343 = vld [vmem:[#allocation2] sm:$0xff]
      %v344 = vld [vmem:[#allocation2 + $0x8] sm:$0xff]
      %v345 = vld [vmem:[#allocation3] sm:$0xff]
      %v346 = vld [vmem:[#allocation3 + $0x8] sm:$0xff]
      %349 = vst [vmem:[#allocation1] ss:$2 sm:$0xff] %v341
      %s350 = scalar_lea.vmem [#allocation1], 16
      %351 = vst [vmem:[%s350] ss:$2 sm:$0xff] %v342
      %v352 = vld.sshfl [vmem:[#allocation1] sm:$0xff pattern:$0x75316420]
      %v353 = vld.sshfl [vmem:[#allocation1 + $0x8] sm:$0xff pattern:$0x75316420]
      %v354 = vld.sshfl [vmem:[#allocation1 + $0x10] sm:$0xff pattern:$0x75316420]
      %v355 = vld.sshfl [vmem:[#allocation1 + $0x18] sm:$0xff pattern:$0x75316420]
      %s362 = scalar_lea.vmem [#allocation1], 1
      %363 = vst [vmem:[%s362] ss:$2 sm:$0xff] %v343
      %s364 = scalar_lea.vmem [#allocation1], 17
      %365 = vst [vmem:[%s364] ss:$2 sm:$0xff] %v344
      %v366 = vld.sshfl [vmem:[#allocation1] sm:$0xff pattern:$0x75316420]
      %v367 = vld.sshfl [vmem:[#allocation1 + $0x8] sm:$0xff pattern:$0x75316420]
      %v368 = vld.sshfl [vmem:[#allocation1 + $0x10] sm:$0xff pattern:$0x75316420]
      %v369 = vld.sshfl [vmem:[#allocation1 + $0x18] sm:$0xff pattern:$0x75316420]
      %vm374 = vcmask 1043456
      %v375 = vsel %vm374, %v352, %v366
      %v376 = vsel %vm374, %v353, %v367
      %v377 = vsel %vm374, %v354, %v368
      %v378 = vsel %vm374, %v355, %v369
      %379 = vrot.lane.b32.xlu0 %v375, 17
      %v380 = vpop.permute.xlu0 %379
      %381 = vrot.lane.b32.xlu0 %v376, 17
      %v382 = vpop.permute.xlu0 %381
      %383 = vrot.lane.b32.xlu0 %v377, 17
      %v384 = vpop.permute.xlu0 %383
      %385 = vrot.lane.b32.xlu0 %v378, 17
      %v386 = vpop.permute.xlu0 %385
      %v387 = vlaneseq
      %v388 = vand.u32 %v387, 127
      %vm389 = vcmp.lt.s32.totalorder %v388, 17
      %v390 = vsel %vm389, %v384, %v386
      %v391 = vsel %vm389, %v382, %v384
      %v392 = vsel %vm389, %v380, %v382
      %v393 = vsel %vm389, %v386, %v380
      %v394 = vld [vmem:[%s5] ss:$8 sm:$0xf]
      %v396 = vperm.slane %v394, 0
      %v397 = vperm.slane %v394, 1
      %v398 = vperm.slane %v394, 2
      %v399 = vperm.slane %v394, 3
      %v404 = vmul.f32 %v393, %v396
      %v405 = vmul.f32 %v392, %v397
      %v406 = vmul.f32 %v391, %v398
      %v407 = vmul.f32 %v390, %v399
      %v408 = vpack.c.bf16 %v405, %v404
      %v409 = vpack.c.bf16 %v407, %v406
      %410 = vst [vmem:[#allocation4] sm:$0xff] %v408
      %411 = vst [vmem:[#allocation4 + $0x8] sm:$0xff] %v409
      %412 = vrot.lane.b32.xlu0 %v375, 16
      %v413 = vpop.permute.xlu0 %412
      %414 = vrot.lane.b32.xlu0 %v376, 16
      %v415 = vpop.permute.xlu0 %414
      %416 = vrot.lane.b32.xlu0 %v377, 16
      %v417 = vpop.permute.xlu0 %416
      %418 = vrot.lane.b32.xlu0 %v378, 16
      %v419 = vpop.permute.xlu0 %418
      %vm420 = vcmp.lt.s32.totalorder %v388, 16
      %v421 = vsel %vm420, %v417, %v419
      %v422 = vsel %vm420, %v415, %v417
      %v423 = vsel %vm420, %v413, %v415
      %v424 = vsel %vm420, %v419, %v413
      %s425 = scalar_lea.vmem %s5, 1
      %v426 = vld [vmem:[%s425] ss:$8 sm:$0xf]
      %v428 = vperm.slane %v426, 0
      %v429 = vperm.slane %v426, 1
      %v430 = vperm.slane %v426, 2
      %v431 = vperm.slane %v426, 3
      %v436 = vmul.f32 %v424, %v428
      %v437 = vmul.f32 %v423, %v429
      %v438 = vmul.f32 %v422, %v430
      %v439 = vmul.f32 %v421, %v431
      %v440 = vpack.c.bf16 %v437, %v436
      %v441 = vpack.c.bf16 %v439, %v438
      %442 = vst [vmem:[#allocation4 + $0x10] sm:$0xff] %v440
      %443 = vst [vmem:[#allocation4 + $0x18] sm:$0xff] %v441
      %444 = vrot.lane.b32.xlu0 %v375, 15
      %v445 = vpop.permute.xlu0 %444
      %446 = vrot.lane.b32.xlu0 %v376, 15
      %v447 = vpop.permute.xlu0 %446
      %448 = vrot.lane.b32.xlu0 %v377, 15
      %v449 = vpop.permute.xlu0 %448
      %450 = vrot.lane.b32.xlu0 %v378, 15
      %v451 = vpop.permute.xlu0 %450
      %vm452 = vcmp.lt.s32.totalorder %v388, 15
      %v453 = vsel %vm452, %v449, %v451
      %v454 = vsel %vm452, %v447, %v449
      %v455 = vsel %vm452, %v445, %v447
      %v456 = vsel %vm452, %v451, %v445
      %s457 = scalar_lea.vmem %s5, 2
      %v458 = vld [vmem:[%s457] ss:$8 sm:$0xf]
      %v460 = vperm.slane %v458, 0
      %v461 = vperm.slane %v458, 1
      %v462 = vperm.slane %v458, 2
      %v463 = vperm.slane %v458, 3
      %v468 = vmul.f32 %v456, %v460
      %v469 = vmul.f32 %v455, %v461
      %v470 = vmul.f32 %v454, %v462
      %v471 = vmul.f32 %v453, %v463
      %v472 = vpack.c.bf16 %v469, %v468
      %v473 = vpack.c.bf16 %v471, %v470
      %474 = vst [vmem:[#allocation4 + $0x20] sm:$0xff] %v472
      %475 = vst [vmem:[#allocation4 + $0x28] sm:$0xff] %v473
      %476 = vrot.lane.b32.xlu0 %v375, 1
      %v477 = vpop.permute.xlu0 %476
      %478 = vrot.lane.b32.xlu0 %v376, 1
      %v479 = vpop.permute.xlu0 %478
      %480 = vrot.lane.b32.xlu0 %v377, 1
      %v481 = vpop.permute.xlu0 %480
      %482 = vrot.lane.b32.xlu0 %v378, 1
      %v483 = vpop.permute.xlu0 %482
      %vm484 = vcmp.lt.s32.totalorder %v388, 1
      %v485 = vsel %vm484, %v481, %v483
      %v486 = vsel %vm484, %v479, %v481
      %v487 = vsel %vm484, %v477, %v479
      %v488 = vsel %vm484, %v483, %v477
      %s489 = scalar_lea.vmem %s5, 3
      %v490 = vld [vmem:[%s489] ss:$8 sm:$0xf]
      %v492 = vperm.slane %v490, 0
      %v493 = vperm.slane %v490, 1
      %v494 = vperm.slane %v490, 2
      %v495 = vperm.slane %v490, 3
      %v500 = vmul.f32 %v488, %v492
      %v501 = vmul.f32 %v487, %v493
      %v502 = vmul.f32 %v486, %v494
      %v503 = vmul.f32 %v485, %v495
      %v504 = vpack.c.bf16 %v501, %v500
      %v505 = vpack.c.bf16 %v503, %v502
      %506 = vst [vmem:[#allocation4 + $0x30] sm:$0xff] %v504
      %507 = vst [vmem:[#allocation4 + $0x38] sm:$0xff] %v505
      %v508 = vpack.c.bf16 %v376, %v375
      %v509 = vpack.c.bf16 %v378, %v377
      %510 = vst [vmem:[#allocation4 + $0x40] sm:$0xff] %v508
      %511 = vst [vmem:[#allocation4 + $0x48] sm:$0xff] %v509
      %512 = vrot.lane.b32.xlu0 %v375, 127
      %v513 = vpop.permute.xlu0 %512
      %514 = vrot.lane.b32.xlu0 %v376, 127
      %v515 = vpop.permute.xlu0 %514
      %516 = vrot.lane.b32.xlu0 %v377, 127
      %v517 = vpop.permute.xlu0 %516
      %518 = vrot.lane.b32.xlu0 %v378, 127
      %v519 = vpop.permute.xlu0 %518
      %vm520 = vcmp.lt.s32.totalorder %v388, 127
      %v521 = vsel %vm520, %v517, %v519
      %v522 = vsel %vm520, %v515, %v517
      %v523 = vsel %vm520, %v513, %v515
      %v524 = vsel %vm520, %v519, %v513
      %s525 = scalar_lea.vmem %s5, 5
      %v526 = vld [vmem:[%s525] ss:$8 sm:$0xf]
      %v528 = vperm.slane %v526, 0
      %v529 = vperm.slane %v526, 1
      %v530 = vperm.slane %v526, 2
      %v531 = vperm.slane %v526, 3
      %v536 = vmul.f32 %v523, %v528
      %v537 = vmul.f32 %v522, %v529
      %v538 = vmul.f32 %v521, %v530
      %v539 = vmul.f32 %v524, %v531
      %v540 = vpack.c.bf16 %v537, %v536
      %v541 = vpack.c.bf16 %v539, %v538
      %542 = vst [vmem:[#allocation4 + $0x50] sm:$0xff] %v540
      %543 = vst [vmem:[#allocation4 + $0x58] sm:$0xff] %v541
      %544 = vrot.lane.b32.xlu0 %v375, 113
      %v545 = vpop.permute.xlu0 %544
      %546 = vrot.lane.b32.xlu0 %v376, 113
      %v547 = vpop.permute.xlu0 %546
      %548 = vrot.lane.b32.xlu0 %v377, 113
      %v549 = vpop.permute.xlu0 %548
      %550 = vrot.lane.b32.xlu0 %v378, 113
      %v551 = vpop.permute.xlu0 %550
      %vm552 = vcmp.lt.s32.totalorder %v388, 113
      %v553 = vsel %vm552, %v549, %v551
      %v554 = vsel %vm552, %v547, %v549
      %v555 = vsel %vm552, %v545, %v547
      %v556 = vsel %vm552, %v551, %v545
      %s557 = scalar_lea.vmem %s5, 6
      %v558 = vld [vmem:[%s557] ss:$8 sm:$0xf]
      %v560 = vperm.slane %v558, 0
      %v561 = vperm.slane %v558, 1
      %v562 = vperm.slane %v558, 2
      %v563 = vperm.slane %v558, 3
      %v568 = vmul.f32 %v555, %v560
      %v569 = vmul.f32 %v554, %v561
      %v570 = vmul.f32 %v553, %v562
      %v571 = vmul.f32 %v556, %v563
      %v572 = vpack.c.bf16 %v569, %v568
      %v573 = vpack.c.bf16 %v571, %v570
      %574 = vst [vmem:[#allocation4 + $0x60] sm:$0xff] %v572
      %575 = vst [vmem:[#allocation4 + $0x68] sm:$0xff] %v573
      %576 = vrot.lane.b32.xlu0 %v375, 112
      %v577 = vpop.permute.xlu0 %576
      %578 = vrot.lane.b32.xlu0 %v376, 112
      %v579 = vpop.permute.xlu0 %578
      %580 = vrot.lane.b32.xlu0 %v377, 112
      %v581 = vpop.permute.xlu0 %580
      %582 = vrot.lane.b32.xlu0 %v378, 112
      %v583 = vpop.permute.xlu0 %582
      %vm584 = vcmp.lt.s32.totalorder %v388, 112
      %v585 = vsel %vm584, %v581, %v583
      %v586 = vsel %vm584, %v579, %v581
      %v587 = vsel %vm584, %v577, %v579
      %v588 = vsel %vm584, %v583, %v577
      %s589 = scalar_lea.vmem %s5, 7
      %v590 = vld [vmem:[%s589] ss:$8 sm:$0xf]
      %v592 = vperm.slane %v590, 0
      %v593 = vperm.slane %v590, 1
      %v594 = vperm.slane %v590, 2
      %v595 = vperm.slane %v590, 3
      %v600 = vmul.f32 %v587, %v592
      %v601 = vmul.f32 %v586, %v593
      %v602 = vmul.f32 %v585, %v594
      %v603 = vmul.f32 %v588, %v595
      %v604 = vpack.c.bf16 %v601, %v600
      %v605 = vpack.c.bf16 %v603, %v602
      %606 = vst [vmem:[#allocation4 + $0x70] sm:$0xff] %v604
      %607 = vst [vmem:[#allocation4 + $0x78] sm:$0xff] %v605
      %608 = vrot.lane.b32.xlu0 %v375, 111
      %v609 = vpop.permute.xlu0 %608
      %610 = vrot.lane.b32.xlu0 %v376, 111
      %v611 = vpop.permute.xlu0 %610
      %612 = vrot.lane.b32.xlu0 %v377, 111
      %v613 = vpop.permute.xlu0 %612
      %614 = vrot.lane.b32.xlu0 %v378, 111
      %v615 = vpop.permute.xlu0 %614
      %vm616 = vcmp.lt.s32.totalorder %v388, 111
      %v617 = vsel %vm616, %v613, %v615
      %v618 = vsel %vm616, %v611, %v613
      %v619 = vsel %vm616, %v609, %v611
      %v620 = vsel %vm616, %v615, %v609
      %s621 = scalar_lea.vmem %s5, 32
      %v622 = vld [vmem:[%s621] ss:$8 sm:$0xf]
      %v624 = vperm.slane %v622, 0
      %v625 = vperm.slane %v622, 1
      %v626 = vperm.slane %v622, 2
      %v627 = vperm.slane %v622, 3
      %v632 = vmul.f32 %v619, %v624
      %v633 = vmul.f32 %v618, %v625
      %v634 = vmul.f32 %v617, %v626
      %v635 = vmul.f32 %v620, %v627
      %v636 = vpack.c.bf16 %v633, %v632
      %v637 = vpack.c.bf16 %v635, %v634
      %638 = vst [vmem:[#allocation4 + $0x80] sm:$0xff] %v636
      %639 = vst [vmem:[#allocation4 + $0x88] sm:$0xff] %v637
      %v640 = vld [vmem:[#allocation4] sm:$0xff]
      %v641 = vld [vmem:[#allocation4 + $0x8] sm:$0xff]
      %v642 = vld [vmem:[#allocation4 + $0x10] sm:$0xff]
      %v643 = vld [vmem:[#allocation4 + $0x18] sm:$0xff]
      %v644 = vld [vmem:[#allocation4 + $0x20] sm:$0xff]
      %v645 = vld [vmem:[#allocation4 + $0x28] sm:$0xff]
      %v646 = vld [vmem:[#allocation4 + $0x30] sm:$0xff]
      %v647 = vld [vmem:[#allocation4 + $0x38] sm:$0xff]
      %v648 = vld [vmem:[#allocation4 + $0x40] sm:$0xff]
      %v649 = vld [vmem:[#allocation4 + $0x48] sm:$0xff]
      %v650 = vld [vmem:[#allocation4 + $0x50] sm:$0xff]
      %v651 = vld [vmem:[#allocation4 + $0x58] sm:$0xff]
      %v652 = vld [vmem:[#allocation4 + $0x60] sm:$0xff]
      %v653 = vld [vmem:[#allocation4 + $0x68] sm:$0xff]
      %v654 = vld [vmem:[#allocation4 + $0x70] sm:$0xff]
      %v655 = vld [vmem:[#allocation4 + $0x78] sm:$0xff]
      %v656 = vld [vmem:[#allocation4 + $0x80] sm:$0xff]
      %v657 = vld [vmem:[#allocation4 + $0x88] sm:$0xff]
      %v660 = vunpack.c.l.b16 %v317
      %v661 = vunpack.c.l.b16 %v318
      %v662 = vpack.c.b16 %v661, %v660
      %v681 = vunpack.c.l.b16 %v640
      %v682 = vunpack.c.h.b16 %v640
      %v683 = vunpack.c.l.b16 %v641
      %v684 = vunpack.c.h.b16 %v641
      %v685 = vunpack.c.l.b16 %v642
      %v686 = vunpack.c.h.b16 %v642
      %v687 = vunpack.c.l.b16 %v643
      %v688 = vunpack.c.h.b16 %v643
      %v689 = vunpack.c.l.b16 %v644
      %v690 = vunpack.c.h.b16 %v644
      %v691 = vunpack.c.l.b16 %v645
      %v692 = vunpack.c.h.b16 %v645
      %v693 = vunpack.c.l.b16 %v646
      %v694 = vunpack.c.h.b16 %v646
      %v695 = vunpack.c.l.b16 %v647
      %v696 = vunpack.c.h.b16 %v647
      %v697 = vunpack.c.l.b16 %v648
      %v698 = vunpack.c.h.b16 %v648
      %v699 = vunpack.c.l.b16 %v649
      %v700 = vunpack.c.h.b16 %v649
      %v701 = vunpack.c.l.b16 %v650
      %v702 = vunpack.c.h.b16 %v650
      %v703 = vunpack.c.l.b16 %v651
      %v704 = vunpack.c.h.b16 %v651
      %v705 = vunpack.c.l.b16 %v652
      %v706 = vunpack.c.h.b16 %v652
      %v707 = vunpack.c.l.b16 %v653
      %v708 = vunpack.c.h.b16 %v653
      %v709 = vunpack.c.l.b16 %v654
      %v710 = vunpack.c.h.b16 %v654
      %v711 = vunpack.c.l.b16 %v655
      %v712 = vunpack.c.h.b16 %v655
      %v713 = vunpack.c.l.b16 %v656
      %v714 = vunpack.c.h.b16 %v656
      %v715 = vunpack.c.l.b16 %v657
      %v716 = vunpack.c.h.b16 %v657
      %v717 = vpack.c.b16 %v685, %v681
      %v718 = vpack.c.b16 %v686, %v682
      %v719 = vpack.c.b16 %v687, %v683
      %v720 = vpack.c.b16 %v688, %v684
      %v721 = vpack.c.b16 %v693, %v689
      %v722 = vpack.c.b16 %v694, %v690
      %v723 = vpack.c.b16 %v695, %v691
      %v724 = vpack.c.b16 %v696, %v692
      %v725 = vpack.c.b16 %v701, %v697
      %v726 = vpack.c.b16 %v702, %v698
      %v727 = vpack.c.b16 %v703, %v699
      %v728 = vpack.c.b16 %v704, %v700
      %v729 = vpack.c.b16 %v709, %v705
      %v730 = vpack.c.b16 %v710, %v706
      %v731 = vpack.c.b16 %v711, %v707
      %v732 = vpack.c.b16 %v712, %v708
      %v733 = vpack.c.b16 %v713, %v713
      %v734 = vpack.c.b16 %v714, %v714
      %v735 = vpack.c.b16 %v715, %v715
      %v736 = vpack.c.b16 %v716, %v716
      %vm753 = vcmask 588800
      %v755 = vsel %vm753, %v662, 0
      %v758 = vsel %vm374, %v733, 0
      %v761 = vsel %vm374, %v734, 0
      %v764 = vsel %vm374, %v735, 0
      %v767 = vsel %vm374, %v736, 0
      %769 = vmatpush.bf16.msra.mxu0 0
      %770 = vmatpush.bf16.msra.mxu0 0
      %771 = vmatpush.bf16.msra.mxu0 0
      %772 = vmatpush.bf16.msra.mxu0 %v758
      %773 = vmatpush.bf16.msra.mxu0 %v729
      %774 = vmatpush.bf16.msra.mxu0 %v725
      %775 = vmatpush.bf16.msra.mxu0 %v721
      %776 = vmatpush.bf16.msra.mxu0 %v717
      %777 = vmatmul.bf16.gmra.mxu0 %v755
      %v778 = vpop.f32.mrf.mxu0
      %v779 = vadd.f32 %v324, %v778
      %v780 = vpop.f32.mrf.mxu0
      %v781 = vadd.f32 %v329, %v780
      %782 = vdwg.mxu0
      %783 = vmatpush.bf16.msra.mxu0 0
      %784 = vmatpush.bf16.msra.mxu0 0
      %785 = vmatpush.bf16.msra.mxu0 0
      %786 = vmatpush.bf16.msra.mxu0 %v761
      %787 = vmatpush.bf16.msra.mxu0 %v730
      %788 = vmatpush.bf16.msra.mxu0 %v726
      %789 = vmatpush.bf16.msra.mxu0 %v722
      %790 = vmatpush.bf16.msra.mxu0 %v718
      %791 = vmatmul.bf16.gmra.mxu0 %v755
      %v792 = vpop.f32.mrf.mxu0
      %v793 = vadd.f32 %v324, %v792
      %v794 = vpop.f32.mrf.mxu0
      %v795 = vadd.f32 %v329, %v794
      %796 = vdwg.mxu0
      %797 = vmatpush.bf16.msra.mxu0 0
      %798 = vmatpush.bf16.msra.mxu0 0
      %799 = vmatpush.bf16.msra.mxu0 0
      %800 = vmatpush.bf16.msra.mxu0 %v764
      %801 = vmatpush.bf16.msra.mxu0 %v731
      %802 = vmatpush.bf16.msra.mxu0 %v727
      %803 = vmatpush.bf16.msra.mxu0 %v723
      %804 = vmatpush.bf16.msra.mxu0 %v719
      %805 = vmatmul.bf16.gmra.mxu0 %v755
      %v806 = vpop.f32.mrf.mxu0
      %v807 = vadd.f32 %v324, %v806
      %v808 = vpop.f32.mrf.mxu0
      %v809 = vadd.f32 %v329, %v808
      %810 = vdwg.mxu0
      %811 = vmatpush.bf16.msra.mxu0 0
      %812 = vmatpush.bf16.msra.mxu0 0
      %813 = vmatpush.bf16.msra.mxu0 0
      %814 = vmatpush.bf16.msra.mxu0 %v767
      %815 = vmatpush.bf16.msra.mxu0 %v732
      %816 = vmatpush.bf16.msra.mxu0 %v728
      %817 = vmatpush.bf16.msra.mxu0 %v724
      %818 = vmatpush.bf16.msra.mxu0 %v720
      %819 = vmatmul.bf16.gmra.mxu0 %v755
      %v820 = vpop.f32.mrf.mxu0
      %v821 = vadd.f32 %v324, %v820
      %v822 = vpop.f32.mrf.mxu0
      %v823 = vadd.f32 %v329, %v822
      %824 = vdwg.mxu0
      %827 = vst [vmem:[#allocation1] ss:$2 sm:$0xff] %v345
      %s828 = scalar_lea.vmem [#allocation1], 16
      %829 = vst [vmem:[%s828] ss:$2 sm:$0xff] %v346
      %v830 = vld.sshfl [vmem:[#allocation1] sm:$0xff pattern:$0x75316420]
      %v831 = vld.sshfl [vmem:[#allocation1 + $0x8] sm:$0xff pattern:$0x75316420]
      %v832 = vld.sshfl [vmem:[#allocation1 + $0x10] sm:$0xff pattern:$0x75316420]
      %v833 = vld.sshfl [vmem:[#allocation1 + $0x18] sm:$0xff pattern:$0x75316420]
      %s838 = scalar_lea.vmem [#allocation1], 1
      %839 = vst [vmem:[%s838] ss:$2 sm:$0xff] %v345
      %s840 = scalar_lea.vmem [#allocation1], 17
      %841 = vst [vmem:[%s840] ss:$2 sm:$0xff] %v346
      %v842 = vld.sshfl [vmem:[#allocation1] sm:$0xff pattern:$0x75316420]
      %v843 = vld.sshfl [vmem:[#allocation1 + $0x8] sm:$0xff pattern:$0x75316420]
      %v844 = vld.sshfl [vmem:[#allocation1 + $0x10] sm:$0xff pattern:$0x75316420]
      %v845 = vld.sshfl [vmem:[#allocation1 + $0x18] sm:$0xff pattern:$0x75316420]
      %v850 = vsel %vm374, %v830, %v842
      %v851 = vsel %vm374, %v831, %v843
      %v852 = vsel %vm374, %v832, %v844
      %v853 = vsel %vm374, %v833, %v845
      %v854 = vmul.f32 %v331, %v850
      %v855 = vmul.f32 %v332, %v851
      %v856 = vmul.f32 %v333, %v852
      %v857 = vmul.f32 %v334, %v853
      %v858 = vadd.f32 %v779, %v854
      %v859 = vadd.f32 %v793, %v855
      %v860 = vadd.f32 %v807, %v856
      %v861 = vadd.f32 %v821, %v857
      %v862 = vxor.u32 %v858, 2147483648
      %v863 = vxor.u32 %v859, 2147483648
      %v864 = vxor.u32 %v860, 2147483648
      %v865 = vxor.u32 %v861, 2147483648
      %v866 = vmul.f32 %v862, 1.442695
      %v867 = vpow.pop %v866
      %v868 = vmul.f32 %v863, 1.442695
      %v869 = vpow.pop %v868
      %v870 = vmul.f32 %v864, 1.442695
      %v871 = vpow.pop %v870
      %v872 = vmul.f32 %v865, 1.442695
      %v873 = vpow.pop %v872
      %v874 = vadd.f32 %v867, 1.0
      %v875 = vadd.f32 %v869, 1.0
      %v876 = vadd.f32 %v871, 1.0
      %v877 = vadd.f32 %v873, 1.0
      %v878 = vrcp.pop %v874
      %v879 = vmul.f32 %v874, %v878
      %v880 = vsub.f32 1.0, %v879
      %v881 = vmul.f32 %v878, %v880
      %v882 = vadd.f32 %v878, %v881
      %vm883 = vweird.f32 %v874
      %vm884 = vweird.f32 %v878
      %vm885 = vmor %vm883, %vm884
      %v886 = vsel %vm885, %v878, %v882
      %v887 = vand.u32 2147483647, %v874
      %vm888 = vcmp.eq.f32.partialorder %v887, 8.507059e+37
      %v889 = vand.u32 %v874, 2147483648
      %v890 = vor.u32 1.1754944e-38, %v889
      %v891 = vsel %vm888, %v890, %v886
      %v892 = vmul.f32 1.0, %v891
      %v893 = vrcp.pop %v875
      %v894 = vmul.f32 %v875, %v893
      %v895 = vsub.f32 1.0, %v894
      %v896 = vmul.f32 %v893, %v895
      %v897 = vadd.f32 %v893, %v896
      %vm898 = vweird.f32 %v875
      %vm899 = vweird.f32 %v893
      %vm900 = vmor %vm898, %vm899
      %v901 = vsel %vm900, %v893, %v897
      %v902 = vand.u32 2147483647, %v875
      %vm903 = vcmp.eq.f32.partialorder %v902, 8.507059e+37
      %v904 = vand.u32 %v875, 2147483648
      %v905 = vor.u32 1.1754944e-38, %v904
      %v906 = vsel %vm903, %v905, %v901
      %v907 = vmul.f32 1.0, %v906
      %v908 = vrcp.pop %v876
      %v909 = vmul.f32 %v876, %v908
      %v910 = vsub.f32 1.0, %v909
      %v911 = vmul.f32 %v908, %v910
      %v912 = vadd.f32 %v908, %v911
      %vm913 = vweird.f32 %v876
      %vm914 = vweird.f32 %v908
      %vm915 = vmor %vm913, %vm914
      %v916 = vsel %vm915, %v908, %v912
      %v917 = vand.u32 2147483647, %v876
      %vm918 = vcmp.eq.f32.partialorder %v917, 8.507059e+37
      %v919 = vand.u32 %v876, 2147483648
      %v920 = vor.u32 1.1754944e-38, %v919
      %v921 = vsel %vm918, %v920, %v916
      %v922 = vmul.f32 1.0, %v921
      %v923 = vrcp.pop %v877
      %v924 = vmul.f32 %v877, %v923
      %v925 = vsub.f32 1.0, %v924
      %v926 = vmul.f32 %v923, %v925
      %v927 = vadd.f32 %v923, %v926
      %vm928 = vweird.f32 %v877
      %vm929 = vweird.f32 %v923
      %vm930 = vmor %vm928, %vm929
      %v931 = vsel %vm930, %v923, %v927
      %v932 = vand.u32 2147483647, %v877
      %vm933 = vcmp.eq.f32.partialorder %v932, 8.507059e+37
      %v934 = vand.u32 %v877, 2147483648
      %v935 = vor.u32 1.1754944e-38, %v934
      %v936 = vsel %vm933, %v935, %v931
      %v937 = vmul.f32 1.0, %v936
      %s938 = scalar_lea.vmem [#allocation1], 1
      %939 = vst [vmem:[%s938] ss:$2 sm:$0xff] %v345
      %s940 = scalar_lea.vmem [#allocation1], 17
      %941 = vst [vmem:[%s940] ss:$2 sm:$0xff] %v346
      %v942 = vld.sshfl [vmem:[#allocation1] sm:$0xff pattern:$0x75316420]
      %v943 = vld.sshfl [vmem:[#allocation1 + $0x8] sm:$0xff pattern:$0x75316420]
      %v944 = vld.sshfl [vmem:[#allocation1 + $0x10] sm:$0xff pattern:$0x75316420]
      %v945 = vld.sshfl [vmem:[#allocation1 + $0x18] sm:$0xff pattern:$0x75316420]
      %v950 = vmul.f32 %v892, %v942
      %v951 = vmul.f32 %v907, %v943
      %v952 = vmul.f32 %v922, %v944
      %v953 = vmul.f32 %v937, %v945
      %v954 = vtanh.pop %v781
      %v955 = vtanh.pop %v795
      %v956 = vtanh.pop %v809
      %v957 = vtanh.pop %v823
      %v958 = vmul.f32 %v892, %v954
      %v959 = vmul.f32 %v907, %v955
      %v960 = vmul.f32 %v922, %v956
      %v961 = vmul.f32 %v937, %v957
      %v966 = vrot.slane %v958, 4
      %v967 = vrot.slane %v959, 4
      %v968 = vrot.slane %v960, 4
      %v969 = vrot.slane %v961, 4
      %v974 = vadd.f32 %v950, %v966
      %v975 = vadd.f32 %v951, %v967
      %v976 = vadd.f32 %v952, %v968
      %v977 = vadd.f32 %v953, %v969
      %982 = vst.sshfl [vmem:[#allocation1] sm:$0xff pattern:$0x75316420] %v974
      %983 = vst.sshfl [vmem:[#allocation1 + $0x8] sm:$0xff pattern:$0x75316420] %v975
      %984 = vst.sshfl [vmem:[#allocation1 + $0x10] sm:$0xff pattern:$0x75316420] %v976
      %985 = vst.sshfl [vmem:[#allocation1 + $0x18] sm:$0xff pattern:$0x75316420] %v977
      %s986 = scalar_lea.vmem [#allocation1], 1
      %v987 = vld [vmem:[%s986] ss:$2 sm:$0xff]
      %s988 = scalar_lea.vmem [#allocation1], 17
      %v989 = vld [vmem:[%s988] ss:$2 sm:$0xff]
      %v992 = vmul.f32 %v335, %v987
      %v993 = vmul.f32 %v336, %v989
      %s996 = scalar_lea.vmem [#allocation1], 1
      %997 = vst [vmem:[%s996] ss:$2 sm:$0xff] %v992
      %s998 = scalar_lea.vmem [#allocation1], 17
      %999 = vst [vmem:[%s998] ss:$2 sm:$0xff] %v993
      %v1000 = vld.sshfl [vmem:[#allocation1] sm:$0xff pattern:$0x75316420]
      %v1001 = vld.sshfl [vmem:[#allocation1 + $0x8] sm:$0xff pattern:$0x75316420]
      %v1002 = vld.sshfl [vmem:[#allocation1 + $0x10] sm:$0xff pattern:$0x75316420]
      %v1003 = vld.sshfl [vmem:[#allocation1 + $0x18] sm:$0xff pattern:$0x75316420]
      %v1008 = vadd.f32 %v781, %v1000
      %v1009 = vadd.f32 %v795, %v1001
      %v1010 = vadd.f32 %v809, %v1002
      %v1011 = vadd.f32 %v823, %v1003
      %v1012 = vxor.u32 %v1008, 2147483648
      %v1013 = vxor.u32 %v1009, 2147483648
      %v1014 = vxor.u32 %v1010, 2147483648
      %v1015 = vxor.u32 %v1011, 2147483648
      %v1016 = vmul.f32 %v1012, 1.442695
      %v1017 = vpow.pop %v1016
      %v1018 = vmul.f32 %v1013, 1.442695
      %v1019 = vpow.pop %v1018
      %v1020 = vmul.f32 %v1014, 1.442695
      %v1021 = vpow.pop %v1020
      %v1022 = vmul.f32 %v1015, 1.442695
      %v1023 = vpow.pop %v1022
      %v1024 = vadd.f32 %v1017, 1.0
      %v1025 = vadd.f32 %v1019, 1.0
      %v1026 = vadd.f32 %v1021, 1.0
      %v1027 = vadd.f32 %v1023, 1.0
      %v1028 = vrcp.pop %v1024
      %v1029 = vmul.f32 %v1024, %v1028
      %v1030 = vsub.f32 1.0, %v1029
      %v1031 = vmul.f32 %v1028, %v1030
      %v1032 = vadd.f32 %v1028, %v1031
      %vm1033 = vweird.f32 %v1024
      %vm1034 = vweird.f32 %v1028
      %vm1035 = vmor %vm1033, %vm1034
      %v1036 = vsel %vm1035, %v1028, %v1032
      %v1037 = vand.u32 2147483647, %v1024
      %vm1038 = vcmp.eq.f32.partialorder %v1037, 8.507059e+37
      %v1039 = vand.u32 %v1024, 2147483648
      %v1040 = vor.u32 1.1754944e-38, %v1039
      %v1041 = vsel %vm1038, %v1040, %v1036
      %v1042 = vmul.f32 1.0, %v1041
      %v1043 = vrcp.pop %v1025
      %v1044 = vmul.f32 %v1025, %v1043
      %v1045 = vsub.f32 1.0, %v1044
      %v1046 = vmul.f32 %v1043, %v1045
      %v1047 = vadd.f32 %v1043, %v1046
      %vm1048 = vweird.f32 %v1025
      %vm1049 = vweird.f32 %v1043
      %vm1050 = vmor %vm1048, %vm1049
      %v1051 = vsel %vm1050, %v1043, %v1047
      %v1052 = vand.u32 2147483647, %v1025
      %vm1053 = vcmp.eq.f32.partialorder %v1052, 8.507059e+37
      %v1054 = vand.u32 %v1025, 2147483648
      %v1055 = vor.u32 1.1754944e-38, %v1054
      %v1056 = vsel %vm1053, %v1055, %v1051
      %v1057 = vmul.f32 1.0, %v1056
      %v1058 = vrcp.pop %v1026
      %v1059 = vmul.f32 %v1026, %v1058
      %v1060 = vsub.f32 1.0, %v1059
      %v1061 = vmul.f32 %v1058, %v1060
      %v1062 = vadd.f32 %v1058, %v1061
      %vm1063 = vweird.f32 %v1026
      %vm1064 = vweird.f32 %v1058
      %vm1065 = vmor %vm1063, %vm1064
      %v1066 = vsel %vm1065, %v1058, %v1062
      %v1067 = vand.u32 2147483647, %v1026
      %vm1068 = vcmp.eq.f32.partialorder %v1067, 8.507059e+37
      %v1069 = vand.u32 %v1026, 2147483648
      %v1070 = vor.u32 1.1754944e-38, %v1069
      %v1071 = vsel %vm1068, %v1070, %v1066
      %v1072 = vmul.f32 1.0, %v1071
      %v1073 = vrcp.pop %v1027
      %v1074 = vmul.f32 %v1027, %v1073
      %v1075 = vsub.f32 1.0, %v1074
      %v1076 = vmul.f32 %v1073, %v1075
      %v1077 = vadd.f32 %v1073, %v1076
      %vm1078 = vweird.f32 %v1027
      %vm1079 = vweird.f32 %v1073
      %vm1080 = vmor %vm1078, %vm1079
      %v1081 = vsel %vm1080, %v1073, %v1077
      %v1082 = vand.u32 2147483647, %v1027
      %vm1083 = vcmp.eq.f32.partialorder %v1082, 8.507059e+37
      %v1084 = vand.u32 %v1027, 2147483648
      %v1085 = vor.u32 1.1754944e-38, %v1084
      %v1086 = vsel %vm1083, %v1085, %v1081
      %v1087 = vmul.f32 1.0, %v1086
      %v1088 = vtanh.pop %v974
      %v1089 = vtanh.pop %v975
      %v1090 = vtanh.pop %v976
      %v1091 = vtanh.pop %v977
      %v1092 = vmul.f32 %v1042, %v1088
      %v1093 = vmul.f32 %v1057, %v1089
      %v1094 = vmul.f32 %v1072, %v1090
      %v1095 = vmul.f32 %v1087, %v1091
      %1100 = vst.sshfl [vmem:[#allocation1] sm:$0xff pattern:$0x75316420] %v1092
      %1101 = vst.sshfl [vmem:[#allocation1 + $0x8] sm:$0xff pattern:$0x75316420] %v1093
      %1102 = vst.sshfl [vmem:[#allocation1 + $0x10] sm:$0xff pattern:$0x75316420] %v1094
      %1103 = vst.sshfl [vmem:[#allocation1 + $0x18] sm:$0xff pattern:$0x75316420] %v1095
      %s1104 = scalar_lea.vmem [#allocation1], 1
      %v1105 = vld [vmem:[%s1104] ss:$2 sm:$0xff]
      %s1106 = scalar_lea.vmem [#allocation1], 17
      %v1107 = vld [vmem:[%s1106] ss:$2 sm:$0xff]
      %1110 = vst [vmem:[#allocation2] sm:$0xff] %v1105
      %1111 = vst [vmem:[#allocation2 + $0x8] sm:$0xff] %v1107
      %1112 = vst.sshfl [vmem:[#allocation1] sm:$0xff pattern:$0x75316420] %v974
      %1113 = vst.sshfl [vmem:[#allocation1 + $0x8] sm:$0xff pattern:$0x75316420] %v975
      %1114 = vst.sshfl [vmem:[#allocation1 + $0x10] sm:$0xff pattern:$0x75316420] %v976
      %1115 = vst.sshfl [vmem:[#allocation1 + $0x18] sm:$0xff pattern:$0x75316420] %v977
      %s1116 = scalar_lea.vmem [#allocation1], 1
      %v1117 = vld [vmem:[%s1116] ss:$2 sm:$0xff]
      %s1118 = scalar_lea.vmem [#allocation1], 17
      %v1119 = vld [vmem:[%s1118] ss:$2 sm:$0xff]
      %1122 = vst [vmem:[#allocation3] sm:$0xff] %v1117
      %1123 = vst [vmem:[#allocation3 + $0x8] sm:$0xff] %v1119
      %1124 = vst.sshfl [vmem:[#allocation1] sm:$0xff pattern:$0x75316420] %v1092
      %1125 = vst.sshfl [vmem:[#allocation1 + $0x8] sm:$0xff pattern:$0x75316420] %v1093
      %1126 = vst.sshfl [vmem:[#allocation1 + $0x10] sm:$0xff pattern:$0x75316420] %v1094
      %1127 = vst.sshfl [vmem:[#allocation1 + $0x18] sm:$0xff pattern:$0x75316420] %v1095
      %s1128 = scalar_lea.vmem [#allocation1], 1
      %v1129 = vld [vmem:[%s1128] ss:$2 sm:$0xff]
      %s1130 = scalar_lea.vmem [#allocation1], 17
      %v1131 = vld [vmem:[%s1130] ss:$2 sm:$0xff]
      %1134 = vst [vmem:[%s311] sm:$0xff] %v1129
      %1135 = vst [vmem:[%s311 + $0x8] sm:$0xff] %v1131
      %s1136 = ssub.s32 1, %s17
      %s1137 = smul.u32 %s17, 2
      %s1138 = sadd.s32 %s1136, %s1137
      %s1139 = smul.u32 %s1138, 4
      %s1140 = smul.addr %s1139, 4
      %s1141 = scalar_lea.vmem %s0, %s1140
      %v1142 = vld [vmem:[%s1141] sm:$0xff]
      %v1143 = vld [vmem:[%s1141 + $0x8] sm:$0xff]
      %v1144 = vld [vmem:[#allocation2] sm:$0xff]
      %v1145 = vld [vmem:[#allocation2 + $0x8] sm:$0xff]
      %v1146 = vld [vmem:[#allocation3] sm:$0xff]
      %v1147 = vld [vmem:[#allocation3 + $0x8] sm:$0xff]
      %1150 = vst [vmem:[#allocation1] ss:$2 sm:$0xff] %v1142
      %s1151 = scalar_lea.vmem [#allocation1], 16
      %1152 = vst [vmem:[%s1151] ss:$2 sm:$0xff] %v1143
      %v1153 = vld.sshfl [vmem:[#allocation1] sm:$0xff pattern:$0x75316420]
      %v1154 = vld.sshfl [vmem:[#allocation1 + $0x8] sm:$0xff pattern:$0x75316420]
      %v1155 = vld.sshfl [vmem:[#allocation1 + $0x10] sm:$0xff pattern:$0x75316420]
      %v1156 = vld.sshfl [vmem:[#allocation1 + $0x18] sm:$0xff pattern:$0x75316420]
      %s1163 = scalar_lea.vmem [#allocation1], 1
      %1164 = vst [vmem:[%s1163] ss:$2 sm:$0xff] %v1144
      %s1165 = scalar_lea.vmem [#allocation1], 17
      %1166 = vst [vmem:[%s1165] ss:$2 sm:$0xff] %v1145
      %v1167 = vld.sshfl [vmem:[#allocation1] sm:$0xff pattern:$0x75316420]
      %v1168 = vld.sshfl [vmem:[#allocation1 + $0x8] sm:$0xff pattern:$0x75316420]
      %v1169 = vld.sshfl [vmem:[#allocation1 + $0x10] sm:$0xff pattern:$0x75316420]
      %v1170 = vld.sshfl [vmem:[#allocation1 + $0x18] sm:$0xff pattern:$0x75316420]
      %v1175 = vsel %vm374, %v1153, %v1167
      %v1176 = vsel %vm374, %v1154, %v1168
      %v1177 = vsel %vm374, %v1155, %v1169
      %v1178 = vsel %vm374, %v1156, %v1170
      %1179 = vrot.lane.b32.xlu0 %v1175, 17
      %v1180 = vpop.permute.xlu0 %1179
      %1181 = vrot.lane.b32.xlu0 %v1176, 17
      %v1182 = vpop.permute.xlu0 %1181
      %1183 = vrot.lane.b32.xlu0 %v1177, 17
      %v1184 = vpop.permute.xlu0 %1183
      %1185 = vrot.lane.b32.xlu0 %v1178, 17
      %v1186 = vpop.permute.xlu0 %1185
      %v1187 = vsel %vm389, %v1184, %v1186
      %v1188 = vsel %vm389, %v1182, %v1184
      %v1189 = vsel %vm389, %v1180, %v1182
      %v1190 = vsel %vm389, %v1186, %v1180
      %v1191 = vld [vmem:[%s5] ss:$8 sm:$0xf]
      %v1193 = vperm.slane %v1191, 0
      %v1194 = vperm.slane %v1191, 1
      %v1195 = vperm.slane %v1191, 2
      %v1196 = vperm.slane %v1191, 3
      %v1201 = vmul.f32 %v1190, %v1193
      %v1202 = vmul.f32 %v1189, %v1194
      %v1203 = vmul.f32 %v1188, %v1195
      %v1204 = vmul.f32 %v1187, %v1196
      %v1205 = vpack.c.bf16 %v1202, %v1201
      %v1206 = vpack.c.bf16 %v1204, %v1203
      %1207 = vst [vmem:[#allocation4] sm:$0xff] %v1205
      %1208 = vst [vmem:[#allocation4 + $0x8] sm:$0xff] %v1206
      %1209 = vrot.lane.b32.xlu0 %v1175, 16
      %v1210 = vpop.permute.xlu0 %1209
      %1211 = vrot.lane.b32.xlu0 %v1176, 16
      %v1212 = vpop.permute.xlu0 %1211
      %1213 = vrot.lane.b32.xlu0 %v1177, 16
      %v1214 = vpop.permute.xlu0 %1213
      %1215 = vrot.lane.b32.xlu0 %v1178, 16
      %v1216 = vpop.permute.xlu0 %1215
      %v1217 = vsel %vm420, %v1214, %v1216
      %v1218 = vsel %vm420, %v1212, %v1214
      %v1219 = vsel %vm420, %v1210, %v1212
      %v1220 = vsel %vm420, %v1216, %v1210
      %v1221 = vld [vmem:[%s425] ss:$8 sm:$0xf]
      %v1223 = vperm.slane %v1221, 0
      %v1224 = vperm.slane %v1221, 1
      %v1225 = vperm.slane %v1221, 2
      %v1226 = vperm.slane %v1221, 3
      %v1231 = vmul.f32 %v1220, %v1223
      %v1232 = vmul.f32 %v1219, %v1224
      %v1233 = vmul.f32 %v1218, %v1225
      %v1234 = vmul.f32 %v1217, %v1226
      %v1235 = vpack.c.bf16 %v1232, %v1231
      %v1236 = vpack.c.bf16 %v1234, %v1233
      %1237 = vst [vmem:[#allocation4 + $0x10] sm:$0xff] %v1235
      %1238 = vst [vmem:[#allocation4 + $0x18] sm:$0xff] %v1236
      %1239 = vrot.lane.b32.xlu0 %v1175, 15
      %v1240 = vpop.permute.xlu0 %1239
      %1241 = vrot.lane.b32.xlu0 %v1176, 15
      %v1242 = vpop.permute.xlu0 %1241
      %1243 = vrot.lane.b32.xlu0 %v1177, 15
      %v1244 = vpop.permute.xlu0 %1243
      %1245 = vrot.lane.b32.xlu0 %v1178, 15
      %v1246 = vpop.permute.xlu0 %1245
      %v1247 = vsel %vm452, %v1244, %v1246
      %v1248 = vsel %vm452, %v1242, %v1244
      %v1249 = vsel %vm452, %v1240, %v1242
      %v1250 = vsel %vm452, %v1246, %v1240
      %v1251 = vld [vmem:[%s457] ss:$8 sm:$0xf]
      %v1253 = vperm.slane %v1251, 0
      %v1254 = vperm.slane %v1251, 1
      %v1255 = vperm.slane %v1251, 2
      %v1256 = vperm.slane %v1251, 3
      %v1261 = vmul.f32 %v1250, %v1253
      %v1262 = vmul.f32 %v1249, %v1254
      %v1263 = vmul.f32 %v1248, %v1255
      %v1264 = vmul.f32 %v1247, %v1256
      %v1265 = vpack.c.bf16 %v1262, %v1261
      %v1266 = vpack.c.bf16 %v1264, %v1263
      %1267 = vst [vmem:[#allocation4 + $0x20] sm:$0xff] %v1265
      %1268 = vst [vmem:[#allocation4 + $0x28] sm:$0xff] %v1266
      %1269 = vrot.lane.b32.xlu0 %v1175, 1
      %v1270 = vpop.permute.xlu0 %1269
      %1271 = vrot.lane.b32.xlu0 %v1176, 1
      %v1272 = vpop.permute.xlu0 %1271
      %1273 = vrot.lane.b32.xlu0 %v1177, 1
      %v1274 = vpop.permute.xlu0 %1273
      %1275 = vrot.lane.b32.xlu0 %v1178, 1
      %v1276 = vpop.permute.xlu0 %1275
      %v1277 = vsel %vm484, %v1274, %v1276
      %v1278 = vsel %vm484, %v1272, %v1274
      %v1279 = vsel %vm484, %v1270, %v1272
      %v1280 = vsel %vm484, %v1276, %v1270
      %v1281 = vld [vmem:[%s489] ss:$8 sm:$0xf]
      %v1283 = vperm.slane %v1281, 0
      %v1284 = vperm.slane %v1281, 1
      %v1285 = vperm.slane %v1281, 2
      %v1286 = vperm.slane %v1281, 3
      %v1291 = vmul.f32 %v1280, %v1283
      %v1292 = vmul.f32 %v1279, %v1284
      %v1293 = vmul.f32 %v1278, %v1285
      %v1294 = vmul.f32 %v1277, %v1286
      %v1295 = vpack.c.bf16 %v1292, %v1291
      %v1296 = vpack.c.bf16 %v1294, %v1293
      %1297 = vst [vmem:[#allocation4 + $0x30] sm:$0xff] %v1295
      %1298 = vst [vmem:[#allocation4 + $0x38] sm:$0xff] %v1296
      %v1299 = vpack.c.bf16 %v1176, %v1175
      %v1300 = vpack.c.bf16 %v1178, %v1177
      %1301 = vst [vmem:[#allocation4 + $0x40] sm:$0xff] %v1299
      %1302 = vst [vmem:[#allocation4 + $0x48] sm:$0xff] %v1300
      %1303 = vrot.lane.b32.xlu0 %v1175, 127
      %v1304 = vpop.permute.xlu0 %1303
      %1305 = vrot.lane.b32.xlu0 %v1176, 127
      %v1306 = vpop.permute.xlu0 %1305
      %1307 = vrot.lane.b32.xlu0 %v1177, 127
      %v1308 = vpop.permute.xlu0 %1307
      %1309 = vrot.lane.b32.xlu0 %v1178, 127
      %v1310 = vpop.permute.xlu0 %1309
      %v1311 = vsel %vm520, %v1308, %v1310
      %v1312 = vsel %vm520, %v1306, %v1308
      %v1313 = vsel %vm520, %v1304, %v1306
      %v1314 = vsel %vm520, %v1310, %v1304
      %v1315 = vld [vmem:[%s525] ss:$8 sm:$0xf]
      %v1317 = vperm.slane %v1315, 0
      %v1318 = vperm.slane %v1315, 1
      %v1319 = vperm.slane %v1315, 2
      %v1320 = vperm.slane %v1315, 3
      %v1325 = vmul.f32 %v1313, %v1317
      %v1326 = vmul.f32 %v1312, %v1318
      %v1327 = vmul.f32 %v1311, %v1319
      %v1328 = vmul.f32 %v1314, %v1320
      %v1329 = vpack.c.bf16 %v1326, %v1325
      %v1330 = vpack.c.bf16 %v1328, %v1327
      %1331 = vst [vmem:[#allocation4 + $0x50] sm:$0xff] %v1329
      %1332 = vst [vmem:[#allocation4 + $0x58] sm:$0xff] %v1330
      %1333 = vrot.lane.b32.xlu0 %v1175, 113
      %v1334 = vpop.permute.xlu0 %1333
      %1335 = vrot.lane.b32.xlu0 %v1176, 113
      %v1336 = vpop.permute.xlu0 %1335
      %1337 = vrot.lane.b32.xlu0 %v1177, 113
      %v1338 = vpop.permute.xlu0 %1337
      %1339 = vrot.lane.b32.xlu0 %v1178, 113
      %v1340 = vpop.permute.xlu0 %1339
      %v1341 = vsel %vm552, %v1338, %v1340
      %v1342 = vsel %vm552, %v1336, %v1338
      %v1343 = vsel %vm552, %v1334, %v1336
      %v1344 = vsel %vm552, %v1340, %v1334
      %v1345 = vld [vmem:[%s557] ss:$8 sm:$0xf]
      %v1347 = vperm.slane %v1345, 0
      %v1348 = vperm.slane %v1345, 1
      %v1349 = vperm.slane %v1345, 2
      %v1350 = vperm.slane %v1345, 3
      %v1355 = vmul.f32 %v1343, %v1347
      %v1356 = vmul.f32 %v1342, %v1348
      %v1357 = vmul.f32 %v1341, %v1349
      %v1358 = vmul.f32 %v1344, %v1350
      %v1359 = vpack.c.bf16 %v1356, %v1355
      %v1360 = vpack.c.bf16 %v1358, %v1357
      %1361 = vst [vmem:[#allocation4 + $0x60] sm:$0xff] %v1359
      %1362 = vst [vmem:[#allocation4 + $0x68] sm:$0xff] %v1360
      %1363 = vrot.lane.b32.xlu0 %v1175, 112
      %v1364 = vpop.permute.xlu0 %1363
      %1365 = vrot.lane.b32.xlu0 %v1176, 112
      %v1366 = vpop.permute.xlu0 %1365
      %1367 = vrot.lane.b32.xlu0 %v1177, 112
      %v1368 = vpop.permute.xlu0 %1367
      %1369 = vrot.lane.b32.xlu0 %v1178, 112
      %v1370 = vpop.permute.xlu0 %1369
      %v1371 = vsel %vm584, %v1368, %v1370
      %v1372 = vsel %vm584, %v1366, %v1368
      %v1373 = vsel %vm584, %v1364, %v1366
      %v1374 = vsel %vm584, %v1370, %v1364
      %v1375 = vld [vmem:[%s589] ss:$8 sm:$0xf]
      %v1377 = vperm.slane %v1375, 0
      %v1378 = vperm.slane %v1375, 1
      %v1379 = vperm.slane %v1375, 2
      %v1380 = vperm.slane %v1375, 3
      %v1385 = vmul.f32 %v1373, %v1377
      %v1386 = vmul.f32 %v1372, %v1378
      %v1387 = vmul.f32 %v1371, %v1379
      %v1388 = vmul.f32 %v1374, %v1380
      %v1389 = vpack.c.bf16 %v1386, %v1385
      %v1390 = vpack.c.bf16 %v1388, %v1387
      %1391 = vst [vmem:[#allocation4 + $0x70] sm:$0xff] %v1389
      %1392 = vst [vmem:[#allocation4 + $0x78] sm:$0xff] %v1390
      %1393 = vrot.lane.b32.xlu0 %v1175, 111
      %v1394 = vpop.permute.xlu0 %1393
      %1395 = vrot.lane.b32.xlu0 %v1176, 111
      %v1396 = vpop.permute.xlu0 %1395
      %1397 = vrot.lane.b32.xlu0 %v1177, 111
      %v1398 = vpop.permute.xlu0 %1397
      %1399 = vrot.lane.b32.xlu0 %v1178, 111
      %v1400 = vpop.permute.xlu0 %1399
      %v1401 = vsel %vm616, %v1398, %v1400
      %v1402 = vsel %vm616, %v1396, %v1398
      %v1403 = vsel %vm616, %v1394, %v1396
      %v1404 = vsel %vm616, %v1400, %v1394
      %v1405 = vld [vmem:[%s621] ss:$8 sm:$0xf]
      %v1407 = vperm.slane %v1405, 0
      %v1408 = vperm.slane %v1405, 1
      %v1409 = vperm.slane %v1405, 2
      %v1410 = vperm.slane %v1405, 3
      %v1415 = vmul.f32 %v1403, %v1407
      %v1416 = vmul.f32 %v1402, %v1408
      %v1417 = vmul.f32 %v1401, %v1409
      %v1418 = vmul.f32 %v1404, %v1410
      %v1419 = vpack.c.bf16 %v1416, %v1415
      %v1420 = vpack.c.bf16 %v1418, %v1417
      %1421 = vst [vmem:[#allocation4 + $0x80] sm:$0xff] %v1419
      %1422 = vst [vmem:[#allocation4 + $0x88] sm:$0xff] %v1420
      %v1423 = vld [vmem:[#allocation4] sm:$0xff]
      %v1424 = vld [vmem:[#allocation4 + $0x8] sm:$0xff]
      %v1425 = vld [vmem:[#allocation4 + $0x10] sm:$0xff]
      %v1426 = vld [vmem:[#allocation4 + $0x18] sm:$0xff]
      %v1427 = vld [vmem:[#allocation4 + $0x20] sm:$0xff]
      %v1428 = vld [vmem:[#allocation4 + $0x28] sm:$0xff]
      %v1429 = vld [vmem:[#allocation4 + $0x30] sm:$0xff]
      %v1430 = vld [vmem:[#allocation4 + $0x38] sm:$0xff]
      %v1431 = vld [vmem:[#allocation4 + $0x40] sm:$0xff]
      %v1432 = vld [vmem:[#allocation4 + $0x48] sm:$0xff]
      %v1433 = vld [vmem:[#allocation4 + $0x50] sm:$0xff]
      %v1434 = vld [vmem:[#allocation4 + $0x58] sm:$0xff]
      %v1435 = vld [vmem:[#allocation4 + $0x60] sm:$0xff]
      %v1436 = vld [vmem:[#allocation4 + $0x68] sm:$0xff]
      %v1437 = vld [vmem:[#allocation4 + $0x70] sm:$0xff]
      %v1438 = vld [vmem:[#allocation4 + $0x78] sm:$0xff]
      %v1439 = vld [vmem:[#allocation4 + $0x80] sm:$0xff]
      %v1440 = vld [vmem:[#allocation4 + $0x88] sm:$0xff]
      %v1459 = vunpack.c.l.b16 %v1423
      %v1460 = vunpack.c.h.b16 %v1423
      %v1461 = vunpack.c.l.b16 %v1424
      %v1462 = vunpack.c.h.b16 %v1424
      %v1463 = vunpack.c.l.b16 %v1425
      %v1464 = vunpack.c.h.b16 %v1425
      %v1465 = vunpack.c.l.b16 %v1426
      %v1466 = vunpack.c.h.b16 %v1426
      %v1467 = vunpack.c.l.b16 %v1427
      %v1468 = vunpack.c.h.b16 %v1427
      %v1469 = vunpack.c.l.b16 %v1428
      %v1470 = vunpack.c.h.b16 %v1428
      %v1471 = vunpack.c.l.b16 %v1429
      %v1472 = vunpack.c.h.b16 %v1429
      %v1473 = vunpack.c.l.b16 %v1430
      %v1474 = vunpack.c.h.b16 %v1430
      %v1475 = vunpack.c.l.b16 %v1431
      %v1476 = vunpack.c.h.b16 %v1431
      %v1477 = vunpack.c.l.b16 %v1432
      %v1478 = vunpack.c.h.b16 %v1432
      %v1479 = vunpack.c.l.b16 %v1433
      %v1480 = vunpack.c.h.b16 %v1433
      %v1481 = vunpack.c.l.b16 %v1434
      %v1482 = vunpack.c.h.b16 %v1434
      %v1483 = vunpack.c.l.b16 %v1435
      %v1484 = vunpack.c.h.b16 %v1435
      %v1485 = vunpack.c.l.b16 %v1436
      %v1486 = vunpack.c.h.b16 %v1436
      %v1487 = vunpack.c.l.b16 %v1437
      %v1488 = vunpack.c.h.b16 %v1437
      %v1489 = vunpack.c.l.b16 %v1438
      %v1490 = vunpack.c.h.b16 %v1438
      %v1491 = vunpack.c.l.b16 %v1439
      %v1492 = vunpack.c.h.b16 %v1439
      %v1493 = vunpack.c.l.b16 %v1440
      %v1494 = vunpack.c.h.b16 %v1440
      %v1495 = vpack.c.b16 %v1463, %v1459
      %v1496 = vpack.c.b16 %v1464, %v1460
      %v1497 = vpack.c.b16 %v1465, %v1461
      %v1498 = vpack.c.b16 %v1466, %v1462
      %v1499 = vpack.c.b16 %v1471, %v1467
      %v1500 = vpack.c.b16 %v1472, %v1468
      %v1501 = vpack.c.b16 %v1473, %v1469
      %v1502 = vpack.c.b16 %v1474, %v1470
      %v1503 = vpack.c.b16 %v1479, %v1475
      %v1504 = vpack.c.b16 %v1480, %v1476
      %v1505 = vpack.c.b16 %v1481, %v1477
      %v1506 = vpack.c.b16 %v1482, %v1478
      %v1507 = vpack.c.b16 %v1487, %v1483
      %v1508 = vpack.c.b16 %v1488, %v1484
      %v1509 = vpack.c.b16 %v1489, %v1485
      %v1510 = vpack.c.b16 %v1490, %v1486
      %v1511 = vpack.c.b16 %v1491, %v1491
      %v1512 = vpack.c.b16 %v1492, %v1492
      %v1513 = vpack.c.b16 %v1493, %v1493
      %v1514 = vpack.c.b16 %v1494, %v1494
      %v1532 = vsel %vm374, %v1511, 0
      %v1535 = vsel %vm374, %v1512, 0
      %v1538 = vsel %vm374, %v1513, 0
      %v1541 = vsel %vm374, %v1514, 0
      %1543 = vmatpush.bf16.msra.mxu0 0
      %1544 = vmatpush.bf16.msra.mxu0 0
      %1545 = vmatpush.bf16.msra.mxu0 0
      %1546 = vmatpush.bf16.msra.mxu0 %v1532
      %1547 = vmatpush.bf16.msra.mxu0 %v1507
      %1548 = vmatpush.bf16.msra.mxu0 %v1503
      %1549 = vmatpush.bf16.msra.mxu0 %v1499
      %1550 = vmatpush.bf16.msra.mxu0 %v1495
      %1551 = vmatmul.bf16.gmra.mxu0 %v755
      %v1552 = vpop.f32.mrf.mxu0
      %v1553 = vadd.f32 %v324, %v1552
      %v1554 = vpop.f32.mrf.mxu0
      %v1555 = vadd.f32 %v329, %v1554
      %1556 = vdwg.mxu0
      %1557 = vmatpush.bf16.msra.mxu0 0
      %1558 = vmatpush.bf16.msra.mxu0 0
      %1559 = vmatpush.bf16.msra.mxu0 0
      %1560 = vmatpush.bf16.msra.mxu0 %v1535
      %1561 = vmatpush.bf16.msra.mxu0 %v1508
      %1562 = vmatpush.bf16.msra.mxu0 %v1504
      %1563 = vmatpush.bf16.msra.mxu0 %v1500
      %1564 = vmatpush.bf16.msra.mxu0 %v1496
      %1565 = vmatmul.bf16.gmra.mxu0 %v755
      %v1566 = vpop.f32.mrf.mxu0
      %v1567 = vadd.f32 %v324, %v1566
      %v1568 = vpop.f32.mrf.mxu0
      %v1569 = vadd.f32 %v329, %v1568
      %1570 = vdwg.mxu0
      %1571 = vmatpush.bf16.msra.mxu0 0
      %1572 = vmatpush.bf16.msra.mxu0 0
      %1573 = vmatpush.bf16.msra.mxu0 0
      %1574 = vmatpush.bf16.msra.mxu0 %v1538
      %1575 = vmatpush.bf16.msra.mxu0 %v1509
      %1576 = vmatpush.bf16.msra.mxu0 %v1505
      %1577 = vmatpush.bf16.msra.mxu0 %v1501
      %1578 = vmatpush.bf16.msra.mxu0 %v1497
      %1579 = vmatmul.bf16.gmra.mxu0 %v755
      %v1580 = vpop.f32.mrf.mxu0
      %v1581 = vadd.f32 %v324, %v1580
      %v1582 = vpop.f32.mrf.mxu0
      %v1583 = vadd.f32 %v329, %v1582
      %1584 = vdwg.mxu0
      %1585 = vmatpush.bf16.msra.mxu0 0
      %1586 = vmatpush.bf16.msra.mxu0 0
      %1587 = vmatpush.bf16.msra.mxu0 0
      %1588 = vmatpush.bf16.msra.mxu0 %v1541
      %1589 = vmatpush.bf16.msra.mxu0 %v1510
      %1590 = vmatpush.bf16.msra.mxu0 %v1506
      %1591 = vmatpush.bf16.msra.mxu0 %v1502
      %1592 = vmatpush.bf16.msra.mxu0 %v1498
      %1593 = vmatmul.bf16.gmra.mxu0 %v755
      %v1594 = vpop.f32.mrf.mxu0
      %v1595 = vadd.f32 %v324, %v1594
      %v1596 = vpop.f32.mrf.mxu0
      %v1597 = vadd.f32 %v329, %v1596
      %1598 = vdwg.mxu0
      %1601 = vst [vmem:[#allocation1] ss:$2 sm:$0xff] %v1146
      %s1602 = scalar_lea.vmem [#allocation1], 16
      %1603 = vst [vmem:[%s1602] ss:$2 sm:$0xff] %v1147
      %v1604 = vld.sshfl [vmem:[#allocation1] sm:$0xff pattern:$0x75316420]
      %v1605 = vld.sshfl [vmem:[#allocation1 + $0x8] sm:$0xff pattern:$0x75316420]
      %v1606 = vld.sshfl [vmem:[#allocation1 + $0x10] sm:$0xff pattern:$0x75316420]
      %v1607 = vld.sshfl [vmem:[#allocation1 + $0x18] sm:$0xff pattern:$0x75316420]
      %s1612 = scalar_lea.vmem [#allocation1], 1
      %1613 = vst [vmem:[%s1612] ss:$2 sm:$0xff] %v1146
      %s1614 = scalar_lea.vmem [#allocation1], 17
      %1615 = vst [vmem:[%s1614] ss:$2 sm:$0xff] %v1147
      %v1616 = vld.sshfl [vmem:[#allocation1] sm:$0xff pattern:$0x75316420]
      %v1617 = vld.sshfl [vmem:[#allocation1 + $0x8] sm:$0xff pattern:$0x75316420]
      %v1618 = vld.sshfl [vmem:[#allocation1 + $0x10] sm:$0xff pattern:$0x75316420]
      %v1619 = vld.sshfl [vmem:[#allocation1 + $0x18] sm:$0xff pattern:$0x75316420]
      %v1624 = vsel %vm374, %v1604, %v1616
      %v1625 = vsel %vm374, %v1605, %v1617
      %v1626 = vsel %vm374, %v1606, %v1618
      %v1627 = vsel %vm374, %v1607, %v1619
      %v1628 = vmul.f32 %v331, %v1624
      %v1629 = vmul.f32 %v332, %v1625
      %v1630 = vmul.f32 %v333, %v1626
      %v1631 = vmul.f32 %v334, %v1627
      %v1632 = vadd.f32 %v1553, %v1628
      %v1633 = vadd.f32 %v1567, %v1629
      %v1634 = vadd.f32 %v1581, %v1630
      %v1635 = vadd.f32 %v1595, %v1631
      %v1636 = vxor.u32 %v1632, 2147483648
      %v1637 = vxor.u32 %v1633, 2147483648
      %v1638 = vxor.u32 %v1634, 2147483648
      %v1639 = vxor.u32 %v1635, 2147483648
      %v1640 = vmul.f32 %v1636, 1.442695
      %v1641 = vpow.pop %v1640
      %v1642 = vmul.f32 %v1637, 1.442695
      %v1643 = vpow.pop %v1642
      %v1644 = vmul.f32 %v1638, 1.442695
      %v1645 = vpow.pop %v1644
      %v1646 = vmul.f32 %v1639, 1.442695
      %v1647 = vpow.pop %v1646
      %v1648 = vadd.f32 %v1641, 1.0
      %v1649 = vadd.f32 %v1643, 1.0
      %v1650 = vadd.f32 %v1645, 1.0
      %v1651 = vadd.f32 %v1647, 1.0
      %v1652 = vrcp.pop %v1648
      %v1653 = vmul.f32 %v1648, %v1652
      %v1654 = vsub.f32 1.0, %v1653
      %v1655 = vmul.f32 %v1652, %v1654
      %v1656 = vadd.f32 %v1652, %v1655
      %vm1657 = vweird.f32 %v1648
      %vm1658 = vweird.f32 %v1652
      %vm1659 = vmor %vm1657, %vm1658
      %v1660 = vsel %vm1659, %v1652, %v1656
      %v1661 = vand.u32 2147483647, %v1648
      %vm1662 = vcmp.eq.f32.partialorder %v1661, 8.507059e+37
      %v1663 = vand.u32 %v1648, 2147483648
      %v1664 = vor.u32 1.1754944e-38, %v1663
      %v1665 = vsel %vm1662, %v1664, %v1660
      %v1666 = vmul.f32 1.0, %v1665
      %v1667 = vrcp.pop %v1649
      %v1668 = vmul.f32 %v1649, %v1667
      %v1669 = vsub.f32 1.0, %v1668
      %v1670 = vmul.f32 %v1667, %v1669
      %v1671 = vadd.f32 %v1667, %v1670
      %vm1672 = vweird.f32 %v1649
      %vm1673 = vweird.f32 %v1667
      %vm1674 = vmor %vm1672, %vm1673
      %v1675 = vsel %vm1674, %v1667, %v1671
      %v1676 = vand.u32 2147483647, %v1649
      %vm1677 = vcmp.eq.f32.partialorder %v1676, 8.507059e+37
      %v1678 = vand.u32 %v1649, 2147483648
      %v1679 = vor.u32 1.1754944e-38, %v1678
      %v1680 = vsel %vm1677, %v1679, %v1675
      %v1681 = vmul.f32 1.0, %v1680
      %v1682 = vrcp.pop %v1650
      %v1683 = vmul.f32 %v1650, %v1682
      %v1684 = vsub.f32 1.0, %v1683
      %v1685 = vmul.f32 %v1682, %v1684
      %v1686 = vadd.f32 %v1682, %v1685
      %vm1687 = vweird.f32 %v1650
      %vm1688 = vweird.f32 %v1682
      %vm1689 = vmor %vm1687, %vm1688
      %v1690 = vsel %vm1689, %v1682, %v1686
      %v1691 = vand.u32 2147483647, %v1650
      %vm1692 = vcmp.eq.f32.partialorder %v1691, 8.507059e+37
      %v1693 = vand.u32 %v1650, 2147483648
      %v1694 = vor.u32 1.1754944e-38, %v1693
      %v1695 = vsel %vm1692, %v1694, %v1690
      %v1696 = vmul.f32 1.0, %v1695
      %v1697 = vrcp.pop %v1651
      %v1698 = vmul.f32 %v1651, %v1697
      %v1699 = vsub.f32 1.0, %v1698
      %v1700 = vmul.f32 %v1697, %v1699
      %v1701 = vadd.f32 %v1697, %v1700
      %vm1702 = vweird.f32 %v1651
      %vm1703 = vweird.f32 %v1697
      %vm1704 = vmor %vm1702, %vm1703
      %v1705 = vsel %vm1704, %v1697, %v1701
      %v1706 = vand.u32 2147483647, %v1651
      %vm1707 = vcmp.eq.f32.partialorder %v1706, 8.507059e+37
      %v1708 = vand.u32 %v1651, 2147483648
      %v1709 = vor.u32 1.1754944e-38, %v1708
      %v1710 = vsel %vm1707, %v1709, %v1705
      %v1711 = vmul.f32 1.0, %v1710
      %s1712 = scalar_lea.vmem [#allocation1], 1
      %1713 = vst [vmem:[%s1712] ss:$2 sm:$0xff] %v1146
      %s1714 = scalar_lea.vmem [#allocation1], 17
      %1715 = vst [vmem:[%s1714] ss:$2 sm:$0xff] %v1147
      %v1716 = vld.sshfl [vmem:[#allocation1] sm:$0xff pattern:$0x75316420]
      %v1717 = vld.sshfl [vmem:[#allocation1 + $0x8] sm:$0xff pattern:$0x75316420]
      %v1718 = vld.sshfl [vmem:[#allocation1 + $0x10] sm:$0xff pattern:$0x75316420]
      %v1719 = vld.sshfl [vmem:[#allocation1 + $0x18] sm:$0xff pattern:$0x75316420]
      %v1724 = vmul.f32 %v1666, %v1716
      %v1725 = vmul.f32 %v1681, %v1717
      %v1726 = vmul.f32 %v1696, %v1718
      %v1727 = vmul.f32 %v1711, %v1719
      %v1728 = vtanh.pop %v1555
      %v1729 = vtanh.pop %v1569
      %v1730 = vtanh.pop %v1583
      %v1731 = vtanh.pop %v1597
      %v1732 = vmul.f32 %v1666, %v1728
      %v1733 = vmul.f32 %v1681, %v1729
      %v1734 = vmul.f32 %v1696, %v1730
      %v1735 = vmul.f32 %v1711, %v1731
      %v1740 = vrot.slane %v1732, 4
      %v1741 = vrot.slane %v1733, 4
      %v1742 = vrot.slane %v1734, 4
      %v1743 = vrot.slane %v1735, 4
      %v1748 = vadd.f32 %v1724, %v1740
      %v1749 = vadd.f32 %v1725, %v1741
      %v1750 = vadd.f32 %v1726, %v1742
      %v1751 = vadd.f32 %v1727, %v1743
      %1756 = vst.sshfl [vmem:[#allocation1] sm:$0xff pattern:$0x75316420] %v1748
      %1757 = vst.sshfl [vmem:[#allocation1 + $0x8] sm:$0xff pattern:$0x75316420] %v1749
      %1758 = vst.sshfl [vmem:[#allocation1 + $0x10] sm:$0xff pattern:$0x75316420] %v1750
      %1759 = vst.sshfl [vmem:[#allocation1 + $0x18] sm:$0xff pattern:$0x75316420] %v1751
      %s1760 = scalar_lea.vmem [#allocation1], 1
      %v1761 = vld [vmem:[%s1760] ss:$2 sm:$0xff]
      %s1762 = scalar_lea.vmem [#allocation1], 17
      %v1763 = vld [vmem:[%s1762] ss:$2 sm:$0xff]
      %v1766 = vmul.f32 %v335, %v1761
      %v1767 = vmul.f32 %v336, %v1763
      %s1770 = scalar_lea.vmem [#allocation1], 1
      %1771 = vst [vmem:[%s1770] ss:$2 sm:$0xff] %v1766
      %s1772 = scalar_lea.vmem [#allocation1], 17
      %1773 = vst [vmem:[%s1772] ss:$2 sm:$0xff] %v1767
      %v1774 = vld.sshfl [vmem:[#allocation1] sm:$0xff pattern:$0x75316420]
      %v1775 = vld.sshfl [vmem:[#allocation1 + $0x8] sm:$0xff pattern:$0x75316420]
      %v1776 = vld.sshfl [vmem:[#allocation1 + $0x10] sm:$0xff pattern:$0x75316420]
      %v1777 = vld.sshfl [vmem:[#allocation1 + $0x18] sm:$0xff pattern:$0x75316420]
      %v1782 = vadd.f32 %v1555, %v1774
      %v1783 = vadd.f32 %v1569, %v1775
      %v1784 = vadd.f32 %v1583, %v1776
      %v1785 = vadd.f32 %v1597, %v1777
      %v1786 = vxor.u32 %v1782, 2147483648
      %v1787 = vxor.u32 %v1783, 2147483648
      %v1788 = vxor.u32 %v1784, 2147483648
      %v1789 = vxor.u32 %v1785, 2147483648
      %v1790 = vmul.f32 %v1786, 1.442695
      %v1791 = vpow.pop %v1790
      %v1792 = vmul.f32 %v1787, 1.442695
      %v1793 = vpow.pop %v1792
      %v1794 = vmul.f32 %v1788, 1.442695
      %v1795 = vpow.pop %v1794
      %v1796 = vmul.f32 %v1789, 1.442695
      %v1797 = vpow.pop %v1796
      %v1798 = vadd.f32 %v1791, 1.0
      %v1799 = vadd.f32 %v1793, 1.0
      %v1800 = vadd.f32 %v1795, 1.0
      %v1801 = vadd.f32 %v1797, 1.0
      %v1802 = vrcp.pop %v1798
      %v1803 = vmul.f32 %v1798, %v1802
      %v1804 = vsub.f32 1.0, %v1803
      %v1805 = vmul.f32 %v1802, %v1804
      %v1806 = vadd.f32 %v1802, %v1805
      %vm1807 = vweird.f32 %v1798
      %vm1808 = vweird.f32 %v1802
      %vm1809 = vmor %vm1807, %vm1808
      %v1810 = vsel %vm1809, %v1802, %v1806
      %v1811 = vand.u32 2147483647, %v1798
      %vm1812 = vcmp.eq.f32.partialorder %v1811, 8.507059e+37
      %v1813 = vand.u32 %v1798, 2147483648
      %v1814 = vor.u32 1.1754944e-38, %v1813
      %v1815 = vsel %vm1812, %v1814, %v1810
      %v1816 = vmul.f32 1.0, %v1815
      %v1817 = vrcp.pop %v1799
      %v1818 = vmul.f32 %v1799, %v1817
      %v1819 = vsub.f32 1.0, %v1818
      %v1820 = vmul.f32 %v1817, %v1819
      %v1821 = vadd.f32 %v1817, %v1820
      %vm1822 = vweird.f32 %v1799
      %vm1823 = vweird.f32 %v1817
      %vm1824 = vmor %vm1822, %vm1823
      %v1825 = vsel %vm1824, %v1817, %v1821
      %v1826 = vand.u32 2147483647, %v1799
      %vm1827 = vcmp.eq.f32.partialorder %v1826, 8.507059e+37
      %v1828 = vand.u32 %v1799, 2147483648
      %v1829 = vor.u32 1.1754944e-38, %v1828
      %v1830 = vsel %vm1827, %v1829, %v1825
      %v1831 = vmul.f32 1.0, %v1830
      %v1832 = vrcp.pop %v1800
      %v1833 = vmul.f32 %v1800, %v1832
      %v1834 = vsub.f32 1.0, %v1833
      %v1835 = vmul.f32 %v1832, %v1834
      %v1836 = vadd.f32 %v1832, %v1835
      %vm1837 = vweird.f32 %v1800
      %vm1838 = vweird.f32 %v1832
      %vm1839 = vmor %vm1837, %vm1838
      %v1840 = vsel %vm1839, %v1832, %v1836
      %v1841 = vand.u32 2147483647, %v1800
      %vm1842 = vcmp.eq.f32.partialorder %v1841, 8.507059e+37
      %v1843 = vand.u32 %v1800, 2147483648
      %v1844 = vor.u32 1.1754944e-38, %v1843
      %v1845 = vsel %vm1842, %v1844, %v1840
      %v1846 = vmul.f32 1.0, %v1845
      %v1847 = vrcp.pop %v1801
      %v1848 = vmul.f32 %v1801, %v1847
      %v1849 = vsub.f32 1.0, %v1848
      %v1850 = vmul.f32 %v1847, %v1849
      %v1851 = vadd.f32 %v1847, %v1850
      %vm1852 = vweird.f32 %v1801
      %vm1853 = vweird.f32 %v1847
      %vm1854 = vmor %vm1852, %vm1853
      %v1855 = vsel %vm1854, %v1847, %v1851
      %v1856 = vand.u32 2147483647, %v1801
      %vm1857 = vcmp.eq.f32.partialorder %v1856, 8.507059e+37
      %v1858 = vand.u32 %v1801, 2147483648
      %v1859 = vor.u32 1.1754944e-38, %v1858
      %v1860 = vsel %vm1857, %v1859, %v1855
      %v1861 = vmul.f32 1.0, %v1860
      %v1862 = vtanh.pop %v1748
      %v1863 = vtanh.pop %v1749
      %v1864 = vtanh.pop %v1750
      %v1865 = vtanh.pop %v1751
      %v1866 = vmul.f32 %v1816, %v1862
      %v1867 = vmul.f32 %v1831, %v1863
      %v1868 = vmul.f32 %v1846, %v1864
      %v1869 = vmul.f32 %v1861, %v1865
      %1874 = vst.sshfl [vmem:[#allocation1] sm:$0xff pattern:$0x75316420] %v1866
      %1875 = vst.sshfl [vmem:[#allocation1 + $0x8] sm:$0xff pattern:$0x75316420] %v1867
      %1876 = vst.sshfl [vmem:[#allocation1 + $0x10] sm:$0xff pattern:$0x75316420] %v1868
      %1877 = vst.sshfl [vmem:[#allocation1 + $0x18] sm:$0xff pattern:$0x75316420] %v1869
      %s1878 = scalar_lea.vmem [#allocation1], 1
      %v1879 = vld [vmem:[%s1878] ss:$2 sm:$0xff]
      %s1880 = scalar_lea.vmem [#allocation1], 17
      %v1881 = vld [vmem:[%s1880] ss:$2 sm:$0xff]
      %1884 = vst [vmem:[#allocation2] sm:$0xff] %v1879
      %1885 = vst [vmem:[#allocation2 + $0x8] sm:$0xff] %v1881
      %1886 = vst.sshfl [vmem:[#allocation1] sm:$0xff pattern:$0x75316420] %v1748
      %1887 = vst.sshfl [vmem:[#allocation1 + $0x8] sm:$0xff pattern:$0x75316420] %v1749
      %1888 = vst.sshfl [vmem:[#allocation1 + $0x10] sm:$0xff pattern:$0x75316420] %v1750
      %1889 = vst.sshfl [vmem:[#allocation1 + $0x18] sm:$0xff pattern:$0x75316420] %v1751
      %s1890 = scalar_lea.vmem [#allocation1], 1
      %v1891 = vld [vmem:[%s1890] ss:$2 sm:$0xff]
      %s1892 = scalar_lea.vmem [#allocation1], 17
      %v1893 = vld [vmem:[%s1892] ss:$2 sm:$0xff]
      %1896 = vst [vmem:[#allocation3] sm:$0xff] %v1891
      %1897 = vst [vmem:[#allocation3 + $0x8] sm:$0xff] %v1893
      %1898 = vst.sshfl [vmem:[#allocation1] sm:$0xff pattern:$0x75316420] %v1866
      %1899 = vst.sshfl [vmem:[#allocation1 + $0x8] sm:$0xff pattern:$0x75316420] %v1867
      %1900 = vst.sshfl [vmem:[#allocation1 + $0x10] sm:$0xff pattern:$0x75316420] %v1868
      %1901 = vst.sshfl [vmem:[#allocation1 + $0x18] sm:$0xff pattern:$0x75316420] %v1869
      %s1902 = scalar_lea.vmem [#allocation1], 1
      %v1903 = vld [vmem:[%s1902] ss:$2 sm:$0xff]
      %s1904 = scalar_lea.vmem [#allocation1], 17
      %v1905 = vld [vmem:[%s1904] ss:$2 sm:$0xff]
      %s1908 = scalar_lea.vmem %s311, 16
      %1909 = vst [vmem:[%s1908] sm:$0xff] %v1903
      %1910 = vst [vmem:[%s1908 + $0x8] sm:$0xff] %v1905
      %s1911 = smul.u32 %s1136, 2
      %s1912 = sadd.s32 %s1911, %s17
      %s1913 = smul.u32 %s1912, 4
      %s1914 = smul.addr %s1913, 4
      %s1915 = scalar_lea.vmem %s0, %s1914
      %v1916 = vld [vmem:[%s1915] sm:$0xff]
      %v1917 = vld [vmem:[%s1915 + $0x8] sm:$0xff]
      %v1918 = vld [vmem:[#allocation2] sm:$0xff]
      %v1919 = vld [vmem:[#allocation2 + $0x8] sm:$0xff]
      %v1920 = vld [vmem:[#allocation3] sm:$0xff]
      %v1921 = vld [vmem:[#allocation3 + $0x8] sm:$0xff]
      %1924 = vst [vmem:[#allocation1] ss:$2 sm:$0xff] %v1916
      %s1925 = scalar_lea.vmem [#allocation1], 16
      %1926 = vst [vmem:[%s1925] ss:$2 sm:$0xff] %v1917
      %v1927 = vld.sshfl [vmem:[#allocation1] sm:$0xff pattern:$0x75316420]
      %v1928 = vld.sshfl [vmem:[#allocation1 + $0x8] sm:$0xff pattern:$0x75316420]
      %v1929 = vld.sshfl [vmem:[#allocation1 + $0x10] sm:$0xff pattern:$0x75316420]
      %v1930 = vld.sshfl [vmem:[#allocation1 + $0x18] sm:$0xff pattern:$0x75316420]
      %s1937 = scalar_lea.vmem [#allocation1], 1
      %1938 = vst [vmem:[%s1937] ss:$2 sm:$0xff] %v1918
      %s1939 = scalar_lea.vmem [#allocation1], 17
      %1940 = vst [vmem:[%s1939] ss:$2 sm:$0xff] %v1919
      %v1941 = vld.sshfl [vmem:[#allocation1] sm:$0xff pattern:$0x75316420]
      %v1942 = vld.sshfl [vmem:[#allocation1 + $0x8] sm:$0xff pattern:$0x75316420]
      %v1943 = vld.sshfl [vmem:[#allocation1 + $0x10] sm:$0xff pattern:$0x75316420]
      %v1944 = vld.sshfl [vmem:[#allocation1 + $0x18] sm:$0xff pattern:$0x75316420]
      %v1949 = vsel %vm374, %v1927, %v1941
      %v1950 = vsel %vm374, %v1928, %v1942
      %v1951 = vsel %vm374, %v1929, %v1943
      %v1952 = vsel %vm374, %v1930, %v1944
      %1953 = vrot.lane.b32.xlu0 %v1949, 17
      %v1954 = vpop.permute.xlu0 %1953
      %1955 = vrot.lane.b32.xlu0 %v1950, 17
      %v1956 = vpop.permute.xlu0 %1955
      %1957 = vrot.lane.b32.xlu0 %v1951, 17
      %v1958 = vpop.permute.xlu0 %1957
      %1959 = vrot.lane.b32.xlu0 %v1952, 17
      %v1960 = vpop.permute.xlu0 %1959
      %v1961 = vsel %vm389, %v1958, %v1960
      %v1962 = vsel %vm389, %v1956, %v1958
      %v1963 = vsel %vm389, %v1954, %v1956
      %v1964 = vsel %vm389, %v1960, %v1954
      %v1965 = vld [vmem:[%s5] ss:$8 sm:$0xf]
      %v1967 = vperm.slane %v1965, 0
      %v1968 = vperm.slane %v1965, 1
      %v1969 = vperm.slane %v1965, 2
      %v1970 = vperm.slane %v1965, 3
      %v1975 = vmul.f32 %v1964, %v1967
      %v1976 = vmul.f32 %v1963, %v1968
      %v1977 = vmul.f32 %v1962, %v1969
      %v1978 = vmul.f32 %v1961, %v1970
      %v1979 = vpack.c.bf16 %v1976, %v1975
      %v1980 = vpack.c.bf16 %v1978, %v1977
      %1981 = vst [vmem:[#allocation4] sm:$0xff] %v1979
      %1982 = vst [vmem:[#allocation4 + $0x8] sm:$0xff] %v1980
      %1983 = vrot.lane.b32.xlu0 %v1949, 16
      %v1984 = vpop.permute.xlu0 %1983
      %1985 = vrot.lane.b32.xlu0 %v1950, 16
      %v1986 = vpop.permute.xlu0 %1985
      %1987 = vrot.lane.b32.xlu0 %v1951, 16
      %v1988 = vpop.permute.xlu0 %1987
      %1989 = vrot.lane.b32.xlu0 %v1952, 16
      %v1990 = vpop.permute.xlu0 %1989
      %v1991 = vsel %vm420, %v1988, %v1990
      %v1992 = vsel %vm420, %v1986, %v1988
      %v1993 = vsel %vm420, %v1984, %v1986
      %v1994 = vsel %vm420, %v1990, %v1984
      %v1995 = vld [vmem:[%s425] ss:$8 sm:$0xf]
      %v1997 = vperm.slane %v1995, 0
      %v1998 = vperm.slane %v1995, 1
      %v1999 = vperm.slane %v1995, 2
      %v2000 = vperm.slane %v1995, 3
      %v2005 = vmul.f32 %v1994, %v1997
      %v2006 = vmul.f32 %v1993, %v1998
      %v2007 = vmul.f32 %v1992, %v1999
      %v2008 = vmul.f32 %v1991, %v2000
      %v2009 = vpack.c.bf16 %v2006, %v2005
      %v2010 = vpack.c.bf16 %v2008, %v2007
      %2011 = vst [vmem:[#allocation4 + $0x10] sm:$0xff] %v2009
      %2012 = vst [vmem:[#allocation4 + $0x18] sm:$0xff] %v2010
      %2013 = vrot.lane.b32.xlu0 %v1949, 15
      %v2014 = vpop.permute.xlu0 %2013
      %2015 = vrot.lane.b32.xlu0 %v1950, 15
      %v2016 = vpop.permute.xlu0 %2015
      %2017 = vrot.lane.b32.xlu0 %v1951, 15
      %v2018 = vpop.permute.xlu0 %2017
      %2019 = vrot.lane.b32.xlu0 %v1952, 15
      %v2020 = vpop.permute.xlu0 %2019
      %v2021 = vsel %vm452, %v2018, %v2020
      %v2022 = vsel %vm452, %v2016, %v2018
      %v2023 = vsel %vm452, %v2014, %v2016
      %v2024 = vsel %vm452, %v2020, %v2014
      %v2025 = vld [vmem:[%s457] ss:$8 sm:$0xf]
      %v2027 = vperm.slane %v2025, 0
      %v2028 = vperm.slane %v2025, 1
      %v2029 = vperm.slane %v2025, 2
      %v2030 = vperm.slane %v2025, 3
      %v2035 = vmul.f32 %v2024, %v2027
      %v2036 = vmul.f32 %v2023, %v2028
      %v2037 = vmul.f32 %v2022, %v2029
      %v2038 = vmul.f32 %v2021, %v2030
      %v2039 = vpack.c.bf16 %v2036, %v2035
      %v2040 = vpack.c.bf16 %v2038, %v2037
      %2041 = vst [vmem:[#allocation4 + $0x20] sm:$0xff] %v2039
      %2042 = vst [vmem:[#allocation4 + $0x28] sm:$0xff] %v2040
      %2043 = vrot.lane.b32.xlu0 %v1949, 1
      %v2044 = vpop.permute.xlu0 %2043
      %2045 = vrot.lane.b32.xlu0 %v1950, 1
      %v2046 = vpop.permute.xlu0 %2045
      %2047 = vrot.lane.b32.xlu0 %v1951, 1
      %v2048 = vpop.permute.xlu0 %2047
      %2049 = vrot.lane.b32.xlu0 %v1952, 1
      %v2050 = vpop.permute.xlu0 %2049
      %v2051 = vsel %vm484, %v2048, %v2050
      %v2052 = vsel %vm484, %v2046, %v2048
      %v2053 = vsel %vm484, %v2044, %v2046
      %v2054 = vsel %vm484, %v2050, %v2044
      %v2055 = vld [vmem:[%s489] ss:$8 sm:$0xf]
      %v2057 = vperm.slane %v2055, 0
      %v2058 = vperm.slane %v2055, 1
      %v2059 = vperm.slane %v2055, 2
      %v2060 = vperm.slane %v2055, 3
      %v2065 = vmul.f32 %v2054, %v2057
      %v2066 = vmul.f32 %v2053, %v2058
      %v2067 = vmul.f32 %v2052, %v2059
      %v2068 = vmul.f32 %v2051, %v2060
      %v2069 = vpack.c.bf16 %v2066, %v2065
      %v2070 = vpack.c.bf16 %v2068, %v2067
      %2071 = vst [vmem:[#allocation4 + $0x30] sm:$0xff] %v2069
      %2072 = vst [vmem:[#allocation4 + $0x38] sm:$0xff] %v2070
      %v2073 = vpack.c.bf16 %v1950, %v1949
      %v2074 = vpack.c.bf16 %v1952, %v1951
      %2075 = vst [vmem:[#allocation4 + $0x40] sm:$0xff] %v2073
      %2076 = vst [vmem:[#allocation4 + $0x48] sm:$0xff] %v2074
      %2077 = vrot.lane.b32.xlu0 %v1949, 127
      %v2078 = vpop.permute.xlu0 %2077
      %2079 = vrot.lane.b32.xlu0 %v1950, 127
      %v2080 = vpop.permute.xlu0 %2079
      %2081 = vrot.lane.b32.xlu0 %v1951, 127
      %v2082 = vpop.permute.xlu0 %2081
      %2083 = vrot.lane.b32.xlu0 %v1952, 127
      %v2084 = vpop.permute.xlu0 %2083
      %v2085 = vsel %vm520, %v2082, %v2084
      %v2086 = vsel %vm520, %v2080, %v2082
      %v2087 = vsel %vm520, %v2078, %v2080
      %v2088 = vsel %vm520, %v2084, %v2078
      %v2089 = vld [vmem:[%s525] ss:$8 sm:$0xf]
      %v2091 = vperm.slane %v2089, 0
      %v2092 = vperm.slane %v2089, 1
      %v2093 = vperm.slane %v2089, 2
      %v2094 = vperm.slane %v2089, 3
      %v2099 = vmul.f32 %v2087, %v2091
      %v2100 = vmul.f32 %v2086, %v2092
      %v2101 = vmul.f32 %v2085, %v2093
      %v2102 = vmul.f32 %v2088, %v2094
      %v2103 = vpack.c.bf16 %v2100, %v2099
      %v2104 = vpack.c.bf16 %v2102, %v2101
      %2105 = vst [vmem:[#allocation4 + $0x50] sm:$0xff] %v2103
      %2106 = vst [vmem:[#allocation4 + $0x58] sm:$0xff] %v2104
      %2107 = vrot.lane.b32.xlu0 %v1949, 113
      %v2108 = vpop.permute.xlu0 %2107
      %2109 = vrot.lane.b32.xlu0 %v1950, 113
      %v2110 = vpop.permute.xlu0 %2109
      %2111 = vrot.lane.b32.xlu0 %v1951, 113
      %v2112 = vpop.permute.xlu0 %2111
      %2113 = vrot.lane.b32.xlu0 %v1952, 113
      %v2114 = vpop.permute.xlu0 %2113
      %v2115 = vsel %vm552, %v2112, %v2114
      %v2116 = vsel %vm552, %v2110, %v2112
      %v2117 = vsel %vm552, %v2108, %v2110
      %v2118 = vsel %vm552, %v2114, %v2108
      %v2119 = vld [vmem:[%s557] ss:$8 sm:$0xf]
      %v2121 = vperm.slane %v2119, 0
      %v2122 = vperm.slane %v2119, 1
      %v2123 = vperm.slane %v2119, 2
      %v2124 = vperm.slane %v2119, 3
      %v2129 = vmul.f32 %v2117, %v2121
      %v2130 = vmul.f32 %v2116, %v2122
      %v2131 = vmul.f32 %v2115, %v2123
      %v2132 = vmul.f32 %v2118, %v2124
      %v2133 = vpack.c.bf16 %v2130, %v2129
      %v2134 = vpack.c.bf16 %v2132, %v2131
      %2135 = vst [vmem:[#allocation4 + $0x60] sm:$0xff] %v2133
      %2136 = vst [vmem:[#allocation4 + $0x68] sm:$0xff] %v2134
      %2137 = vrot.lane.b32.xlu0 %v1949, 112
      %v2138 = vpop.permute.xlu0 %2137
      %2139 = vrot.lane.b32.xlu0 %v1950, 112
      %v2140 = vpop.permute.xlu0 %2139
      %2141 = vrot.lane.b32.xlu0 %v1951, 112
      %v2142 = vpop.permute.xlu0 %2141
      %2143 = vrot.lane.b32.xlu0 %v1952, 112
      %v2144 = vpop.permute.xlu0 %2143
      %v2145 = vsel %vm584, %v2142, %v2144
      %v2146 = vsel %vm584, %v2140, %v2142
      %v2147 = vsel %vm584, %v2138, %v2140
      %v2148 = vsel %vm584, %v2144, %v2138
      %v2149 = vld [vmem:[%s589] ss:$8 sm:$0xf]
      %v2151 = vperm.slane %v2149, 0
      %v2152 = vperm.slane %v2149, 1
      %v2153 = vperm.slane %v2149, 2
      %v2154 = vperm.slane %v2149, 3
      %v2159 = vmul.f32 %v2147, %v2151
      %v2160 = vmul.f32 %v2146, %v2152
      %v2161 = vmul.f32 %v2145, %v2153
      %v2162 = vmul.f32 %v2148, %v2154
      %v2163 = vpack.c.bf16 %v2160, %v2159
      %v2164 = vpack.c.bf16 %v2162, %v2161
      %2165 = vst [vmem:[#allocation4 + $0x70] sm:$0xff] %v2163
      %2166 = vst [vmem:[#allocation4 + $0x78] sm:$0xff] %v2164
      %2167 = vrot.lane.b32.xlu0 %v1949, 111
      %v2168 = vpop.permute.xlu0 %2167
      %2169 = vrot.lane.b32.xlu0 %v1950, 111
      %v2170 = vpop.permute.xlu0 %2169
      %2171 = vrot.lane.b32.xlu0 %v1951, 111
      %v2172 = vpop.permute.xlu0 %2171
      %2173 = vrot.lane.b32.xlu0 %v1952, 111
      %v2174 = vpop.permute.xlu0 %2173
      %v2175 = vsel %vm616, %v2172, %v2174
      %v2176 = vsel %vm616, %v2170, %v2172
      %v2177 = vsel %vm616, %v2168, %v2170
      %v2178 = vsel %vm616, %v2174, %v2168
      %v2179 = vld [vmem:[%s621] ss:$8 sm:$0xf]
      %v2181 = vperm.slane %v2179, 0
      %v2182 = vperm.slane %v2179, 1
      %v2183 = vperm.slane %v2179, 2
      %v2184 = vperm.slane %v2179, 3
      %v2189 = vmul.f32 %v2177, %v2181
      %v2190 = vmul.f32 %v2176, %v2182
      %v2191 = vmul.f32 %v2175, %v2183
      %v2192 = vmul.f32 %v2178, %v2184
      %v2193 = vpack.c.bf16 %v2190, %v2189
      %v2194 = vpack.c.bf16 %v2192, %v2191
      %2195 = vst [vmem:[#allocation4 + $0x80] sm:$0xff] %v2193
      %2196 = vst [vmem:[#allocation4 + $0x88] sm:$0xff] %v2194
      %v2197 = vld [vmem:[#allocation4] sm:$0xff]
      %v2198 = vld [vmem:[#allocation4 + $0x8] sm:$0xff]
      %v2199 = vld [vmem:[#allocation4 + $0x10] sm:$0xff]
      %v2200 = vld [vmem:[#allocation4 + $0x18] sm:$0xff]
      %v2201 = vld [vmem:[#allocation4 + $0x20] sm:$0xff]
      %v2202 = vld [vmem:[#allocation4 + $0x28] sm:$0xff]
      %v2203 = vld [vmem:[#allocation4 + $0x30] sm:$0xff]
      %v2204 = vld [vmem:[#allocation4 + $0x38] sm:$0xff]
      %v2205 = vld [vmem:[#allocation4 + $0x40] sm:$0xff]
      %v2206 = vld [vmem:[#allocation4 + $0x48] sm:$0xff]
      %v2207 = vld [vmem:[#allocation4 + $0x50] sm:$0xff]
      %v2208 = vld [vmem:[#allocation4 + $0x58] sm:$0xff]
      %v2209 = vld [vmem:[#allocation4 + $0x60] sm:$0xff]
      %v2210 = vld [vmem:[#allocation4 + $0x68] sm:$0xff]
      %v2211 = vld [vmem:[#allocation4 + $0x70] sm:$0xff]
      %v2212 = vld [vmem:[#allocation4 + $0x78] sm:$0xff]
      %v2213 = vld [vmem:[#allocation4 + $0x80] sm:$0xff]
      %v2214 = vld [vmem:[#allocation4 + $0x88] sm:$0xff]
      %v2233 = vunpack.c.l.b16 %v2197
      %v2234 = vunpack.c.h.b16 %v2197
      %v2235 = vunpack.c.l.b16 %v2198
      %v2236 = vunpack.c.h.b16 %v2198
      %v2237 = vunpack.c.l.b16 %v2199
      %v2238 = vunpack.c.h.b16 %v2199
      %v2239 = vunpack.c.l.b16 %v2200
      %v2240 = vunpack.c.h.b16 %v2200
      %v2241 = vunpack.c.l.b16 %v2201
      %v2242 = vunpack.c.h.b16 %v2201
      %v2243 = vunpack.c.l.b16 %v2202
      %v2244 = vunpack.c.h.b16 %v2202
      %v2245 = vunpack.c.l.b16 %v2203
      %v2246 = vunpack.c.h.b16 %v2203
      %v2247 = vunpack.c.l.b16 %v2204
      %v2248 = vunpack.c.h.b16 %v2204
      %v2249 = vunpack.c.l.b16 %v2205
      %v2250 = vunpack.c.h.b16 %v2205
      %v2251 = vunpack.c.l.b16 %v2206
      %v2252 = vunpack.c.h.b16 %v2206
      %v2253 = vunpack.c.l.b16 %v2207
      %v2254 = vunpack.c.h.b16 %v2207
      %v2255 = vunpack.c.l.b16 %v2208
      %v2256 = vunpack.c.h.b16 %v2208
      %v2257 = vunpack.c.l.b16 %v2209
      %v2258 = vunpack.c.h.b16 %v2209
      %v2259 = vunpack.c.l.b16 %v2210
      %v2260 = vunpack.c.h.b16 %v2210
      %v2261 = vunpack.c.l.b16 %v2211
      %v2262 = vunpack.c.h.b16 %v2211
      %v2263 = vunpack.c.l.b16 %v2212
      %v2264 = vunpack.c.h.b16 %v2212
      %v2265 = vunpack.c.l.b16 %v2213
      %v2266 = vunpack.c.h.b16 %v2213
      %v2267 = vunpack.c.l.b16 %v2214
      %v2268 = vunpack.c.h.b16 %v2214
      %v2269 = vpack.c.b16 %v2237, %v2233
      %v2270 = vpack.c.b16 %v2238, %v2234
      %v2271 = vpack.c.b16 %v2239, %v2235
      %v2272 = vpack.c.b16 %v2240, %v2236
      %v2273 = vpack.c.b16 %v2245, %v2241
      %v2274 = vpack.c.b16 %v2246, %v2242
      %v2275 = vpack.c.b16 %v2247, %v2243
      %v2276 = vpack.c.b16 %v2248, %v2244
      %v2277 = vpack.c.b16 %v2253, %v2249
      %v2278 = vpack.c.b16 %v2254, %v2250
      %v2279 = vpack.c.b16 %v2255, %v2251
      %v2280 = vpack.c.b16 %v2256, %v2252
      %v2281 = vpack.c.b16 %v2261, %v2257
      %v2282 = vpack.c.b16 %v2262, %v2258
      %v2283 = vpack.c.b16 %v2263, %v2259
      %v2284 = vpack.c.b16 %v2264, %v2260
      %v2285 = vpack.c.b16 %v2265, %v2265
      %v2286 = vpack.c.b16 %v2266, %v2266
      %v2287 = vpack.c.b16 %v2267, %v2267
      %v2288 = vpack.c.b16 %v2268, %v2268
      %v2306 = vsel %vm374, %v2285, 0
      %v2309 = vsel %vm374, %v2286, 0
      %v2312 = vsel %vm374, %v2287, 0
      %v2315 = vsel %vm374, %v2288, 0
      %2317 = vmatpush.bf16.msra.mxu0 0
      %2318 = vmatpush.bf16.msra.mxu0 0
      %2319 = vmatpush.bf16.msra.mxu0 0
      %2320 = vmatpush.bf16.msra.mxu0 %v2306
      %2321 = vmatpush.bf16.msra.mxu0 %v2281
      %2322 = vmatpush.bf16.msra.mxu0 %v2277
      %2323 = vmatpush.bf16.msra.mxu0 %v2273
      %2324 = vmatpush.bf16.msra.mxu0 %v2269
      %2325 = vmatmul.bf16.gmra.mxu0 %v755
      %v2326 = vpop.f32.mrf.mxu0
      %v2327 = vadd.f32 %v324, %v2326
      %v2328 = vpop.f32.mrf.mxu0
      %v2329 = vadd.f32 %v329, %v2328
      %2330 = vdwg.mxu0
      %2331 = vmatpush.bf16.msra.mxu0 0
      %2332 = vmatpush.bf16.msra.mxu0 0
      %2333 = vmatpush.bf16.msra.mxu0 0
      %2334 = vmatpush.bf16.msra.mxu0 %v2309
      %2335 = vmatpush.bf16.msra.mxu0 %v2282
      %2336 = vmatpush.bf16.msra.mxu0 %v2278
      %2337 = vmatpush.bf16.msra.mxu0 %v2274
      %2338 = vmatpush.bf16.msra.mxu0 %v2270
      %2339 = vmatmul.bf16.gmra.mxu0 %v755
      %v2340 = vpop.f32.mrf.mxu0
      %v2341 = vadd.f32 %v324, %v2340
      %v2342 = vpop.f32.mrf.mxu0
      %v2343 = vadd.f32 %v329, %v2342
      %2344 = vdwg.mxu0
      %2345 = vmatpush.bf16.msra.mxu0 0
      %2346 = vmatpush.bf16.msra.mxu0 0
      %2347 = vmatpush.bf16.msra.mxu0 0
      %2348 = vmatpush.bf16.msra.mxu0 %v2312
      %2349 = vmatpush.bf16.msra.mxu0 %v2283
      %2350 = vmatpush.bf16.msra.mxu0 %v2279
      %2351 = vmatpush.bf16.msra.mxu0 %v2275
      %2352 = vmatpush.bf16.msra.mxu0 %v2271
      %2353 = vmatmul.bf16.gmra.mxu0 %v755
      %v2354 = vpop.f32.mrf.mxu0
      %v2355 = vadd.f32 %v324, %v2354
      %v2356 = vpop.f32.mrf.mxu0
      %v2357 = vadd.f32 %v329, %v2356
      %2358 = vdwg.mxu0
      %2359 = vmatpush.bf16.msra.mxu0 0
      %2360 = vmatpush.bf16.msra.mxu0 0
      %2361 = vmatpush.bf16.msra.mxu0 0
      %2362 = vmatpush.bf16.msra.mxu0 %v2315
      %2363 = vmatpush.bf16.msra.mxu0 %v2284
      %2364 = vmatpush.bf16.msra.mxu0 %v2280
      %2365 = vmatpush.bf16.msra.mxu0 %v2276
      %2366 = vmatpush.bf16.msra.mxu0 %v2272
      %2367 = vmatmul.bf16.gmra.mxu0 %v755
      %v2368 = vpop.f32.mrf.mxu0
      %v2369 = vadd.f32 %v324, %v2368
      %v2370 = vpop.f32.mrf.mxu0
      %v2371 = vadd.f32 %v329, %v2370
      %2372 = vdwg.mxu0
      %2375 = vst [vmem:[#allocation1] ss:$2 sm:$0xff] %v1920
      %s2376 = scalar_lea.vmem [#allocation1], 16
      %2377 = vst [vmem:[%s2376] ss:$2 sm:$0xff] %v1921
      %v2378 = vld.sshfl [vmem:[#allocation1] sm:$0xff pattern:$0x75316420]
      %v2379 = vld.sshfl [vmem:[#allocation1 + $0x8] sm:$0xff pattern:$0x75316420]
      %v2380 = vld.sshfl [vmem:[#allocation1 + $0x10] sm:$0xff pattern:$0x75316420]
      %v2381 = vld.sshfl [vmem:[#allocation1 + $0x18] sm:$0xff pattern:$0x75316420]
      %s2386 = scalar_lea.vmem [#allocation1], 1
      %2387 = vst [vmem:[%s2386] ss:$2 sm:$0xff] %v1920
      %s2388 = scalar_lea.vmem [#allocation1], 17
      %2389 = vst [vmem:[%s2388] ss:$2 sm:$0xff] %v1921
      %v2390 = vld.sshfl [vmem:[#allocation1] sm:$0xff pattern:$0x75316420]
      %v2391 = vld.sshfl [vmem:[#allocation1 + $0x8] sm:$0xff pattern:$0x75316420]
      %v2392 = vld.sshfl [vmem:[#allocation1 + $0x10] sm:$0xff pattern:$0x75316420]
      %v2393 = vld.sshfl [vmem:[#allocation1 + $0x18] sm:$0xff pattern:$0x75316420]
      %v2398 = vsel %vm374, %v2378, %v2390
      %v2399 = vsel %vm374, %v2379, %v2391
      %v2400 = vsel %vm374, %v2380, %v2392
      %v2401 = vsel %vm374, %v2381, %v2393
      %v2402 = vmul.f32 %v331, %v2398
      %v2403 = vmul.f32 %v332, %v2399
      %v2404 = vmul.f32 %v333, %v2400
      %v2405 = vmul.f32 %v334, %v2401
      %v2406 = vadd.f32 %v2327, %v2402
      %v2407 = vadd.f32 %v2341, %v2403
      %v2408 = vadd.f32 %v2355, %v2404
      %v2409 = vadd.f32 %v2369, %v2405
      %v2410 = vxor.u32 %v2406, 2147483648
      %v2411 = vxor.u32 %v2407, 2147483648
      %v2412 = vxor.u32 %v2408, 2147483648
      %v2413 = vxor.u32 %v2409, 2147483648
      %v2414 = vmul.f32 %v2410, 1.442695
      %v2415 = vpow.pop %v2414
      %v2416 = vmul.f32 %v2411, 1.442695
      %v2417 = vpow.pop %v2416
      %v2418 = vmul.f32 %v2412, 1.442695
      %v2419 = vpow.pop %v2418
      %v2420 = vmul.f32 %v2413, 1.442695
      %v2421 = vpow.pop %v2420
      %v2422 = vadd.f32 %v2415, 1.0
      %v2423 = vadd.f32 %v2417, 1.0
      %v2424 = vadd.f32 %v2419, 1.0
      %v2425 = vadd.f32 %v2421, 1.0
      %v2426 = vrcp.pop %v2422
      %v2427 = vmul.f32 %v2422, %v2426
      %v2428 = vsub.f32 1.0, %v2427
      %v2429 = vmul.f32 %v2426, %v2428
      %v2430 = vadd.f32 %v2426, %v2429
      %vm2431 = vweird.f32 %v2422
      %vm2432 = vweird.f32 %v2426
      %vm2433 = vmor %vm2431, %vm2432
      %v2434 = vsel %vm2433, %v2426, %v2430
      %v2435 = vand.u32 2147483647, %v2422
      %vm2436 = vcmp.eq.f32.partialorder %v2435, 8.507059e+37
      %v2437 = vand.u32 %v2422, 2147483648
      %v2438 = vor.u32 1.1754944e-38, %v2437
      %v2439 = vsel %vm2436, %v2438, %v2434
      %v2440 = vmul.f32 1.0, %v2439
      %v2441 = vrcp.pop %v2423
      %v2442 = vmul.f32 %v2423, %v2441
      %v2443 = vsub.f32 1.0, %v2442
      %v2444 = vmul.f32 %v2441, %v2443
      %v2445 = vadd.f32 %v2441, %v2444
      %vm2446 = vweird.f32 %v2423
      %vm2447 = vweird.f32 %v2441
      %vm2448 = vmor %vm2446, %vm2447
      %v2449 = vsel %vm2448, %v2441, %v2445
      %v2450 = vand.u32 2147483647, %v2423
      %vm2451 = vcmp.eq.f32.partialorder %v2450, 8.507059e+37
      %v2452 = vand.u32 %v2423, 2147483648
      %v2453 = vor.u32 1.1754944e-38, %v2452
      %v2454 = vsel %vm2451, %v2453, %v2449
      %v2455 = vmul.f32 1.0, %v2454
      %v2456 = vrcp.pop %v2424
      %v2457 = vmul.f32 %v2424, %v2456
      %v2458 = vsub.f32 1.0, %v2457
      %v2459 = vmul.f32 %v2456, %v2458
      %v2460 = vadd.f32 %v2456, %v2459
      %vm2461 = vweird.f32 %v2424
      %vm2462 = vweird.f32 %v2456
      %vm2463 = vmor %vm2461, %vm2462
      %v2464 = vsel %vm2463, %v2456, %v2460
      %v2465 = vand.u32 2147483647, %v2424
      %vm2466 = vcmp.eq.f32.partialorder %v2465, 8.507059e+37
      %v2467 = vand.u32 %v2424, 2147483648
      %v2468 = vor.u32 1.1754944e-38, %v2467
      %v2469 = vsel %vm2466, %v2468, %v2464
      %v2470 = vmul.f32 1.0, %v2469
      %v2471 = vrcp.pop %v2425
      %v2472 = vmul.f32 %v2425, %v2471
      %v2473 = vsub.f32 1.0, %v2472
      %v2474 = vmul.f32 %v2471, %v2473
      %v2475 = vadd.f32 %v2471, %v2474
      %vm2476 = vweird.f32 %v2425
      %vm2477 = vweird.f32 %v2471
      %vm2478 = vmor %vm2476, %vm2477
      %v2479 = vsel %vm2478, %v2471, %v2475
      %v2480 = vand.u32 2147483647, %v2425
      %vm2481 = vcmp.eq.f32.partialorder %v2480, 8.507059e+37
      %v2482 = vand.u32 %v2425, 2147483648
      %v2483 = vor.u32 1.1754944e-38, %v2482
      %v2484 = vsel %vm2481, %v2483, %v2479
      %v2485 = vmul.f32 1.0, %v2484
      %s2486 = scalar_lea.vmem [#allocation1], 1
      %2487 = vst [vmem:[%s2486] ss:$2 sm:$0xff] %v1920
      %s2488 = scalar_lea.vmem [#allocation1], 17
      %2489 = vst [vmem:[%s2488] ss:$2 sm:$0xff] %v1921
      %v2490 = vld.sshfl [vmem:[#allocation1] sm:$0xff pattern:$0x75316420]
      %v2491 = vld.sshfl [vmem:[#allocation1 + $0x8] sm:$0xff pattern:$0x75316420]
      %v2492 = vld.sshfl [vmem:[#allocation1 + $0x10] sm:$0xff pattern:$0x75316420]
      %v2493 = vld.sshfl [vmem:[#allocation1 + $0x18] sm:$0xff pattern:$0x75316420]
      %v2498 = vmul.f32 %v2440, %v2490
      %v2499 = vmul.f32 %v2455, %v2491
      %v2500 = vmul.f32 %v2470, %v2492
      %v2501 = vmul.f32 %v2485, %v2493
      %v2502 = vtanh.pop %v2329
      %v2503 = vtanh.pop %v2343
      %v2504 = vtanh.pop %v2357
      %v2505 = vtanh.pop %v2371
      %v2506 = vmul.f32 %v2440, %v2502
      %v2507 = vmul.f32 %v2455, %v2503
      %v2508 = vmul.f32 %v2470, %v2504
      %v2509 = vmul.f32 %v2485, %v2505
      %v2514 = vrot.slane %v2506, 4
      %v2515 = vrot.slane %v2507, 4
      %v2516 = vrot.slane %v2508, 4
      %v2517 = vrot.slane %v2509, 4
      %v2522 = vadd.f32 %v2498, %v2514
      %v2523 = vadd.f32 %v2499, %v2515
      %v2524 = vadd.f32 %v2500, %v2516
      %v2525 = vadd.f32 %v2501, %v2517
      %2530 = vst.sshfl [vmem:[#allocation1] sm:$0xff pattern:$0x75316420] %v2522
      %2531 = vst.sshfl [vmem:[#allocation1 + $0x8] sm:$0xff pattern:$0x75316420] %v2523
      %2532 = vst.sshfl [vmem:[#allocation1 + $0x10] sm:$0xff pattern:$0x75316420] %v2524
      %2533 = vst.sshfl [vmem:[#allocation1 + $0x18] sm:$0xff pattern:$0x75316420] %v2525
      %s2534 = scalar_lea.vmem [#allocation1], 1
      %v2535 = vld [vmem:[%s2534] ss:$2 sm:$0xff]
      %s2536 = scalar_lea.vmem [#allocation1], 17
      %v2537 = vld [vmem:[%s2536] ss:$2 sm:$0xff]
      %v2540 = vmul.f32 %v335, %v2535
      %v2541 = vmul.f32 %v336, %v2537
      %s2544 = scalar_lea.vmem [#allocation1], 1
      %2545 = vst [vmem:[%s2544] ss:$2 sm:$0xff] %v2540
      %s2546 = scalar_lea.vmem [#allocation1], 17
      %2547 = vst [vmem:[%s2546] ss:$2 sm:$0xff] %v2541
      %v2548 = vld.sshfl [vmem:[#allocation1] sm:$0xff pattern:$0x75316420]
      %v2549 = vld.sshfl [vmem:[#allocation1 + $0x8] sm:$0xff pattern:$0x75316420]
      %v2550 = vld.sshfl [vmem:[#allocation1 + $0x10] sm:$0xff pattern:$0x75316420]
      %v2551 = vld.sshfl [vmem:[#allocation1 + $0x18] sm:$0xff pattern:$0x75316420]
      %v2556 = vadd.f32 %v2329, %v2548
      %v2557 = vadd.f32 %v2343, %v2549
      %v2558 = vadd.f32 %v2357, %v2550
      %v2559 = vadd.f32 %v2371, %v2551
      %v2560 = vxor.u32 %v2556, 2147483648
      %v2561 = vxor.u32 %v2557, 2147483648
      %v2562 = vxor.u32 %v2558, 2147483648
      %v2563 = vxor.u32 %v2559, 2147483648
      %v2564 = vmul.f32 %v2560, 1.442695
      %v2565 = vpow.pop %v2564
      %v2566 = vmul.f32 %v2561, 1.442695
      %v2567 = vpow.pop %v2566
      %v2568 = vmul.f32 %v2562, 1.442695
      %v2569 = vpow.pop %v2568
      %v2570 = vmul.f32 %v2563, 1.442695
      %v2571 = vpow.pop %v2570
      %v2572 = vadd.f32 %v2565, 1.0
      %v2573 = vadd.f32 %v2567, 1.0
      %v2574 = vadd.f32 %v2569, 1.0
      %v2575 = vadd.f32 %v2571, 1.0
      %v2576 = vrcp.pop %v2572
      %v2577 = vmul.f32 %v2572, %v2576
      %v2578 = vsub.f32 1.0, %v2577
      %v2579 = vmul.f32 %v2576, %v2578
      %v2580 = vadd.f32 %v2576, %v2579
      %vm2581 = vweird.f32 %v2572
      %vm2582 = vweird.f32 %v2576
      %vm2583 = vmor %vm2581, %vm2582
      %v2584 = vsel %vm2583, %v2576, %v2580
      %v2585 = vand.u32 2147483647, %v2572
      %vm2586 = vcmp.eq.f32.partialorder %v2585, 8.507059e+37
      %v2587 = vand.u32 %v2572, 2147483648
      %v2588 = vor.u32 1.1754944e-38, %v2587
      %v2589 = vsel %vm2586, %v2588, %v2584
      %v2590 = vmul.f32 1.0, %v2589
      %v2591 = vrcp.pop %v2573
      %v2592 = vmul.f32 %v2573, %v2591
      %v2593 = vsub.f32 1.0, %v2592
      %v2594 = vmul.f32 %v2591, %v2593
      %v2595 = vadd.f32 %v2591, %v2594
      %vm2596 = vweird.f32 %v2573
      %vm2597 = vweird.f32 %v2591
      %vm2598 = vmor %vm2596, %vm2597
      %v2599 = vsel %vm2598, %v2591, %v2595
      %v2600 = vand.u32 2147483647, %v2573
      %vm2601 = vcmp.eq.f32.partialorder %v2600, 8.507059e+37
      %v2602 = vand.u32 %v2573, 2147483648
      %v2603 = vor.u32 1.1754944e-38, %v2602
      %v2604 = vsel %vm2601, %v2603, %v2599
      %v2605 = vmul.f32 1.0, %v2604
      %v2606 = vrcp.pop %v2574
      %v2607 = vmul.f32 %v2574, %v2606
      %v2608 = vsub.f32 1.0, %v2607
      %v2609 = vmul.f32 %v2606, %v2608
      %v2610 = vadd.f32 %v2606, %v2609
      %vm2611 = vweird.f32 %v2574
      %vm2612 = vweird.f32 %v2606
      %vm2613 = vmor %vm2611, %vm2612
      %v2614 = vsel %vm2613, %v2606, %v2610
      %v2615 = vand.u32 2147483647, %v2574
      %vm2616 = vcmp.eq.f32.partialorder %v2615, 8.507059e+37
      %v2617 = vand.u32 %v2574, 2147483648
      %v2618 = vor.u32 1.1754944e-38, %v2617
      %v2619 = vsel %vm2616, %v2618, %v2614
      %v2620 = vmul.f32 1.0, %v2619
      %v2621 = vrcp.pop %v2575
      %v2622 = vmul.f32 %v2575, %v2621
      %v2623 = vsub.f32 1.0, %v2622
      %v2624 = vmul.f32 %v2621, %v2623
      %v2625 = vadd.f32 %v2621, %v2624
      %vm2626 = vweird.f32 %v2575
      %vm2627 = vweird.f32 %v2621
      %vm2628 = vmor %vm2626, %vm2627
      %v2629 = vsel %vm2628, %v2621, %v2625
      %v2630 = vand.u32 2147483647, %v2575
      %vm2631 = vcmp.eq.f32.partialorder %v2630, 8.507059e+37
      %v2632 = vand.u32 %v2575, 2147483648
      %v2633 = vor.u32 1.1754944e-38, %v2632
      %v2634 = vsel %vm2631, %v2633, %v2629
      %v2635 = vmul.f32 1.0, %v2634
      %v2636 = vtanh.pop %v2522
      %v2637 = vtanh.pop %v2523
      %v2638 = vtanh.pop %v2524
      %v2639 = vtanh.pop %v2525
      %v2640 = vmul.f32 %v2590, %v2636
      %v2641 = vmul.f32 %v2605, %v2637
      %v2642 = vmul.f32 %v2620, %v2638
      %v2643 = vmul.f32 %v2635, %v2639
      %2648 = vst.sshfl [vmem:[#allocation1] sm:$0xff pattern:$0x75316420] %v2640
      %2649 = vst.sshfl [vmem:[#allocation1 + $0x8] sm:$0xff pattern:$0x75316420] %v2641
      %2650 = vst.sshfl [vmem:[#allocation1 + $0x10] sm:$0xff pattern:$0x75316420] %v2642
      %2651 = vst.sshfl [vmem:[#allocation1 + $0x18] sm:$0xff pattern:$0x75316420] %v2643
      %s2652 = scalar_lea.vmem [#allocation1], 1
      %v2653 = vld [vmem:[%s2652] ss:$2 sm:$0xff]
      %s2654 = scalar_lea.vmem [#allocation1], 17
      %v2655 = vld [vmem:[%s2654] ss:$2 sm:$0xff]
      %2658 = vst [vmem:[#allocation2] sm:$0xff] %v2653
      %2659 = vst [vmem:[#allocation2 + $0x8] sm:$0xff] %v2655
      %2660 = vst.sshfl [vmem:[#allocation1] sm:$0xff pattern:$0x75316420] %v2522
      %2661 = vst.sshfl [vmem:[#allocation1 + $0x8] sm:$0xff pattern:$0x75316420] %v2523
      %2662 = vst.sshfl [vmem:[#allocation1 + $0x10] sm:$0xff pattern:$0x75316420] %v2524
      %2663 = vst.sshfl [vmem:[#allocation1 + $0x18] sm:$0xff pattern:$0x75316420] %v2525
      %s2664 = scalar_lea.vmem [#allocation1], 1
      %v2665 = vld [vmem:[%s2664] ss:$2 sm:$0xff]
      %s2666 = scalar_lea.vmem [#allocation1], 17
      %v2667 = vld [vmem:[%s2666] ss:$2 sm:$0xff]
      %2670 = vst [vmem:[#allocation3] sm:$0xff] %v2665
      %2671 = vst [vmem:[#allocation3 + $0x8] sm:$0xff] %v2667
      %2672 = vst.sshfl [vmem:[#allocation1] sm:$0xff pattern:$0x75316420] %v2640
      %2673 = vst.sshfl [vmem:[#allocation1 + $0x8] sm:$0xff pattern:$0x75316420] %v2641
      %2674 = vst.sshfl [vmem:[#allocation1 + $0x10] sm:$0xff pattern:$0x75316420] %v2642
      %2675 = vst.sshfl [vmem:[#allocation1 + $0x18] sm:$0xff pattern:$0x75316420] %v2643
      %s2676 = scalar_lea.vmem [#allocation1], 1
      %v2677 = vld [vmem:[%s2676] ss:$2 sm:$0xff]
      %s2678 = scalar_lea.vmem [#allocation1], 17
      %v2679 = vld [vmem:[%s2678] ss:$2 sm:$0xff]
      %s2682 = scalar_lea.vmem %s311, 32
      %2683 = vst [vmem:[%s2682] sm:$0xff] %v2677
      %2684 = vst [vmem:[%s2682 + $0x8] sm:$0xff] %v2679
      %s2685 = smul.u32 %s1136, 3
      %s2686 = smul.u32 %s2685, 4
      %s2687 = smul.addr %s2686, 4
      %s2688 = scalar_lea.vmem %s0, %s2687
      %v2689 = vld [vmem:[%s2688] sm:$0xff]
      %v2690 = vld [vmem:[%s2688 + $0x8] sm:$0xff]
      %v2691 = vld [vmem:[#allocation2] sm:$0xff]
      %v2692 = vld [vmem:[#allocation2 + $0x8] sm:$0xff]
      %v2693 = vld [vmem:[#allocation3] sm:$0xff]
      %v2694 = vld [vmem:[#allocation3 + $0x8] sm:$0xff]
      %2697 = vst [vmem:[#allocation1] ss:$2 sm:$0xff] %v2689
      %s2698 = scalar_lea.vmem [#allocation1], 16
      %2699 = vst [vmem:[%s2698] ss:$2 sm:$0xff] %v2690
      %v2700 = vld.sshfl [vmem:[#allocation1] sm:$0xff pattern:$0x75316420]
      %v2701 = vld.sshfl [vmem:[#allocation1 + $0x8] sm:$0xff pattern:$0x75316420]
      %v2702 = vld.sshfl [vmem:[#allocation1 + $0x10] sm:$0xff pattern:$0x75316420]
      %v2703 = vld.sshfl [vmem:[#allocation1 + $0x18] sm:$0xff pattern:$0x75316420]
      %s2710 = scalar_lea.vmem [#allocation1], 1
      %2711 = vst [vmem:[%s2710] ss:$2 sm:$0xff] %v2691
      %s2712 = scalar_lea.vmem [#allocation1], 17
      %2713 = vst [vmem:[%s2712] ss:$2 sm:$0xff] %v2692
      %v2714 = vld.sshfl [vmem:[#allocation1] sm:$0xff pattern:$0x75316420]
      %v2715 = vld.sshfl [vmem:[#allocation1 + $0x8] sm:$0xff pattern:$0x75316420]
      %v2716 = vld.sshfl [vmem:[#allocation1 + $0x10] sm:$0xff pattern:$0x75316420]
      %v2717 = vld.sshfl [vmem:[#allocation1 + $0x18] sm:$0xff pattern:$0x75316420]
      %v2722 = vsel %vm374, %v2700, %v2714
      %v2723 = vsel %vm374, %v2701, %v2715
      %v2724 = vsel %vm374, %v2702, %v2716
      %v2725 = vsel %vm374, %v2703, %v2717
      %2726 = vrot.lane.b32.xlu0 %v2722, 17
      %v2727 = vpop.permute.xlu0 %2726
      %2728 = vrot.lane.b32.xlu0 %v2723, 17
      %v2729 = vpop.permute.xlu0 %2728
      %2730 = vrot.lane.b32.xlu0 %v2724, 17
      %v2731 = vpop.permute.xlu0 %2730
      %2732 = vrot.lane.b32.xlu0 %v2725, 17
      %v2733 = vpop.permute.xlu0 %2732
      %v2734 = vsel %vm389, %v2731, %v2733
      %v2735 = vsel %vm389, %v2729, %v2731
      %v2736 = vsel %vm389, %v2727, %v2729
      %v2737 = vsel %vm389, %v2733, %v2727
      %v2738 = vld [vmem:[%s5] ss:$8 sm:$0xf]
      %v2740 = vperm.slane %v2738, 0
      %v2741 = vperm.slane %v2738, 1
      %v2742 = vperm.slane %v2738, 2
      %v2743 = vperm.slane %v2738, 3
      %v2748 = vmul.f32 %v2737, %v2740
      %v2749 = vmul.f32 %v2736, %v2741
      %v2750 = vmul.f32 %v2735, %v2742
      %v2751 = vmul.f32 %v2734, %v2743
      %v2752 = vpack.c.bf16 %v2749, %v2748
      %v2753 = vpack.c.bf16 %v2751, %v2750
      %2754 = vst [vmem:[#allocation4] sm:$0xff] %v2752
      %2755 = vst [vmem:[#allocation4 + $0x8] sm:$0xff] %v2753
      %2756 = vrot.lane.b32.xlu0 %v2722, 16
      %v2757 = vpop.permute.xlu0 %2756
      %2758 = vrot.lane.b32.xlu0 %v2723, 16
      %v2759 = vpop.permute.xlu0 %2758
      %2760 = vrot.lane.b32.xlu0 %v2724, 16
      %v2761 = vpop.permute.xlu0 %2760
      %2762 = vrot.lane.b32.xlu0 %v2725, 16
      %v2763 = vpop.permute.xlu0 %2762
      %v2764 = vsel %vm420, %v2761, %v2763
      %v2765 = vsel %vm420, %v2759, %v2761
      %v2766 = vsel %vm420, %v2757, %v2759
      %v2767 = vsel %vm420, %v2763, %v2757
      %v2768 = vld [vmem:[%s425] ss:$8 sm:$0xf]
      %v2770 = vperm.slane %v2768, 0
      %v2771 = vperm.slane %v2768, 1
      %v2772 = vperm.slane %v2768, 2
      %v2773 = vperm.slane %v2768, 3
      %v2778 = vmul.f32 %v2767, %v2770
      %v2779 = vmul.f32 %v2766, %v2771
      %v2780 = vmul.f32 %v2765, %v2772
      %v2781 = vmul.f32 %v2764, %v2773
      %v2782 = vpack.c.bf16 %v2779, %v2778
      %v2783 = vpack.c.bf16 %v2781, %v2780
      %2784 = vst [vmem:[#allocation4 + $0x10] sm:$0xff] %v2782
      %2785 = vst [vmem:[#allocation4 + $0x18] sm:$0xff] %v2783
      %2786 = vrot.lane.b32.xlu0 %v2722, 15
      %v2787 = vpop.permute.xlu0 %2786
      %2788 = vrot.lane.b32.xlu0 %v2723, 15
      %v2789 = vpop.permute.xlu0 %2788
      %2790 = vrot.lane.b32.xlu0 %v2724, 15
      %v2791 = vpop.permute.xlu0 %2790
      %2792 = vrot.lane.b32.xlu0 %v2725, 15
      %v2793 = vpop.permute.xlu0 %2792
      %v2794 = vsel %vm452, %v2791, %v2793
      %v2795 = vsel %vm452, %v2789, %v2791
      %v2796 = vsel %vm452, %v2787, %v2789
      %v2797 = vsel %vm452, %v2793, %v2787
      %v2798 = vld [vmem:[%s457] ss:$8 sm:$0xf]
      %v2800 = vperm.slane %v2798, 0
      %v2801 = vperm.slane %v2798, 1
      %v2802 = vperm.slane %v2798, 2
      %v2803 = vperm.slane %v2798, 3
      %v2808 = vmul.f32 %v2797, %v2800
      %v2809 = vmul.f32 %v2796, %v2801
      %v2810 = vmul.f32 %v2795, %v2802
      %v2811 = vmul.f32 %v2794, %v2803
      %v2812 = vpack.c.bf16 %v2809, %v2808
      %v2813 = vpack.c.bf16 %v2811, %v2810
      %2814 = vst [vmem:[#allocation4 + $0x20] sm:$0xff] %v2812
      %2815 = vst [vmem:[#allocation4 + $0x28] sm:$0xff] %v2813
      %2816 = vrot.lane.b32.xlu0 %v2722, 1
      %v2817 = vpop.permute.xlu0 %2816
      %2818 = vrot.lane.b32.xlu0 %v2723, 1
      %v2819 = vpop.permute.xlu0 %2818
      %2820 = vrot.lane.b32.xlu0 %v2724, 1
      %v2821 = vpop.permute.xlu0 %2820
      %2822 = vrot.lane.b32.xlu0 %v2725, 1
      %v2823 = vpop.permute.xlu0 %2822
      %v2824 = vsel %vm484, %v2821, %v2823
      %v2825 = vsel %vm484, %v2819, %v2821
      %v2826 = vsel %vm484, %v2817, %v2819
      %v2827 = vsel %vm484, %v2823, %v2817
      %v2828 = vld [vmem:[%s489] ss:$8 sm:$0xf]
      %v2830 = vperm.slane %v2828, 0
      %v2831 = vperm.slane %v2828, 1
      %v2832 = vperm.slane %v2828, 2
      %v2833 = vperm.slane %v2828, 3
      %v2838 = vmul.f32 %v2827, %v2830
      %v2839 = vmul.f32 %v2826, %v2831
      %v2840 = vmul.f32 %v2825, %v2832
      %v2841 = vmul.f32 %v2824, %v2833
      %v2842 = vpack.c.bf16 %v2839, %v2838
      %v2843 = vpack.c.bf16 %v2841, %v2840
      %2844 = vst [vmem:[#allocation4 + $0x30] sm:$0xff] %v2842
      %2845 = vst [vmem:[#allocation4 + $0x38] sm:$0xff] %v2843
      %v2846 = vpack.c.bf16 %v2723, %v2722
      %v2847 = vpack.c.bf16 %v2725, %v2724
      %2848 = vst [vmem:[#allocation4 + $0x40] sm:$0xff] %v2846
      %2849 = vst [vmem:[#allocation4 + $0x48] sm:$0xff] %v2847
      %2850 = vrot.lane.b32.xlu0 %v2722, 127
      %v2851 = vpop.permute.xlu0 %2850
      %2852 = vrot.lane.b32.xlu0 %v2723, 127
      %v2853 = vpop.permute.xlu0 %2852
      %2854 = vrot.lane.b32.xlu0 %v2724, 127
      %v2855 = vpop.permute.xlu0 %2854
      %2856 = vrot.lane.b32.xlu0 %v2725, 127
      %v2857 = vpop.permute.xlu0 %2856
      %v2858 = vsel %vm520, %v2855, %v2857
      %v2859 = vsel %vm520, %v2853, %v2855
      %v2860 = vsel %vm520, %v2851, %v2853
      %v2861 = vsel %vm520, %v2857, %v2851
      %v2862 = vld [vmem:[%s525] ss:$8 sm:$0xf]
      %v2864 = vperm.slane %v2862, 0
      %v2865 = vperm.slane %v2862, 1
      %v2866 = vperm.slane %v2862, 2
      %v2867 = vperm.slane %v2862, 3
      %v2872 = vmul.f32 %v2860, %v2864
      %v2873 = vmul.f32 %v2859, %v2865
      %v2874 = vmul.f32 %v2858, %v2866
      %v2875 = vmul.f32 %v2861, %v2867
      %v2876 = vpack.c.bf16 %v2873, %v2872
      %v2877 = vpack.c.bf16 %v2875, %v2874
      %2878 = vst [vmem:[#allocation4 + $0x50] sm:$0xff] %v2876
      %2879 = vst [vmem:[#allocation4 + $0x58] sm:$0xff] %v2877
      %2880 = vrot.lane.b32.xlu0 %v2722, 113
      %v2881 = vpop.permute.xlu0 %2880
      %2882 = vrot.lane.b32.xlu0 %v2723, 113
      %v2883 = vpop.permute.xlu0 %2882
      %2884 = vrot.lane.b32.xlu0 %v2724, 113
      %v2885 = vpop.permute.xlu0 %2884
      %2886 = vrot.lane.b32.xlu0 %v2725, 113
      %v2887 = vpop.permute.xlu0 %2886
      %v2888 = vsel %vm552, %v2885, %v2887
      %v2889 = vsel %vm552, %v2883, %v2885
      %v2890 = vsel %vm552, %v2881, %v2883
      %v2891 = vsel %vm552, %v2887, %v2881
      %v2892 = vld [vmem:[%s557] ss:$8 sm:$0xf]
      %v2894 = vperm.slane %v2892, 0
      %v2895 = vperm.slane %v2892, 1
      %v2896 = vperm.slane %v2892, 2
      %v2897 = vperm.slane %v2892, 3
      %v2902 = vmul.f32 %v2890, %v2894
      %v2903 = vmul.f32 %v2889, %v2895
      %v2904 = vmul.f32 %v2888, %v2896
      %v2905 = vmul.f32 %v2891, %v2897
      %v2906 = vpack.c.bf16 %v2903, %v2902
      %v2907 = vpack.c.bf16 %v2905, %v2904
      %2908 = vst [vmem:[#allocation4 + $0x60] sm:$0xff] %v2906
      %2909 = vst [vmem:[#allocation4 + $0x68] sm:$0xff] %v2907
      %2910 = vrot.lane.b32.xlu0 %v2722, 112
      %v2911 = vpop.permute.xlu0 %2910
      %2912 = vrot.lane.b32.xlu0 %v2723, 112
      %v2913 = vpop.permute.xlu0 %2912
      %2914 = vrot.lane.b32.xlu0 %v2724, 112
      %v2915 = vpop.permute.xlu0 %2914
      %2916 = vrot.lane.b32.xlu0 %v2725, 112
      %v2917 = vpop.permute.xlu0 %2916
      %v2918 = vsel %vm584, %v2915, %v2917
      %v2919 = vsel %vm584, %v2913, %v2915
      %v2920 = vsel %vm584, %v2911, %v2913
      %v2921 = vsel %vm584, %v2917, %v2911
      %v2922 = vld [vmem:[%s589] ss:$8 sm:$0xf]
      %v2924 = vperm.slane %v2922, 0
      %v2925 = vperm.slane %v2922, 1
      %v2926 = vperm.slane %v2922, 2
      %v2927 = vperm.slane %v2922, 3
      %v2932 = vmul.f32 %v2920, %v2924
      %v2933 = vmul.f32 %v2919, %v2925
      %v2934 = vmul.f32 %v2918, %v2926
      %v2935 = vmul.f32 %v2921, %v2927
      %v2936 = vpack.c.bf16 %v2933, %v2932
      %v2937 = vpack.c.bf16 %v2935, %v2934
      %2938 = vst [vmem:[#allocation4 + $0x70] sm:$0xff] %v2936
      %2939 = vst [vmem:[#allocation4 + $0x78] sm:$0xff] %v2937
      %2940 = vrot.lane.b32.xlu0 %v2722, 111
      %v2941 = vpop.permute.xlu0 %2940
      %2942 = vrot.lane.b32.xlu0 %v2723, 111
      %v2943 = vpop.permute.xlu0 %2942
      %2944 = vrot.lane.b32.xlu0 %v2724, 111
      %v2945 = vpop.permute.xlu0 %2944
      %2946 = vrot.lane.b32.xlu0 %v2725, 111
      %v2947 = vpop.permute.xlu0 %2946
      %v2948 = vsel %vm616, %v2945, %v2947
      %v2949 = vsel %vm616, %v2943, %v2945
      %v2950 = vsel %vm616, %v2941, %v2943
      %v2951 = vsel %vm616, %v2947, %v2941
      %v2952 = vld [vmem:[%s621] ss:$8 sm:$0xf]
      %v2954 = vperm.slane %v2952, 0
      %v2955 = vperm.slane %v2952, 1
      %v2956 = vperm.slane %v2952, 2
      %v2957 = vperm.slane %v2952, 3
      %v2962 = vmul.f32 %v2950, %v2954
      %v2963 = vmul.f32 %v2949, %v2955
      %v2964 = vmul.f32 %v2948, %v2956
      %v2965 = vmul.f32 %v2951, %v2957
      %v2966 = vpack.c.bf16 %v2963, %v2962
      %v2967 = vpack.c.bf16 %v2965, %v2964
      %2968 = vst [vmem:[#allocation4 + $0x80] sm:$0xff] %v2966
      %2969 = vst [vmem:[#allocation4 + $0x88] sm:$0xff] %v2967
      %v2970 = vld [vmem:[#allocation4] sm:$0xff]
      %v2971 = vld [vmem:[#allocation4 + $0x8] sm:$0xff]
      %v2972 = vld [vmem:[#allocation4 + $0x10] sm:$0xff]
      %v2973 = vld [vmem:[#allocation4 + $0x18] sm:$0xff]
      %v2974 = vld [vmem:[#allocation4 + $0x20] sm:$0xff]
      %v2975 = vld [vmem:[#allocation4 + $0x28] sm:$0xff]
      %v2976 = vld [vmem:[#allocation4 + $0x30] sm:$0xff]
      %v2977 = vld [vmem:[#allocation4 + $0x38] sm:$0xff]
      %v2978 = vld [vmem:[#allocation4 + $0x40] sm:$0xff]
      %v2979 = vld [vmem:[#allocation4 + $0x48] sm:$0xff]
      %v2980 = vld [vmem:[#allocation4 + $0x50] sm:$0xff]
      %v2981 = vld [vmem:[#allocation4 + $0x58] sm:$0xff]
      %v2982 = vld [vmem:[#allocation4 + $0x60] sm:$0xff]
      %v2983 = vld [vmem:[#allocation4 + $0x68] sm:$0xff]
      %v2984 = vld [vmem:[#allocation4 + $0x70] sm:$0xff]
      %v2985 = vld [vmem:[#allocation4 + $0x78] sm:$0xff]
      %v2986 = vld [vmem:[#allocation4 + $0x80] sm:$0xff]
      %v2987 = vld [vmem:[#allocation4 + $0x88] sm:$0xff]
      %v3006 = vunpack.c.l.b16 %v2970
      %v3007 = vunpack.c.h.b16 %v2970
      %v3008 = vunpack.c.l.b16 %v2971
      %v3009 = vunpack.c.h.b16 %v2971
      %v3010 = vunpack.c.l.b16 %v2972
      %v3011 = vunpack.c.h.b16 %v2972
      %v3012 = vunpack.c.l.b16 %v2973
      %v3013 = vunpack.c.h.b16 %v2973
      %v3014 = vunpack.c.l.b16 %v2974
      %v3015 = vunpack.c.h.b16 %v2974
      %v3016 = vunpack.c.l.b16 %v2975
      %v3017 = vunpack.c.h.b16 %v2975
      %v3018 = vunpack.c.l.b16 %v2976
      %v3019 = vunpack.c.h.b16 %v2976
      %v3020 = vunpack.c.l.b16 %v2977
      %v3021 = vunpack.c.h.b16 %v2977
      %v3022 = vunpack.c.l.b16 %v2978
      %v3023 = vunpack.c.h.b16 %v2978
      %v3024 = vunpack.c.l.b16 %v2979
      %v3025 = vunpack.c.h.b16 %v2979
      %v3026 = vunpack.c.l.b16 %v2980
      %v3027 = vunpack.c.h.b16 %v2980
      %v3028 = vunpack.c.l.b16 %v2981
      %v3029 = vunpack.c.h.b16 %v2981
      %v3030 = vunpack.c.l.b16 %v2982
      %v3031 = vunpack.c.h.b16 %v2982
      %v3032 = vunpack.c.l.b16 %v2983
      %v3033 = vunpack.c.h.b16 %v2983
      %v3034 = vunpack.c.l.b16 %v2984
      %v3035 = vunpack.c.h.b16 %v2984
      %v3036 = vunpack.c.l.b16 %v2985
      %v3037 = vunpack.c.h.b16 %v2985
      %v3038 = vunpack.c.l.b16 %v2986
      %v3039 = vunpack.c.h.b16 %v2986
      %v3040 = vunpack.c.l.b16 %v2987
      %v3041 = vunpack.c.h.b16 %v2987
      %v3042 = vpack.c.b16 %v3010, %v3006
      %v3043 = vpack.c.b16 %v3011, %v3007
      %v3044 = vpack.c.b16 %v3012, %v3008
      %v3045 = vpack.c.b16 %v3013, %v3009
      %v3046 = vpack.c.b16 %v3018, %v3014
      %v3047 = vpack.c.b16 %v3019, %v3015
      %v3048 = vpack.c.b16 %v3020, %v3016
      %v3049 = vpack.c.b16 %v3021, %v3017
      %v3050 = vpack.c.b16 %v3026, %v3022
      %v3051 = vpack.c.b16 %v3027, %v3023
      %v3052 = vpack.c.b16 %v3028, %v3024
      %v3053 = vpack.c.b16 %v3029, %v3025
      %v3054 = vpack.c.b16 %v3034, %v3030
      %v3055 = vpack.c.b16 %v3035, %v3031
      %v3056 = vpack.c.b16 %v3036, %v3032
      %v3057 = vpack.c.b16 %v3037, %v3033
      %v3058 = vpack.c.b16 %v3038, %v3038
      %v3059 = vpack.c.b16 %v3039, %v3039
      %v3060 = vpack.c.b16 %v3040, %v3040
      %v3061 = vpack.c.b16 %v3041, %v3041
      %v3079 = vsel %vm374, %v3058, 0
      %v3082 = vsel %vm374, %v3059, 0
      %v3085 = vsel %vm374, %v3060, 0
      %v3088 = vsel %vm374, %v3061, 0
      %3090 = vmatpush.bf16.msra.mxu0 0
      %3091 = vmatpush.bf16.msra.mxu0 0
      %3092 = vmatpush.bf16.msra.mxu0 0
      %3093 = vmatpush.bf16.msra.mxu0 %v3079
      %3094 = vmatpush.bf16.msra.mxu0 %v3054
      %3095 = vmatpush.bf16.msra.mxu0 %v3050
      %3096 = vmatpush.bf16.msra.mxu0 %v3046
      %3097 = vmatpush.bf16.msra.mxu0 %v3042
      %3098 = vmatmul.bf16.gmra.mxu0 %v755
      %v3099 = vpop.f32.mrf.mxu0
      %v3100 = vadd.f32 %v324, %v3099
      %v3101 = vpop.f32.mrf.mxu0
      %v3102 = vadd.f32 %v329, %v3101
      %3103 = vdwg.mxu0
      %3104 = vmatpush.bf16.msra.mxu0 0
      %3105 = vmatpush.bf16.msra.mxu0 0
      %3106 = vmatpush.bf16.msra.mxu0 0
      %3107 = vmatpush.bf16.msra.mxu0 %v3082
      %3108 = vmatpush.bf16.msra.mxu0 %v3055
      %3109 = vmatpush.bf16.msra.mxu0 %v3051
      %3110 = vmatpush.bf16.msra.mxu0 %v3047
      %3111 = vmatpush.bf16.msra.mxu0 %v3043
      %3112 = vmatmul.bf16.gmra.mxu0 %v755
      %v3113 = vpop.f32.mrf.mxu0
      %v3114 = vadd.f32 %v324, %v3113
      %v3115 = vpop.f32.mrf.mxu0
      %v3116 = vadd.f32 %v329, %v3115
      %3117 = vdwg.mxu0
      %3118 = vmatpush.bf16.msra.mxu0 0
      %3119 = vmatpush.bf16.msra.mxu0 0
      %3120 = vmatpush.bf16.msra.mxu0 0
      %3121 = vmatpush.bf16.msra.mxu0 %v3085
      %3122 = vmatpush.bf16.msra.mxu0 %v3056
      %3123 = vmatpush.bf16.msra.mxu0 %v3052
      %3124 = vmatpush.bf16.msra.mxu0 %v3048
      %3125 = vmatpush.bf16.msra.mxu0 %v3044
      %3126 = vmatmul.bf16.gmra.mxu0 %v755
      %v3127 = vpop.f32.mrf.mxu0
      %v3128 = vadd.f32 %v324, %v3127
      %v3129 = vpop.f32.mrf.mxu0
      %v3130 = vadd.f32 %v329, %v3129
      %3131 = vdwg.mxu0
      %3132 = vmatpush.bf16.msra.mxu0 0
      %3133 = vmatpush.bf16.msra.mxu0 0
      %3134 = vmatpush.bf16.msra.mxu0 0
      %3135 = vmatpush.bf16.msra.mxu0 %v3088
      %3136 = vmatpush.bf16.msra.mxu0 %v3057
      %3137 = vmatpush.bf16.msra.mxu0 %v3053
      %3138 = vmatpush.bf16.msra.mxu0 %v3049
      %3139 = vmatpush.bf16.msra.mxu0 %v3045
      %3140 = vmatmul.bf16.gmra.mxu0 %v755
      %v3141 = vpop.f32.mrf.mxu0
      %v3142 = vadd.f32 %v324, %v3141
      %v3143 = vpop.f32.mrf.mxu0
      %v3144 = vadd.f32 %v329, %v3143
      %3145 = vdwg.mxu0
      %3148 = vst [vmem:[#allocation1] ss:$2 sm:$0xff] %v2693
      %s3149 = scalar_lea.vmem [#allocation1], 16
      %3150 = vst [vmem:[%s3149] ss:$2 sm:$0xff] %v2694
      %v3151 = vld.sshfl [vmem:[#allocation1] sm:$0xff pattern:$0x75316420]
      %v3152 = vld.sshfl [vmem:[#allocation1 + $0x8] sm:$0xff pattern:$0x75316420]
      %v3153 = vld.sshfl [vmem:[#allocation1 + $0x10] sm:$0xff pattern:$0x75316420]
      %v3154 = vld.sshfl [vmem:[#allocation1 + $0x18] sm:$0xff pattern:$0x75316420]
      %s3159 = scalar_lea.vmem [#allocation1], 1
      %3160 = vst [vmem:[%s3159] ss:$2 sm:$0xff] %v2693
      %s3161 = scalar_lea.vmem [#allocation1], 17
      %3162 = vst [vmem:[%s3161] ss:$2 sm:$0xff] %v2694
      %v3163 = vld.sshfl [vmem:[#allocation1] sm:$0xff pattern:$0x75316420]
      %v3164 = vld.sshfl [vmem:[#allocation1 + $0x8] sm:$0xff pattern:$0x75316420]
      %v3165 = vld.sshfl [vmem:[#allocation1 + $0x10] sm:$0xff pattern:$0x75316420]
      %v3166 = vld.sshfl [vmem:[#allocation1 + $0x18] sm:$0xff pattern:$0x75316420]
      %v3171 = vsel %vm374, %v3151, %v3163
      %v3172 = vsel %vm374, %v3152, %v3164
      %v3173 = vsel %vm374, %v3153, %v3165
      %v3174 = vsel %vm374, %v3154, %v3166
      %v3175 = vmul.f32 %v331, %v3171
      %v3176 = vmul.f32 %v332, %v3172
      %v3177 = vmul.f32 %v333, %v3173
      %v3178 = vmul.f32 %v334, %v3174
      %v3179 = vadd.f32 %v3100, %v3175
      %v3180 = vadd.f32 %v3114, %v3176
      %v3181 = vadd.f32 %v3128, %v3177
      %v3182 = vadd.f32 %v3142, %v3178
      %v3183 = vxor.u32 %v3179, 2147483648
      %v3184 = vxor.u32 %v3180, 2147483648
      %v3185 = vxor.u32 %v3181, 2147483648
      %v3186 = vxor.u32 %v3182, 2147483648
      %v3187 = vmul.f32 %v3183, 1.442695
      %v3188 = vpow.pop %v3187
      %v3189 = vmul.f32 %v3184, 1.442695
      %v3190 = vpow.pop %v3189
      %v3191 = vmul.f32 %v3185, 1.442695
      %v3192 = vpow.pop %v3191
      %v3193 = vmul.f32 %v3186, 1.442695
      %v3194 = vpow.pop %v3193
      %v3195 = vadd.f32 %v3188, 1.0
      %v3196 = vadd.f32 %v3190, 1.0
      %v3197 = vadd.f32 %v3192, 1.0
      %v3198 = vadd.f32 %v3194, 1.0
      %v3199 = vrcp.pop %v3195
      %v3200 = vmul.f32 %v3195, %v3199
      %v3201 = vsub.f32 1.0, %v3200
      %v3202 = vmul.f32 %v3199, %v3201
      %v3203 = vadd.f32 %v3199, %v3202
      %vm3204 = vweird.f32 %v3195
      %vm3205 = vweird.f32 %v3199
      %vm3206 = vmor %vm3204, %vm3205
      %v3207 = vsel %vm3206, %v3199, %v3203
      %v3208 = vand.u32 2147483647, %v3195
      %vm3209 = vcmp.eq.f32.partialorder %v3208, 8.507059e+37
      %v3210 = vand.u32 %v3195, 2147483648
      %v3211 = vor.u32 1.1754944e-38, %v3210
      %v3212 = vsel %vm3209, %v3211, %v3207
      %v3213 = vmul.f32 1.0, %v3212
      %v3214 = vrcp.pop %v3196
      %v3215 = vmul.f32 %v3196, %v3214
      %v3216 = vsub.f32 1.0, %v3215
      %v3217 = vmul.f32 %v3214, %v3216
      %v3218 = vadd.f32 %v3214, %v3217
      %vm3219 = vweird.f32 %v3196
      %vm3220 = vweird.f32 %v3214
      %vm3221 = vmor %vm3219, %vm3220
      %v3222 = vsel %vm3221, %v3214, %v3218
      %v3223 = vand.u32 2147483647, %v3196
      %vm3224 = vcmp.eq.f32.partialorder %v3223, 8.507059e+37
      %v3225 = vand.u32 %v3196, 2147483648
      %v3226 = vor.u32 1.1754944e-38, %v3225
      %v3227 = vsel %vm3224, %v3226, %v3222
      %v3228 = vmul.f32 1.0, %v3227
      %v3229 = vrcp.pop %v3197
      %v3230 = vmul.f32 %v3197, %v3229
      %v3231 = vsub.f32 1.0, %v3230
      %v3232 = vmul.f32 %v3229, %v3231
      %v3233 = vadd.f32 %v3229, %v3232
      %vm3234 = vweird.f32 %v3197
      %vm3235 = vweird.f32 %v3229
      %vm3236 = vmor %vm3234, %vm3235
      %v3237 = vsel %vm3236, %v3229, %v3233
      %v3238 = vand.u32 2147483647, %v3197
      %vm3239 = vcmp.eq.f32.partialorder %v3238, 8.507059e+37
      %v3240 = vand.u32 %v3197, 2147483648
      %v3241 = vor.u32 1.1754944e-38, %v3240
      %v3242 = vsel %vm3239, %v3241, %v3237
      %v3243 = vmul.f32 1.0, %v3242
      %v3244 = vrcp.pop %v3198
      %v3245 = vmul.f32 %v3198, %v3244
      %v3246 = vsub.f32 1.0, %v3245
      %v3247 = vmul.f32 %v3244, %v3246
      %v3248 = vadd.f32 %v3244, %v3247
      %vm3249 = vweird.f32 %v3198
      %vm3250 = vweird.f32 %v3244
      %vm3251 = vmor %vm3249, %vm3250
      %v3252 = vsel %vm3251, %v3244, %v3248
      %v3253 = vand.u32 2147483647, %v3198
      %vm3254 = vcmp.eq.f32.partialorder %v3253, 8.507059e+37
      %v3255 = vand.u32 %v3198, 2147483648
      %v3256 = vor.u32 1.1754944e-38, %v3255
      %v3257 = vsel %vm3254, %v3256, %v3252
      %v3258 = vmul.f32 1.0, %v3257
      %s3259 = scalar_lea.vmem [#allocation1], 1
      %3260 = vst [vmem:[%s3259] ss:$2 sm:$0xff] %v2693
      %s3261 = scalar_lea.vmem [#allocation1], 17
      %3262 = vst [vmem:[%s3261] ss:$2 sm:$0xff] %v2694
      %v3263 = vld.sshfl [vmem:[#allocation1] sm:$0xff pattern:$0x75316420]
      %v3264 = vld.sshfl [vmem:[#allocation1 + $0x8] sm:$0xff pattern:$0x75316420]
      %v3265 = vld.sshfl [vmem:[#allocation1 + $0x10] sm:$0xff pattern:$0x75316420]
      %v3266 = vld.sshfl [vmem:[#allocation1 + $0x18] sm:$0xff pattern:$0x75316420]
      %v3271 = vmul.f32 %v3213, %v3263
      %v3272 = vmul.f32 %v3228, %v3264
      %v3273 = vmul.f32 %v3243, %v3265
      %v3274 = vmul.f32 %v3258, %v3266
      %v3275 = vtanh.pop %v3102
      %v3276 = vtanh.pop %v3116
      %v3277 = vtanh.pop %v3130
      %v3278 = vtanh.pop %v3144
      %v3279 = vmul.f32 %v3213, %v3275
      %v3280 = vmul.f32 %v3228, %v3276
      %v3281 = vmul.f32 %v3243, %v3277
      %v3282 = vmul.f32 %v3258, %v3278
      %v3287 = vrot.slane %v3279, 4
      %v3288 = vrot.slane %v3280, 4
      %v3289 = vrot.slane %v3281, 4
      %v3290 = vrot.slane %v3282, 4
      %v3295 = vadd.f32 %v3271, %v3287
      %v3296 = vadd.f32 %v3272, %v3288
      %v3297 = vadd.f32 %v3273, %v3289
      %v3298 = vadd.f32 %v3274, %v3290
      %3303 = vst.sshfl [vmem:[#allocation1] sm:$0xff pattern:$0x75316420] %v3295
      %3304 = vst.sshfl [vmem:[#allocation1 + $0x8] sm:$0xff pattern:$0x75316420] %v3296
      %3305 = vst.sshfl [vmem:[#allocation1 + $0x10] sm:$0xff pattern:$0x75316420] %v3297
      %3306 = vst.sshfl [vmem:[#allocation1 + $0x18] sm:$0xff pattern:$0x75316420] %v3298
      %s3307 = scalar_lea.vmem [#allocation1], 1
      %v3308 = vld [vmem:[%s3307] ss:$2 sm:$0xff]
      %s3309 = scalar_lea.vmem [#allocation1], 17
      %v3310 = vld [vmem:[%s3309] ss:$2 sm:$0xff]
      %v3313 = vmul.f32 %v335, %v3308
      %v3314 = vmul.f32 %v336, %v3310
      %s3317 = scalar_lea.vmem [#allocation1], 1
      %3318 = vst [vmem:[%s3317] ss:$2 sm:$0xff] %v3313
      %s3319 = scalar_lea.vmem [#allocation1], 17
      %3320 = vst [vmem:[%s3319] ss:$2 sm:$0xff] %v3314
      %v3321 = vld.sshfl [vmem:[#allocation1] sm:$0xff pattern:$0x75316420]
      %v3322 = vld.sshfl [vmem:[#allocation1 + $0x8] sm:$0xff pattern:$0x75316420]
      %v3323 = vld.sshfl [vmem:[#allocation1 + $0x10] sm:$0xff pattern:$0x75316420]
      %v3324 = vld.sshfl [vmem:[#allocation1 + $0x18] sm:$0xff pattern:$0x75316420]
      %v3329 = vadd.f32 %v3102, %v3321
      %v3330 = vadd.f32 %v3116, %v3322
      %v3331 = vadd.f32 %v3130, %v3323
      %v3332 = vadd.f32 %v3144, %v3324
      %v3333 = vxor.u32 %v3329, 2147483648
      %v3334 = vxor.u32 %v3330, 2147483648
      %v3335 = vxor.u32 %v3331, 2147483648
      %v3336 = vxor.u32 %v3332, 2147483648
      %v3337 = vmul.f32 %v3333, 1.442695
      %v3338 = vpow.pop %v3337
      %v3339 = vmul.f32 %v3334, 1.442695
      %v3340 = vpow.pop %v3339
      %v3341 = vmul.f32 %v3335, 1.442695
      %v3342 = vpow.pop %v3341
      %v3343 = vmul.f32 %v3336, 1.442695
      %v3344 = vpow.pop %v3343
      %v3345 = vadd.f32 %v3338, 1.0
      %v3346 = vadd.f32 %v3340, 1.0
      %v3347 = vadd.f32 %v3342, 1.0
      %v3348 = vadd.f32 %v3344, 1.0
      %v3349 = vrcp.pop %v3345
      %v3350 = vmul.f32 %v3345, %v3349
      %v3351 = vsub.f32 1.0, %v3350
      %v3352 = vmul.f32 %v3349, %v3351
      %v3353 = vadd.f32 %v3349, %v3352
      %vm3354 = vweird.f32 %v3345
      %vm3355 = vweird.f32 %v3349
      %vm3356 = vmor %vm3354, %vm3355
      %v3357 = vsel %vm3356, %v3349, %v3353
      %v3358 = vand.u32 2147483647, %v3345
      %vm3359 = vcmp.eq.f32.partialorder %v3358, 8.507059e+37
      %v3360 = vand.u32 %v3345, 2147483648
      %v3361 = vor.u32 1.1754944e-38, %v3360
      %v3362 = vsel %vm3359, %v3361, %v3357
      %v3363 = vmul.f32 1.0, %v3362
      %v3364 = vrcp.pop %v3346
      %v3365 = vmul.f32 %v3346, %v3364
      %v3366 = vsub.f32 1.0, %v3365
      %v3367 = vmul.f32 %v3364, %v3366
      %v3368 = vadd.f32 %v3364, %v3367
      %vm3369 = vweird.f32 %v3346
      %vm3370 = vweird.f32 %v3364
      %vm3371 = vmor %vm3369, %vm3370
      %v3372 = vsel %vm3371, %v3364, %v3368
      %v3373 = vand.u32 2147483647, %v3346
      %vm3374 = vcmp.eq.f32.partialorder %v3373, 8.507059e+37
      %v3375 = vand.u32 %v3346, 2147483648
      %v3376 = vor.u32 1.1754944e-38, %v3375
      %v3377 = vsel %vm3374, %v3376, %v3372
      %v3378 = vmul.f32 1.0, %v3377
      %v3379 = vrcp.pop %v3347
      %v3380 = vmul.f32 %v3347, %v3379
      %v3381 = vsub.f32 1.0, %v3380
      %v3382 = vmul.f32 %v3379, %v3381
      %v3383 = vadd.f32 %v3379, %v3382
      %vm3384 = vweird.f32 %v3347
      %vm3385 = vweird.f32 %v3379
      %vm3386 = vmor %vm3384, %vm3385
      %v3387 = vsel %vm3386, %v3379, %v3383
      %v3388 = vand.u32 2147483647, %v3347
      %vm3389 = vcmp.eq.f32.partialorder %v3388, 8.507059e+37
      %v3390 = vand.u32 %v3347, 2147483648
      %v3391 = vor.u32 1.1754944e-38, %v3390
      %v3392 = vsel %vm3389, %v3391, %v3387
      %v3393 = vmul.f32 1.0, %v3392
      %v3394 = vrcp.pop %v3348
      %v3395 = vmul.f32 %v3348, %v3394
      %v3396 = vsub.f32 1.0, %v3395
      %v3397 = vmul.f32 %v3394, %v3396
      %v3398 = vadd.f32 %v3394, %v3397
      %vm3399 = vweird.f32 %v3348
      %vm3400 = vweird.f32 %v3394
      %vm3401 = vmor %vm3399, %vm3400
      %v3402 = vsel %vm3401, %v3394, %v3398
      %v3403 = vand.u32 2147483647, %v3348
      %vm3404 = vcmp.eq.f32.partialorder %v3403, 8.507059e+37
      %v3405 = vand.u32 %v3348, 2147483648
      %v3406 = vor.u32 1.1754944e-38, %v3405
      %v3407 = vsel %vm3404, %v3406, %v3402
      %v3408 = vmul.f32 1.0, %v3407
      %v3409 = vtanh.pop %v3295
      %v3410 = vtanh.pop %v3296
      %v3411 = vtanh.pop %v3297
      %v3412 = vtanh.pop %v3298
      %v3413 = vmul.f32 %v3363, %v3409
      %v3414 = vmul.f32 %v3378, %v3410
      %v3415 = vmul.f32 %v3393, %v3411
      %v3416 = vmul.f32 %v3408, %v3412
      %3421 = vst.sshfl [vmem:[#allocation1] sm:$0xff pattern:$0x75316420] %v3413
      %3422 = vst.sshfl [vmem:[#allocation1 + $0x8] sm:$0xff pattern:$0x75316420] %v3414
      %3423 = vst.sshfl [vmem:[#allocation1 + $0x10] sm:$0xff pattern:$0x75316420] %v3415
      %3424 = vst.sshfl [vmem:[#allocation1 + $0x18] sm:$0xff pattern:$0x75316420] %v3416
      %s3425 = scalar_lea.vmem [#allocation1], 1
      %v3426 = vld [vmem:[%s3425] ss:$2 sm:$0xff]
      %s3427 = scalar_lea.vmem [#allocation1], 17
      %v3428 = vld [vmem:[%s3427] ss:$2 sm:$0xff]
      %3431 = vst [vmem:[#allocation2] sm:$0xff] %v3426
      %3432 = vst [vmem:[#allocation2 + $0x8] sm:$0xff] %v3428
      %3433 = vst.sshfl [vmem:[#allocation1] sm:$0xff pattern:$0x75316420] %v3295
      %3434 = vst.sshfl [vmem:[#allocation1 + $0x8] sm:$0xff pattern:$0x75316420] %v3296
      %3435 = vst.sshfl [vmem:[#allocation1 + $0x10] sm:$0xff pattern:$0x75316420] %v3297
      %3436 = vst.sshfl [vmem:[#allocation1 + $0x18] sm:$0xff pattern:$0x75316420] %v3298
      %s3437 = scalar_lea.vmem [#allocation1], 1
      %v3438 = vld [vmem:[%s3437] ss:$2 sm:$0xff]
      %s3439 = scalar_lea.vmem [#allocation1], 17
      %v3440 = vld [vmem:[%s3439] ss:$2 sm:$0xff]
      %3443 = vst [vmem:[#allocation3] sm:$0xff] %v3438
      %3444 = vst [vmem:[#allocation3 + $0x8] sm:$0xff] %v3440
      %3445 = vst.sshfl [vmem:[#allocation1] sm:$0xff pattern:$0x75316420] %v3413
      %3446 = vst.sshfl [vmem:[#allocation1 + $0x8] sm:$0xff pattern:$0x75316420] %v3414
      %3447 = vst.sshfl [vmem:[#allocation1 + $0x10] sm:$0xff pattern:$0x75316420] %v3415
      %3448 = vst.sshfl [vmem:[#allocation1 + $0x18] sm:$0xff pattern:$0x75316420] %v3416
      %s3449 = scalar_lea.vmem [#allocation1], 1
      %v3450 = vld [vmem:[%s3449] ss:$2 sm:$0xff]
      %s3451 = scalar_lea.vmem [#allocation1], 17
      %v3452 = vld [vmem:[%s3451] ss:$2 sm:$0xff]
      %s3455 = scalar_lea.vmem %s311, 48
      %3456 = vst [vmem:[%s3455] sm:$0xff] %v3450
      %3457 = vst [vmem:[%s3455 + $0x8] sm:$0xff] %v3452
      %p3458 = scmp.lt.s32.totalorder %s17, 1
      %s3459 = scalar_select %p3458, %s17, 1
      %s3460 = smul.addr %s3459, 16
      %s3461 = smul.addr %s3460, 4
      %s3462 = scalar_lea.vmem %s6, %s3461
      // Predicated region
      $region45: #{conv_blstm_forward.1} parent=43 // pred_check
        %p3463 = pneg %p181
      $region46: #{conv_blstm_forward.1} parent=43 // pred_check_branch
        %3465 = sbr.rel (%p3463) target = $region48
      $region47: #{conv_blstm_forward.1} parent=43 // pred_region
        _
      $region48: #{conv_blstm_forward.1} parent=43 // pred_fallthru
        _
    $region44: #{conv_blstm_forward.1} parent=5 // pred_fallthru
      _
    %p3466 = scmp.le.s32.totalorder 2, %s12
    // Predicated region
    $region49: #{conv_blstm_forward.1} parent=5 // pred_check
      %p3467 = pneg %p3466
    $region50: #{conv_blstm_forward.1} parent=5 // pred_check_branch
      %3469 = sbr.rel (%p3467) target = $region52
    $region51: #{conv_blstm_forward.1} parent=5 // pred_region
      %s3470 = ssub.s32 %s12, 2
      // Predicated region
      $region53: #{conv_blstm_forward.1} parent=51 // pred_check
        %p3471 = pneg %p187
      $region54: #{conv_blstm_forward.1} parent=51 // pred_check_branch
        %3473 = sbr.rel (%p3471) target = $region56
      $region55: #{conv_blstm_forward.1} parent=51 // pred_region
        %p3474 = scmp.lt.s32.totalorder %s18, 1
        %s3475 = scalar_select %p3474, %s18, 1
        %s3476 = smul.addr %s3475, 16
        %s3477 = smul.addr %s3476, 4
        %s3478 = scalar_lea.vmem %s6, %s3477
      $region56: #{conv_blstm_forward.1} parent=51 // pred_fallthru
        _
    $region52: #{conv_blstm_forward.1} parent=5 // pred_fallthru
      _
  $region6: #{conv_blstm_forward.1} parent=0 // loop_footer
    %s16 = sadd.s32 1, %s12
  $region7: #{conv_blstm_forward.1} parent=0 // loop_footer_branch
    %11 = sbr.rel target = $region3
  $region8: #{conv_blstm_forward.1} parent=0 // loop_exit
    _

</llo_original>
